<compile_context>
chip_gen: v7x
topology: tpu7x:2x2x1
jax: 0.10.0
libtpu: 0.0.40
codegen_flags: <defaults>
</compile_context>

<pallas_src>
import functools

import jax
import jax.numpy as jnp
import numpy as np
from jax import lax
from jax.experimental import pallas as pl
from jax.experimental.pallas import tpu as pltpu

EPS = 1e-5          # PyTorch BatchNorm2d default eps
LRELU_SLOPE = 0.2

# ConvTranspose2d(k=4, s=2, p=1): output index o = 2*i + k - 1 = 2*q + parity.
# For each output parity, exactly two (padded-input offset d, kernel tap k)
# pairs contribute:
#   parity 0: (d=0, k=3), (d=1, k=1)
#   parity 1: (d=1, k=2), (d=2, k=0)
_PHASE_TAPS = {0: ((0, 3), (1, 1)), 1: ((1, 2), (2, 0))}
_PHASES = ((0, 0), (0, 1), (1, 0), (1, 1))   # (parity_y, parity_x), index py*2+px


# ----------------------------- Pallas kernels ------------------------------

def _linear_bn_kernel(z_ref, w_ref, b_ref, g_ref, beta_ref, o_ref, *, n_spatial, C):
    # Fused nn.Linear + BatchNorm2d(C) (training-mode batch stats).
    # Linear weight/bias columns are pre-permuted to (y, x, c) order, so
    # channel c lives at lanes j*C + c for spatial j in [0, n_spatial).
    lin = jnp.dot(z_ref[...], w_ref[...],
                  preferred_element_type=jnp.float32) + b_ref[...]     # (B, n_spatial*C)
    n = lin.shape[0] * n_spatial
    rsum = jnp.sum(lin, axis=0, keepdims=True)                          # (1, n_spatial*C)
    mean = sum(rsum[:, j * C:(j + 1) * C] for j in range(n_spatial)) / n  # (1, C)
    mean_full = jnp.concatenate([mean] * n_spatial, axis=1)
    d = lin - mean_full
    r2 = jnp.sum(d * d, axis=0, keepdims=True)
    var = sum(r2[:, j * C:(j + 1) * C] for j in range(n_spatial)) / n     # biased
    scale = g_ref[...] * lax.rsqrt(var + EPS)                             # (1, C)
    shift = beta_ref[...] - mean * scale
    scale_full = jnp.concatenate([scale] * n_spatial, axis=1)
    shift_full = jnp.concatenate([shift] * n_spatial, axis=1)
    o_ref[...] = lin * scale_full + shift_full


def _conv_bn_lrelu_kernel(p_ref, w_ref, g_ref, b_ref, o_ref):
    # 4-phase sub-pixel ConvTranspose2d as one batched MXU matmul, fused with
    # training-mode BatchNorm2d + LeakyReLU(0.2) epilogue.
    y = jnp.einsum('pmk,pkn->pmn', p_ref[...], w_ref[...],
                   preferred_element_type=jnp.float32)                   # (4, M, Cout)
    n = y.shape[0] * y.shape[1]
    tot = jnp.sum(jnp.sum(y, axis=0, keepdims=True), axis=1, keepdims=True)   # (1,1,C)
    mean = tot / n
    d = y - mean
    var = jnp.sum(jnp.sum(d * d, axis=0, keepdims=True), axis=1, keepdims=True) / n
    scale = g_ref[...] * lax.rsqrt(var + EPS)                            # (1,1,C)
    shift = b_ref[...] - mean * scale
    yn = y * scale + shift
    o_ref[...] = jnp.where(yn > 0, yn, LRELU_SLOPE * yn)


def _conv_tanh_kernel(p_ref, w_ref, o_ref):
    # Final ConvTranspose2d + Tanh, computed in transposed lane-dense form:
    # output (phase, Cout, M) keeps the wide spatial axis on the 128 lanes.
    y = jnp.einsum('pck,pkm->pcm', w_ref[...], p_ref[...],
                   preferred_element_type=jnp.float32)
    o_ref[...] = jnp.tanh(y)


def _call(kernel, out_shape, *args):
    # Shapes are tiny; each layer is one whole-array VMEM block (no grid).
    return pl.pallas_call(
        kernel,
        out_shape=jax.ShapeDtypeStruct(out_shape, jnp.float32),
        in_specs=[pl.BlockSpec(memory_space=pltpu.MemorySpace.VMEM)] * len(args),
        out_specs=pl.BlockSpec(memory_space=pltpu.MemorySpace.VMEM),
    )(*args)


# ------------------------- glue: patches / re-interleave ---------------------

def _phase_patches_nhwc(x, cin):
    # x: (B, H, W, Cin) NHWC -> (4, B*H*W, 4*Cin) per-phase patch matrices.
    B, H, W, _ = x.shape
    xp = jnp.pad(x, ((0, 0), (1, 1), (1, 1), (0, 0)))
    phases = []
    for py, px in _PHASES:
        taps = []
        for (dy, _ky) in _PHASE_TAPS[py]:
            for (dx, _kx) in _PHASE_TAPS[px]:
                taps.append(xp[:, dy:dy + H, dx:dx + W, :])
        phases.append(jnp.concatenate(taps, axis=-1).reshape(B * H * W, 4 * cin))
    return jnp.stack(phases, axis=0)


def _phase_patches_cfirst(x, cin):
    # x: (B, H, W, Cin) -> transposed patches (4, 4*Cin, B*H*W) (spatial on lanes).
    B, H, W, _ = x.shape
    xc = jnp.transpose(x, (3, 0, 1, 2))                       # (Cin, B, H, W)
    xp = jnp.pad(xc, ((0, 0), (0, 0), (1, 1), (1, 1)))
    phases = []
    for py, px in _PHASES:
        taps = []
        for (dy, _ky) in _PHASE_TAPS[py]:
            for (dx, _kx) in _PHASE_TAPS[px]:
                taps.append(xp[:, :, dy:dy + H, dx:dx + W].reshape(cin, B * H * W))
        phases.append(jnp.concatenate(taps, axis=0))
    return jnp.stack(phases, axis=0)


def _unphase_nhwc(y, B, H, W, C):
    # y: (4, B*H*W, C) -> (B, 2H, 2W, C), interleaving the 4 parity phases.
    y = y.reshape(2, 2, B, H, W, C)
    y = jnp.transpose(y, (2, 3, 0, 4, 1, 5))   # (B, H, py, W, px, C)
    return y.reshape(B, 2 * H, 2 * W, C)


def _unphase_nchw(y, B, H, W, C):
    # y: (4, C, B*H*W) -> (B, C, 2H, 2W) (final NCHW image).
    y = y.reshape(2, 2, C, B, H, W)
    y = jnp.transpose(y, (3, 2, 4, 0, 5, 1))   # (B, C, H, py, W, px)
    return y.reshape(B, C, 2 * H, 2 * W)


# ------------------------- parameter preprocessing ---------------------------

def _phase_weights(w_t):
    # w_t: PyTorch ConvTranspose2d weight (Cin, Cout, 4, 4) -> (4, 4*Cin, Cout).
    mats = []
    for py, px in _PHASES:
        blocks = []
        for (_dy, ky) in _PHASE_TAPS[py]:
            for (_dx, kx) in _PHASE_TAPS[px]:
                blocks.append(w_t[:, :, ky, kx])               # (Cin, Cout)
        mats.append(jnp.concatenate(blocks, axis=0))           # (4*Cin, Cout)
    return jnp.stack(mats, axis=0)


def _phase_weights_t(w_t):
    # (4, Cout, 4*Cin) for the transposed (lane-dense) final layer.
    return jnp.transpose(_phase_weights(w_t), (0, 2, 1))


def prepare_params(params, init_size):
    s, C0 = init_size, 256
    L = params["l1_w"].shape[0]
    # Permute Linear output columns from (c, y, x) to (y, x, c) so the NHWC
    # view after the fused kernel is a free row-major reshape.
    w1 = params["l1_w"].reshape(L, C0, s, s).transpose(0, 2, 3, 1).reshape(L, s * s * C0)
    b1 = params["l1_b"].reshape(C0, s, s).transpose(1, 2, 0).reshape(1, s * s * C0)
    return {
        "l1_w": w1, "l1_b": b1,
        "bn0_g": params["bn0_g"].reshape(1, C0),
        "bn0_b": params["bn0_b"].reshape(1, C0),
        "ct1_w": _phase_weights(params["ct1_w"]),
        "bn1_g": params["bn1_g"].reshape(1, 1, -1),
        "bn1_b": params["bn1_b"].reshape(1, 1, -1),
        "ct2_w": _phase_weights(params["ct2_w"]),
        "bn2_g": params["bn2_g"].reshape(1, 1, -1),
        "bn2_b": params["bn2_b"].reshape(1, 1, -1),
        "ct3_w": _phase_weights_t(params["ct3_w"]),
    }


# ------------------------------ Generator -----------------------------------

def generator_forward(z, pp, init_size):
    B = z.shape[0]
    s, C0 = init_size, 256

    # Linear + BatchNorm2d(256) (fused, one pallas_call).
    out = _call(functools.partial(_linear_bn_kernel, n_spatial=s * s, C=C0),
                (B, s * s * C0),
                z, pp["l1_w"], pp["l1_b"], pp["bn0_g"], pp["bn0_b"])
    x = out.reshape(B, s, s, C0)                               # free NHWC view

    # ConvTranspose2d(256->128) + BN(128) + LeakyReLU(0.2)
    C1 = pp["ct1_w"].shape[-1]
    p = _phase_patches_nhwc(x, C0)
    y = _call(_conv_bn_lrelu_kernel, (4, B * s * s, C1),
              p, pp["ct1_w"], pp["bn1_g"], pp["bn1_b"])
    x = _unphase_nhwc(y, B, s, s, C1)                          # (B, 2s, 2s, C1)

    # ConvTranspose2d(128->64) + BN(64) + LeakyReLU(0.2)
    H = 2 * s
    C2 = pp["ct2_w"].shape[-1]
    p = _phase_patches_nhwc(x, C1)
    y = _call(_conv_bn_lrelu_kernel, (4, B * H * H, C2),
              p, pp["ct2_w"], pp["bn2_g"], pp["bn2_b"])
    x = _unphase_nhwc(y, B, H, H, C2)                          # (B, 4s, 4s, C2)

    # ConvTranspose2d(64->channels) + Tanh, lane-dense transposed form.
    H = 4 * s
    C3 = pp["ct3_w"].shape[1]
    p = _phase_patches_cfirst(x, C2)
    y = _call(_conv_tanh_kernel, (4, C3, B * H * H), p, pp["ct3_w"])
    return _unphase_nchw(y, B, H, H, C3)                       # (B, C, 8s, 8s) NCHW


# -------------------------- pure-JAX reference -------------------------------

def reference_forward(z, params, init_size):
    def bn(x, g, b, slope=None):
        mean = x.mean(axis=(0, 2, 3), keepdims=True)
        var = ((x - mean) ** 2).mean(axis=(0, 2, 3), keepdims=True)
        y = (x - mean) / jnp.sqrt(var + EPS) * g.reshape(1, -1, 1, 1) + b.reshape(1, -1, 1, 1)
        return y if slope is None else jnp.where(y > 0, y, slope * y)

    def ct(x, w):
        w_conv = jnp.flip(w, axis=(2, 3)).transpose(1, 0, 2, 3)  # OIHW
        return lax.conv_general_dilated(
            x, w_conv, window_strides=(1, 1), padding=[(2, 2), (2, 2)],
            lhs_dilation=(2, 2), dimension_numbers=("NCHW", "OIHW", "NCHW"))

    out = (z @ params["l1_w"] + params["l1_b"]).reshape(z.shape[0], 256, init_size, init_size)
    out = bn(out, params["bn0_g"], params["bn0_b"])
    out = ct(out, params["ct1_w"])
    out = bn(out, params["bn1_g"], params["bn1_b"], 0.2)
    out = ct(out, params["ct2_w"])
    out = bn(out, params["bn2_g"], params["bn2_b"], 0.2)
    return jnp.tanh(ct(out, params["ct3_w"]))


# --------------------------------- main --------------------------------------

if __name__ == "__main__":
    # opt.img_size=16 -> init_size=2, opt.latent_dim=32, opt.channels=3, batch=2
    batch, latent_dim, img_size, channels = 2, 32, 16, 3
    init_size = img_size // 8

    key = jax.random.PRNGKey(0)
    ks = jax.random.split(key, 12)
    f32 = jnp.float32
    params = {
        "l1_w": 0.05 * jax.random.normal(ks[0], (latent_dim, 256 * init_size ** 2), f32),
        "l1_b": 0.05 * jax.random.normal(ks[1], (256 * init_size ** 2,), f32),
        "bn0_g": 1.0 + 0.1 * jax.random.normal(ks[2], (256,), f32),
        "bn0_b": 0.1 * jax.random.normal(ks[3], (256,), f32),
        "ct1_w": 0.05 * jax.random.normal(ks[4], (256, 128, 4, 4), f32),
        "bn1_g": 1.0 + 0.1 * jax.random.normal(ks[5], (128,), f32),
        "bn1_b": 0.1 * jax.random.normal(ks[6], (128,), f32),
        "ct2_w": 0.05 * jax.random.normal(ks[7], (128, 64, 4, 4), f32),
        "bn2_g": 1.0 + 0.1 * jax.random.normal(ks[8], (64,), f32),
        "bn2_b": 0.1 * jax.random.normal(ks[9], (64,), f32),
        "ct3_w": 0.05 * jax.random.normal(ks[10], (64, channels, 4, 4), f32),
    }
    z = jax.random.normal(ks[11], (batch, latent_dim), f32)

    # One-time parameter re-layout (hoisted out of the forward pass).
    pp = jax.tree_util.tree_map(jax.block_until_ready, prepare_params(params, init_size))

    img = jax.block_until_ready(
        jax.jit(generator_forward, static_argnums=2)(z, pp, init_size))
    assert img.shape == (batch, channels, img_size, img_size), img.shape

    ref = jax.block_until_ready(reference_forward(z, params, init_size))
    np.testing.assert_allclose(np.asarray(img), np.asarray(ref), atol=2e-3, rtol=2e-3)

    print("KERNEL_OK")
</pallas_src>

<mosaic_0001>
module attributes {stable_mosaic.version = 11 : i64} {
  func.func @_linear_bn_kernel(%arg0: memref<2x32xf32, #tpu.memory_space<vmem>>, %arg1: memref<32x1024xf32, #tpu.memory_space<vmem>>, %arg2: memref<1x1024xf32, #tpu.memory_space<vmem>>, %arg3: memref<1x256xf32, #tpu.memory_space<vmem>>, %arg4: memref<1x256xf32, #tpu.memory_space<vmem>>, %arg5: memref<2x1024xf32, #tpu.memory_space<vmem>>) attributes {dimension_semantics = [], scalar_prefetch = 0 : i64, scratch_operands = 0 : i64, tpu.core_type = #tpu.core_type<tc>} {
    %c0 = arith.constant 0 : index
    %c0_0 = arith.constant 0 : index
    %0 = vector.load %arg0[%c0, %c0_0] : memref<2x32xf32, #tpu.memory_space<vmem>>, vector<2x32xf32>
    %c0_1 = arith.constant 0 : index
    %c0_2 = arith.constant 0 : index
    %1 = vector.load %arg1[%c0_1, %c0_2] : memref<32x1024xf32, #tpu.memory_space<vmem>>, vector<32x1024xf32>
    %cst = arith.constant dense<0.000000e+00> : vector<2x1024xf32>
    %2 = tpu.matmul %0, %1, %cst {dimension_numbers = #tpu.dot_dimension_numbers<[1], [0], [0], [1], [0, 0, 1, 1], [], []>} : vector<2x32xf32>, vector<32x1024xf32>, vector<2x1024xf32> -> vector<2x1024xf32>
    %c0_3 = arith.constant 0 : index
    %c0_4 = arith.constant 0 : index
    %3 = vector.load %arg2[%c0_3, %c0_4] : memref<1x1024xf32, #tpu.memory_space<vmem>>, vector<1x1024xf32>
    %4 = vector.broadcast %3 : vector<1x1024xf32> to vector<2x1024xf32>
    %5 = arith.addf %2, %4 : vector<2x1024xf32>
    %cst_5 = arith.constant dense<0.000000e+00> : vector<1024xf32>
    %6 = vector.multi_reduction <add>, %5, %cst_5 [0] : vector<2x1024xf32> to vector<1024xf32>
    %7 = vector.shape_cast %6 : vector<1024xf32> to vector<1x1024xf32>
    %8 = vector.extract_strided_slice %7 {offsets = [0, 0], sizes = [1, 256], strides = [1, 1]} : vector<1x1024xf32> to vector<1x256xf32>
    %cst_6 = arith.constant 0.000000e+00 : f32
    %9 = vector.broadcast %cst_6 : f32 to vector<1x256xf32>
    %10 = arith.addf %9, %8 : vector<1x256xf32>
    %11 = vector.extract_strided_slice %7 {offsets = [0, 256], sizes = [1, 256], strides = [1, 1]} : vector<1x1024xf32> to vector<1x256xf32>
    %12 = arith.addf %10, %11 : vector<1x256xf32>
    %13 = vector.extract_strided_slice %7 {offsets = [0, 512], sizes = [1, 256], strides = [1, 1]} : vector<1x1024xf32> to vector<1x256xf32>
    %14 = arith.addf %12, %13 : vector<1x256xf32>
    %15 = vector.extract_strided_slice %7 {offsets = [0, 768], sizes = [1, 256], strides = [1, 1]} : vector<1x1024xf32> to vector<1x256xf32>
    %16 = arith.addf %14, %15 : vector<1x256xf32>
    %cst_7 = arith.constant 8.000000e+00 : f32
    %17 = vector.broadcast %cst_7 : f32 to vector<1x256xf32>
    %18 = arith.divf %16, %17 : vector<1x256xf32>
    %19 = tpu.concatenate %18, %18, %18, %18 in 1 : vector<1x256xf32>, vector<1x256xf32>, vector<1x256xf32>, vector<1x256xf32> -> vector<1x1024xf32>
    %20 = vector.broadcast %19 : vector<1x1024xf32> to vector<2x1024xf32>
    %21 = arith.subf %5, %20 : vector<2x1024xf32>
    %22 = arith.mulf %21, %21 : vector<2x1024xf32>
    %cst_8 = arith.constant dense<0.000000e+00> : vector<1024xf32>
    %23 = vector.multi_reduction <add>, %22, %cst_8 [0] : vector<2x1024xf32> to vector<1024xf32>
    %24 = vector.shape_cast %23 : vector<1024xf32> to vector<1x1024xf32>
    %25 = vector.extract_strided_slice %24 {offsets = [0, 0], sizes = [1, 256], strides = [1, 1]} : vector<1x1024xf32> to vector<1x256xf32>
    %cst_9 = arith.constant 0.000000e+00 : f32
    %26 = vector.broadcast %cst_9 : f32 to vector<1x256xf32>
    %27 = arith.addf %26, %25 : vector<1x256xf32>
    %28 = vector.extract_strided_slice %24 {offsets = [0, 256], sizes = [1, 256], strides = [1, 1]} : vector<1x1024xf32> to vector<1x256xf32>
    %29 = arith.addf %27, %28 : vector<1x256xf32>
    %30 = vector.extract_strided_slice %24 {offsets = [0, 512], sizes = [1, 256], strides = [1, 1]} : vector<1x1024xf32> to vector<1x256xf32>
    %31 = arith.addf %29, %30 : vector<1x256xf32>
    %32 = vector.extract_strided_slice %24 {offsets = [0, 768], sizes = [1, 256], strides = [1, 1]} : vector<1x1024xf32> to vector<1x256xf32>
    %33 = arith.addf %31, %32 : vector<1x256xf32>
    %cst_10 = arith.constant 8.000000e+00 : f32
    %34 = vector.broadcast %cst_10 : f32 to vector<1x256xf32>
    %35 = arith.divf %33, %34 : vector<1x256xf32>
    %c0_11 = arith.constant 0 : index
    %c0_12 = arith.constant 0 : index
    %36 = vector.load %arg3[%c0_11, %c0_12] : memref<1x256xf32, #tpu.memory_space<vmem>>, vector<1x256xf32>
    %cst_13 = arith.constant 9.99999974E-6 : f32
    %37 = vector.broadcast %cst_13 : f32 to vector<1x256xf32>
    %38 = arith.addf %35, %37 : vector<1x256xf32>
    %39 = math.rsqrt %38 : vector<1x256xf32>
    %40 = arith.mulf %36, %39 : vector<1x256xf32>
    %c0_14 = arith.constant 0 : index
    %c0_15 = arith.constant 0 : index
    %41 = vector.load %arg4[%c0_14, %c0_15] : memref<1x256xf32, #tpu.memory_space<vmem>>, vector<1x256xf32>
    %42 = arith.mulf %18, %40 : vector<1x256xf32>
    %43 = arith.subf %41, %42 : vector<1x256xf32>
    %44 = tpu.concatenate %40, %40, %40, %40 in 1 : vector<1x256xf32>, vector<1x256xf32>, vector<1x256xf32>, vector<1x256xf32> -> vector<1x1024xf32>
    %45 = tpu.concatenate %43, %43, %43, %43 in 1 : vector<1x256xf32>, vector<1x256xf32>, vector<1x256xf32>, vector<1x256xf32> -> vector<1x1024xf32>
    %46 = vector.broadcast %44 : vector<1x1024xf32> to vector<2x1024xf32>
    %47 = arith.mulf %5, %46 : vector<2x1024xf32>
    %48 = vector.broadcast %45 : vector<1x1024xf32> to vector<2x1024xf32>
    %49 = arith.addf %47, %48 : vector<2x1024xf32>
    %c0_16 = arith.constant 0 : index
    %c0_17 = arith.constant 0 : index
    %50 = vector.load %arg5[%c0_16, %c0_17] : memref<2x1024xf32, #tpu.memory_space<vmem>>, vector<2x1024xf32>
    tpu.vector_store %arg5[%c0_16, %c0_17], %49 {strides = array<i32>} : memref<2x1024xf32, #tpu.memory_space<vmem>>, vector<2x1024xf32>,
    return
  }
}

module attributes {stable_mosaic.version = 11 : i64} {
  func.func @_conv_bn_lrelu_kernel(%arg0: memref<4x8x1024xf32, #tpu.memory_space<vmem>>, %arg1: memref<4x1024x128xf32, #tpu.memory_space<vmem>>, %arg2: memref<1x1x128xf32, #tpu.memory_space<vmem>>, %arg3: memref<1x1x128xf32, #tpu.memory_space<vmem>>, %arg4: memref<4x8x128xf32, #tpu.memory_space<vmem>>) attributes {dimension_semantics = [], scalar_prefetch = 0 : i64, scratch_operands = 0 : i64, tpu.core_type = #tpu.core_type<tc>} {
    %c0 = arith.constant 0 : index
    %c0_0 = arith.constant 0 : index
    %c0_1 = arith.constant 0 : index
    %0 = vector.load %arg0[%c0, %c0_0, %c0_1] : memref<4x8x1024xf32, #tpu.memory_space<vmem>>, vector<4x8x1024xf32>
    %c0_2 = arith.constant 0 : index
    %c0_3 = arith.constant 0 : index
    %c0_4 = arith.constant 0 : index
    %1 = vector.load %arg1[%c0_2, %c0_3, %c0_4] : memref<4x1024x128xf32, #tpu.memory_space<vmem>>, vector<4x1024x128xf32>
    "tpu.trace_start"() <{level = 10 : i32, message = "pmk,pkn->pmn"}> : () -> ()
    %cst = arith.constant dense<0.000000e+00> : vector<4x8x128xf32>
    %2 = tpu.matmul %0, %1, %cst {dimension_numbers = #tpu.dot_dimension_numbers<[2], [1], [1], [2], [0, 0, 0, 1, 1, 2], [0], [0]>} : vector<4x8x1024xf32>, vector<4x1024x128xf32>, vector<4x8x128xf32> -> vector<4x8x128xf32>
    "tpu.trace_stop"() : () -> ()
    %cst_5 = arith.constant dense<0.000000e+00> : vector<8x128xf32>
    %3 = vector.multi_reduction <add>, %2, %cst_5 [0] : vector<4x8x128xf32> to vector<8x128xf32>
    %4 = vector.shape_cast %3 : vector<8x128xf32> to vector<1x8x128xf32>
    %cst_6 = arith.constant dense<0.000000e+00> : vector<1x128xf32>
    %5 = vector.multi_reduction <add>, %4, %cst_6 [1] : vector<1x8x128xf32> to vector<1x128xf32>
    %6 = vector.shape_cast %5 : vector<1x128xf32> to vector<1x1x128xf32>
    %cst_7 = arith.constant 3.200000e+01 : f32
    %7 = vector.broadcast %cst_7 : f32 to vector<1x1x128xf32>
    %8 = arith.divf %6, %7 : vector<1x1x128xf32>
    %9 = vector.broadcast %8 : vector<1x1x128xf32> to vector<4x8x128xf32>
    %10 = arith.subf %2, %9 : vector<4x8x128xf32>
    %11 = arith.mulf %10, %10 : vector<4x8x128xf32>
    %cst_8 = arith.constant dense<0.000000e+00> : vector<8x128xf32>
    %12 = vector.multi_reduction <add>, %11, %cst_8 [0] : vector<4x8x128xf32> to vector<8x128xf32>
    %13 = vector.shape_cast %12 : vector<8x128xf32> to vector<1x8x128xf32>
    %cst_9 = arith.constant dense<0.000000e+00> : vector<1x128xf32>
    %14 = vector.multi_reduction <add>, %13, %cst_9 [1] : vector<1x8x128xf32> to vector<1x128xf32>
    %15 = vector.shape_cast %14 : vector<1x128xf32> to vector<1x1x128xf32>
    %cst_10 = arith.constant 3.200000e+01 : f32
    %16 = vector.broadcast %cst_10 : f32 to vector<1x1x128xf32>
    %17 = arith.divf %15, %16 : vector<1x1x128xf32>
    %c0_11 = arith.constant 0 : index
    %c0_12 = arith.constant 0 : index
    %c0_13 = arith.constant 0 : index
    %18 = vector.load %arg2[%c0_11, %c0_12, %c0_13] : memref<1x1x128xf32, #tpu.memory_space<vmem>>, vector<1x1x128xf32>
    %cst_14 = arith.constant 9.99999974E-6 : f32
    %19 = vector.broadcast %cst_14 : f32 to vector<1x1x128xf32>
    %20 = arith.addf %17, %19 : vector<1x1x128xf32>
    %21 = math.rsqrt %20 : vector<1x1x128xf32>
    %22 = arith.mulf %18, %21 : vector<1x1x128xf32>
    %c0_15 = arith.constant 0 : index
    %c0_16 = arith.constant 0 : index
    %c0_17 = arith.constant 0 : index
    %23 = vector.load %arg3[%c0_15, %c0_16, %c0_17] : memref<1x1x128xf32, #tpu.memory_space<vmem>>, vector<1x1x128xf32>
    %24 = arith.mulf %8, %22 : vector<1x1x128xf32>
    %25 = arith.subf %23, %24 : vector<1x1x128xf32>
    %26 = vector.broadcast %22 : vector<1x1x128xf32> to vector<4x8x128xf32>
    %27 = arith.mulf %2, %26 : vector<4x8x128xf32>
    %28 = vector.broadcast %25 : vector<1x1x128xf32> to vector<4x8x128xf32>
    %29 = arith.addf %27, %28 : vector<4x8x128xf32>
    %cst_18 = arith.constant 0.000000e+00 : f32
    %30 = vector.broadcast %cst_18 : f32 to vector<4x8x128xf32>
    %31 = arith.cmpf ogt, %29, %30 : vector<4x8x128xf32>
    %cst_19 = arith.constant 2.000000e-01 : f32
    %32 = vector.broadcast %cst_19 : f32 to vector<4x8x128xf32>
    %33 = arith.mulf %32, %29 : vector<4x8x128xf32>
    %34 = arith.select %31, %29, %33 : vector<4x8x128xi1>, vector<4x8x128xf32>
    %c0_20 = arith.constant 0 : index
    %c0_21 = arith.constant 0 : index
    %c0_22 = arith.constant 0 : index
    %35 = vector.load %arg4[%c0_20, %c0_21, %c0_22] : memref<4x8x128xf32, #tpu.memory_space<vmem>>, vector<4x8x128xf32>
    tpu.vector_store %arg4[%c0_20, %c0_21, %c0_22], %34 {strides = array<i32>} : memref<4x8x128xf32, #tpu.memory_space<vmem>>, vector<4x8x128xf32>,
    return
  }
}

module attributes {stable_mosaic.version = 11 : i64} {
  func.func @_conv_bn_lrelu_kernel(%arg0: memref<4x32x512xf32, #tpu.memory_space<vmem>>, %arg1: memref<4x512x64xf32, #tpu.memory_space<vmem>>, %arg2: memref<1x1x64xf32, #tpu.memory_space<vmem>>, %arg3: memref<1x1x64xf32, #tpu.memory_space<vmem>>, %arg4: memref<4x32x64xf32, #tpu.memory_space<vmem>>) attributes {dimension_semantics = [], scalar_prefetch = 0 : i64, scratch_operands = 0 : i64, tpu.core_type = #tpu.core_type<tc>} {
    %c0 = arith.constant 0 : index
    %c0_0 = arith.constant 0 : index
    %c0_1 = arith.constant 0 : index
    %0 = vector.load %arg0[%c0, %c0_0, %c0_1] : memref<4x32x512xf32, #tpu.memory_space<vmem>>, vector<4x32x512xf32>
    %c0_2 = arith.constant 0 : index
    %c0_3 = arith.constant 0 : index
    %c0_4 = arith.constant 0 : index
    %1 = vector.load %arg1[%c0_2, %c0_3, %c0_4] : memref<4x512x64xf32, #tpu.memory_space<vmem>>, vector<4x512x64xf32>
    "tpu.trace_start"() <{level = 10 : i32, message = "pmk,pkn->pmn"}> : () -> ()
    %cst = arith.constant dense<0.000000e+00> : vector<4x32x64xf32>
    %2 = tpu.matmul %0, %1, %cst {dimension_numbers = #tpu.dot_dimension_numbers<[2], [1], [1], [2], [0, 0, 0, 1, 1, 2], [0], [0]>} : vector<4x32x512xf32>, vector<4x512x64xf32>, vector<4x32x64xf32> -> vector<4x32x64xf32>
    "tpu.trace_stop"() : () -> ()
    %cst_5 = arith.constant dense<0.000000e+00> : vector<32x64xf32>
    %3 = vector.multi_reduction <add>, %2, %cst_5 [0] : vector<4x32x64xf32> to vector<32x64xf32>
    %4 = vector.shape_cast %3 : vector<32x64xf32> to vector<1x32x64xf32>
    %cst_6 = arith.constant dense<0.000000e+00> : vector<1x64xf32>
    %5 = vector.multi_reduction <add>, %4, %cst_6 [1] : vector<1x32x64xf32> to vector<1x64xf32>
    %6 = vector.shape_cast %5 : vector<1x64xf32> to vector<1x1x64xf32>
    %cst_7 = arith.constant 1.280000e+02 : f32
    %7 = vector.broadcast %cst_7 : f32 to vector<1x1x64xf32>
    %8 = arith.divf %6, %7 : vector<1x1x64xf32>
    %9 = vector.broadcast %8 : vector<1x1x64xf32> to vector<4x32x64xf32>
    %10 = arith.subf %2, %9 : vector<4x32x64xf32>
    %11 = arith.mulf %10, %10 : vector<4x32x64xf32>
    %cst_8 = arith.constant dense<0.000000e+00> : vector<32x64xf32>
    %12 = vector.multi_reduction <add>, %11, %cst_8 [0] : vector<4x32x64xf32> to vector<32x64xf32>
    %13 = vector.shape_cast %12 : vector<32x64xf32> to vector<1x32x64xf32>
    %cst_9 = arith.constant dense<0.000000e+00> : vector<1x64xf32>
    %14 = vector.multi_reduction <add>, %13, %cst_9 [1] : vector<1x32x64xf32> to vector<1x64xf32>
    %15 = vector.shape_cast %14 : vector<1x64xf32> to vector<1x1x64xf32>
    %cst_10 = arith.constant 1.280000e+02 : f32
    %16 = vector.broadcast %cst_10 : f32 to vector<1x1x64xf32>
    %17 = arith.divf %15, %16 : vector<1x1x64xf32>
    %c0_11 = arith.constant 0 : index
    %c0_12 = arith.constant 0 : index
    %c0_13 = arith.constant 0 : index
    %18 = vector.load %arg2[%c0_11, %c0_12, %c0_13] : memref<1x1x64xf32, #tpu.memory_space<vmem>>, vector<1x1x64xf32>
    %cst_14 = arith.constant 9.99999974E-6 : f32
    %19 = vector.broadcast %cst_14 : f32 to vector<1x1x64xf32>
    %20 = arith.addf %17, %19 : vector<1x1x64xf32>
    %21 = math.rsqrt %20 : vector<1x1x64xf32>
    %22 = arith.mulf %18, %21 : vector<1x1x64xf32>
    %c0_15 = arith.constant 0 : index
    %c0_16 = arith.constant 0 : index
    %c0_17 = arith.constant 0 : index
    %23 = vector.load %arg3[%c0_15, %c0_16, %c0_17] : memref<1x1x64xf32, #tpu.memory_space<vmem>>, vector<1x1x64xf32>
    %24 = arith.mulf %8, %22 : vector<1x1x64xf32>
    %25 = arith.subf %23, %24 : vector<1x1x64xf32>
    %26 = vector.broadcast %22 : vector<1x1x64xf32> to vector<4x32x64xf32>
    %27 = arith.mulf %2, %26 : vector<4x32x64xf32>
    %28 = vector.broadcast %25 : vector<1x1x64xf32> to vector<4x32x64xf32>
    %29 = arith.addf %27, %28 : vector<4x32x64xf32>
    %cst_18 = arith.constant 0.000000e+00 : f32
    %30 = vector.broadcast %cst_18 : f32 to vector<4x32x64xf32>
    %31 = arith.cmpf ogt, %29, %30 : vector<4x32x64xf32>
    %cst_19 = arith.constant 2.000000e-01 : f32
    %32 = vector.broadcast %cst_19 : f32 to vector<4x32x64xf32>
    %33 = arith.mulf %32, %29 : vector<4x32x64xf32>
    %34 = arith.select %31, %29, %33 : vector<4x32x64xi1>, vector<4x32x64xf32>
    %c0_20 = arith.constant 0 : index
    %c0_21 = arith.constant 0 : index
    %c0_22 = arith.constant 0 : index
    %35 = vector.load %arg4[%c0_20, %c0_21, %c0_22] : memref<4x32x64xf32, #tpu.memory_space<vmem>>, vector<4x32x64xf32>
    tpu.vector_store %arg4[%c0_20, %c0_21, %c0_22], %34 {strides = array<i32>} : memref<4x32x64xf32, #tpu.memory_space<vmem>>, vector<4x32x64xf32>,
    return
  }
}

module attributes {stable_mosaic.version = 11 : i64} {
  func.func @_conv_tanh_kernel(%arg0: memref<4x256x128xf32, #tpu.memory_space<vmem>>, %arg1: memref<4x3x256xf32, #tpu.memory_space<vmem>>, %arg2: memref<4x3x128xf32, #tpu.memory_space<vmem>>) attributes {dimension_semantics = [], scalar_prefetch = 0 : i64, scratch_operands = 0 : i64, tpu.core_type = #tpu.core_type<tc>} {
    %c0 = arith.constant 0 : index
    %c0_0 = arith.constant 0 : index
    %c0_1 = arith.constant 0 : index
    %0 = vector.load %arg1[%c0, %c0_0, %c0_1] : memref<4x3x256xf32, #tpu.memory_space<vmem>>, vector<4x3x256xf32>
    %c0_2 = arith.constant 0 : index
    %c0_3 = arith.constant 0 : index
    %c0_4 = arith.constant 0 : index
    %1 = vector.load %arg0[%c0_2, %c0_3, %c0_4] : memref<4x256x128xf32, #tpu.memory_space<vmem>>, vector<4x256x128xf32>
    "tpu.trace_start"() <{level = 10 : i32, message = "pck,pkm->pcm"}> : () -> ()
    %cst = arith.constant dense<0.000000e+00> : vector<4x3x128xf32>
    %2 = tpu.matmul %0, %1, %cst {dimension_numbers = #tpu.dot_dimension_numbers<[2], [1], [1], [2], [0, 0, 0, 1, 1, 2], [0], [0]>} : vector<4x3x256xf32>, vector<4x256x128xf32>, vector<4x3x128xf32> -> vector<4x3x128xf32>
    "tpu.trace_stop"() : () -> ()
    %3 = math.tanh %2 : vector<4x3x128xf32>
    %c0_5 = arith.constant 0 : index
    %c0_6 = arith.constant 0 : index
    %c0_7 = arith.constant 0 : index
    %4 = vector.load %arg2[%c0_5, %c0_6, %c0_7] : memref<4x3x128xf32, #tpu.memory_space<vmem>>, vector<4x3x128xf32>
    tpu.vector_store %arg2[%c0_5, %c0_6, %c0_7], %3 {strides = array<i32>} : memref<4x3x128xf32, #tpu.memory_space<vmem>>, vector<4x3x128xf32>,
    return
  }
}

</mosaic_0001>

<llo_original>
// kernel: generator_forward.4
$region0: #{generator_forward.4}
  #allocation0 [shape = 'u32[]', space=smem, size = 0x4, offset = 0x4, fixed_abs, tag = 'smem constant byte address 0x4 - core index']
  #allocation1 [shape = 'u32[144,128]{1,0:T(1,128)}', space=vmem, size = 0x12000, scoped, tag = 'internal scratch']
  %s0 = inlined_call_operand.hbm [shape: f32[2,32], index: 0, kind: input, shape index: {}]
  %s1 = inlined_call_operand.hbm [shape: f32[32,1024], index: 1, kind: input, shape index: {}]
  %s2 = inlined_call_operand.hbm [shape: f32[1,1024], index: 2, kind: input, shape index: {}]
  %s3 = inlined_call_operand.hbm [shape: f32[1,256], index: 3, kind: input, shape index: {}]
  %s4 = inlined_call_operand.hbm [shape: f32[1,256], index: 4, kind: input, shape index: {}]
  %s5 = inlined_call_operand.vmem [shape: f32[2,1024], index: 5, kind: output, shape index: {}]
  %s6 = sld [smem:[#allocation0]]
  $region50: #{generator_forward.4} parent=0
    _
  %s8 = ssub.s32 1, %s6
  %s9 = scalar_select 0, %s8, %s6
  $region1: #{generator_forward.4} parent=0
    #allocation2 [shape = 'u8[1024]{0}', space=vmem, size = 0x400, scoped, tag = 'input window, operand 0, single buffered']
    #allocation3 [shape = 's32[1]{0}', space=sflag, size = 0x4, scoped, tag = 'scoped memory for generator_forward.4']
    #allocation4 [shape = 'u8[131072]{0}', space=vmem, size = 0x20000, scoped, tag = 'input window, operand 1, single buffered']
    #allocation5 [shape = 's32[1]{0}', space=sflag, size = 0x4, scoped, tag = 'scoped memory for generator_forward.4']
    #allocation6 [shape = 'u8[4096]{0}', space=vmem, size = 0x1000, scoped, tag = 'input window, operand 2, single buffered']
    #allocation7 [shape = 'u8[1024]{0}', space=vmem, size = 0x400, scoped, tag = 'input window, operand 3, single buffered']
    #allocation8 [shape = 's32[1]{0}', space=sflag, size = 0x4, scoped, tag = 'scoped memory for generator_forward.4']
    #allocation9 [shape = 'u8[1024]{0}', space=vmem, size = 0x400, scoped, tag = 'input window, operand 4, single buffered']
    %10 = vsyncpa [#allocation3], 0
    %11 = vsyncpa [#allocation5], 0
    %12 = vsyncpa [#allocation8], 0
    // Predicated region
    $region2: #{generator_forward.4} parent=1 // pred_check
      _
    $region3: #{generator_forward.4} parent=1 // pred_check_branch
      %14 = sbr.rel (0) target = $region5
    $region4: #{generator_forward.4} parent=1 // pred_region
      %s16 = ssub.s32 32, 32
      %17 = vsyncadd [#allocation3], %s16
      %s19 = sshll.u32 [#allocation2], 4
      %s20 = int_to_ptr.vmem [resolvable:$true] %s19
      %22 = dma.hbm_to_vmem [thread:$0]  %s0, 32, %s20, [#allocation3]
    $region5: #{generator_forward.4} parent=1 // pred_fallthru
      _
    // Predicated region
    $region6: #{generator_forward.4} parent=1 // pred_check
      _
    $region7: #{generator_forward.4} parent=1 // pred_check_branch
      %24 = sbr.rel (0) target = $region9
    $region8: #{generator_forward.4} parent=1 // pred_region
      %s26 = ssub.s32 4096, 4096
      %27 = vsyncadd [#allocation5], %s26
      %s28 = sshll.u32 [#allocation4], 4
      %s29 = int_to_ptr.vmem [resolvable:$true] %s28
      %34 = dma.hbm_to_vmem [thread:$0]  %s1, 4096, %s29, [#allocation5], 1024, 1024, 64
    $region9: #{generator_forward.4} parent=1 // pred_fallthru
      _
    // Predicated region
    $region10: #{generator_forward.4} parent=1 // pred_check
      _
    $region11: #{generator_forward.4} parent=1 // pred_check_branch
      %36 = sbr.rel (0) target = $region13
    $region12: #{generator_forward.4} parent=1 // pred_region
      %s38 = ssub.s32 128, 128
      %39 = vsyncadd [#allocation5], %s38
      %s41 = sshll.u32 [#allocation6], 4
      %s42 = int_to_ptr.vmem [resolvable:$true] %s41
      %44 = dma.hbm_to_vmem [thread:$0]  %s2, 128, %s42, [#allocation5]
    $region13: #{generator_forward.4} parent=1 // pred_fallthru
      _
    // Predicated region
    $region14: #{generator_forward.4} parent=1 // pred_check
      _
    $region15: #{generator_forward.4} parent=1 // pred_check_branch
      %46 = sbr.rel (0) target = $region17
    $region16: #{generator_forward.4} parent=1 // pred_region
      %s48 = ssub.s32 32, 32
      %49 = vsyncadd [#allocation8], %s48
      %s51 = sshll.u32 [#allocation7], 4
      %s52 = int_to_ptr.vmem [resolvable:$true] %s51
      %54 = dma.hbm_to_vmem [thread:$0]  %s3, 32, %s52, [#allocation8]
    $region17: #{generator_forward.4} parent=1 // pred_fallthru
      _
    // Predicated region
    $region18: #{generator_forward.4} parent=1 // pred_check
      _
    $region19: #{generator_forward.4} parent=1 // pred_check_branch
      %56 = sbr.rel (0) target = $region21
    $region20: #{generator_forward.4} parent=1 // pred_region
      %s58 = ssub.s32 32, 32
      %59 = vsyncadd [#allocation8], %s58
      %s61 = sshll.u32 [#allocation9], 4
      %s62 = int_to_ptr.vmem [resolvable:$true] %s61
      %64 = dma.hbm_to_vmem [thread:$0]  %s4, 32, %s62, [#allocation8]
    $region21: #{generator_forward.4} parent=1 // pred_fallthru
      _
    // Predicated region
    $region22: #{generator_forward.4} parent=1 // pred_check
      _
    $region23: #{generator_forward.4} parent=1 // pred_check_branch
      %66 = sbr.rel (0) target = $region25
    $region24: #{generator_forward.4} parent=1 // pred_region
      %67 = dma.done [#allocation3], 32
    $region25: #{generator_forward.4} parent=1 // pred_fallthru
      _
    // Predicated region
    $region26: #{generator_forward.4} parent=1 // pred_check
      _
    $region27: #{generator_forward.4} parent=1 // pred_check_branch
      %69 = sbr.rel (0) target = $region29
    $region28: #{generator_forward.4} parent=1 // pred_region
      %70 = dma.done [#allocation5], 4096
    $region29: #{generator_forward.4} parent=1 // pred_fallthru
      _
    // Predicated region
    $region30: #{generator_forward.4} parent=1 // pred_check
      _
    $region31: #{generator_forward.4} parent=1 // pred_check_branch
      %72 = sbr.rel (0) target = $region33
    $region32: #{generator_forward.4} parent=1 // pred_region
      %73 = dma.done [#allocation5], 128
    $region33: #{generator_forward.4} parent=1 // pred_fallthru
      _
    // Predicated region
    $region34: #{generator_forward.4} parent=1 // pred_check
      _
    $region35: #{generator_forward.4} parent=1 // pred_check_branch
      %75 = sbr.rel (0) target = $region37
    $region36: #{generator_forward.4} parent=1 // pred_region
      %76 = dma.done [#allocation8], 32
    $region37: #{generator_forward.4} parent=1 // pred_fallthru
      _
    // Predicated region
    $region38: #{generator_forward.4} parent=1 // pred_check
      _
    $region39: #{generator_forward.4} parent=1 // pred_check_branch
      %78 = sbr.rel (0) target = $region41
    $region40: #{generator_forward.4} parent=1 // pred_region
      %79 = dma.done [#allocation8], 32
    $region41: #{generator_forward.4} parent=1 // pred_fallthru
      _
    %v80 = vld [vmem:[#allocation2] sm:$0x3]
    %v81 = vld [vmem:[#allocation4] sm:$0xff]
    %v82 = vld [vmem:[#allocation4 + $0x8] sm:$0xff]
    %v83 = vld [vmem:[#allocation4 + $0x10] sm:$0xff]
    %v84 = vld [vmem:[#allocation4 + $0x18] sm:$0xff]
    %v85 = vld [vmem:[#allocation4 + $0x20] sm:$0xff]
    %v86 = vld [vmem:[#allocation4 + $0x28] sm:$0xff]
    %v87 = vld [vmem:[#allocation4 + $0x30] sm:$0xff]
    %v88 = vld [vmem:[#allocation4 + $0x38] sm:$0xff]
    %v89 = vld [vmem:[#allocation4 + $0x40] sm:$0xff]
    %v90 = vld [vmem:[#allocation4 + $0x48] sm:$0xff]
    %v91 = vld [vmem:[#allocation4 + $0x50] sm:$0xff]
    %v92 = vld [vmem:[#allocation4 + $0x58] sm:$0xff]
    %v93 = vld [vmem:[#allocation4 + $0x60] sm:$0xff]
    %v94 = vld [vmem:[#allocation4 + $0x68] sm:$0xff]
    %v95 = vld [vmem:[#allocation4 + $0x70] sm:$0xff]
    %v96 = vld [vmem:[#allocation4 + $0x78] sm:$0xff]
    %v97 = vld [vmem:[#allocation4 + $0x80] sm:$0xff]
    %v98 = vld [vmem:[#allocation4 + $0x88] sm:$0xff]
    %v99 = vld [vmem:[#allocation4 + $0x90] sm:$0xff]
    %v100 = vld [vmem:[#allocation4 + $0x98] sm:$0xff]
    %v101 = vld [vmem:[#allocation4 + $0xa0] sm:$0xff]
    %v102 = vld [vmem:[#allocation4 + $0xa8] sm:$0xff]
    %v103 = vld [vmem:[#allocation4 + $0xb0] sm:$0xff]
    %v104 = vld [vmem:[#allocation4 + $0xb8] sm:$0xff]
    %v105 = vld [vmem:[#allocation4 + $0xc0] sm:$0xff]
    %v106 = vld [vmem:[#allocation4 + $0xc8] sm:$0xff]
    %v107 = vld [vmem:[#allocation4 + $0xd0] sm:$0xff]
    %v108 = vld [vmem:[#allocation4 + $0xd8] sm:$0xff]
    %v109 = vld [vmem:[#allocation4 + $0xe0] sm:$0xff]
    %v110 = vld [vmem:[#allocation4 + $0xe8] sm:$0xff]
    %v111 = vld [vmem:[#allocation4 + $0xf0] sm:$0xff]
    %v112 = vld [vmem:[#allocation4 + $0xf8] sm:$0xff]
    %v113 = vld [vmem:[#allocation6] sm:$0xff]
    %v115 = vlaneseq
    %v116 = vshrl.u32 %v115, 7
    %v117 = vsub.s32 0, %v116
    %v118 = vrot.slane %v113, %v117
    %v119 = vlaneseq
    %v120 = vshrl.u32 %v119, 7
    %v121 = vsub.s32 1, %v120
    %v122 = vrot.slane %v113, %v121
    %v123 = vlaneseq
    %v124 = vshrl.u32 %v123, 7
    %v125 = vsub.s32 2, %v124
    %v126 = vrot.slane %v113, %v125
    %v127 = vlaneseq
    %v128 = vshrl.u32 %v127, 7
    %v129 = vsub.s32 3, %v128
    %v130 = vrot.slane %v113, %v129
    %v131 = vlaneseq
    %v132 = vshrl.u32 %v131, 7
    %v133 = vsub.s32 4, %v132
    %v134 = vrot.slane %v113, %v133
    %v135 = vlaneseq
    %v136 = vshrl.u32 %v135, 7
    %v137 = vsub.s32 5, %v136
    %v138 = vrot.slane %v113, %v137
    %v139 = vlaneseq
    %v140 = vshrl.u32 %v139, 7
    %v141 = vsub.s32 6, %v140
    %v142 = vrot.slane %v113, %v141
    %v143 = vlaneseq
    %v144 = vshrl.u32 %v143, 7
    %v145 = vsub.s32 7, %v144
    %v146 = vrot.slane %v113, %v145
    %vm155 = vcmask 261120
    %v157 = vsel %vm155, %v80, 0
    %159 = vmatprep.subr.mxu0 %v82
    %160 = vmatpush1.msra.mxu0 %v81
    %161 = vmatprep.subr.mxu0 %v90
    %162 = vmatpush1.msra.mxu0 %v89
    %163 = vmatprep.subr.mxu0 %v98
    %164 = vmatpush1.msra.mxu0 %v97
    %165 = vmatprep.subr.mxu0 %v106
    %166 = vmatpush1.msra.mxu0 %v105
    %167 = vmatprep.subr.mxu0 0.0
    %168 = vmatpush1.msra.mxu0 0.0
    %169 = vmatprep.subr.mxu0 0.0
    %170 = vmatpush1.msra.mxu0 0.0
    %171 = vmatprep.subr.mxu0 0.0
    %172 = vmatpush1.msra.mxu0 0.0
    %173 = vmatprep.subr.mxu0 0.0
    %174 = vmatpush1.msra.mxu0 0.0
    %175 = vmatprep.subr.mxu0 0.0
    %176 = vmatpush1.msra.mxu0 0.0
    %177 = vmatprep.subr.mxu0 0.0
    %178 = vmatpush1.msra.mxu0 0.0
    %179 = vmatprep.subr.mxu0 0.0
    %180 = vmatpush1.msra.mxu0 0.0
    %181 = vmatprep.subr.mxu0 0.0
    %182 = vmatpush1.msra.mxu0 0.0
    %183 = vmatprep.subr.mxu0 0.0
    %184 = vmatpush1.msra.mxu0 0.0
    %185 = vmatprep.subr.mxu0 0.0
    %186 = vmatpush1.msra.mxu0 0.0
    %187 = vmatprep.subr.mxu0 0.0
    %188 = vmatpush1.msra.mxu0 0.0
    %189 = vmatprep.subr.mxu0 0.0
    %190 = vmatpush1.msra.mxu0 0.0
    %191 = vmatprep.subr.mxu0 0.0
    %192 = vmatpush1.msra.mxu0 0.0
    %193 = vmatprep.subr.mxu0 0.0
    %194 = vmatpush1.msra.mxu0 0.0
    %195 = vmatprep.subr.mxu0 0.0
    %196 = vmatpush1.msra.mxu0 0.0
    %197 = vmatprep.subr.mxu0 0.0
    %198 = vmatpush1.msra.mxu0 0.0
    %199 = vmatprep.subr.mxu0 0.0
    %200 = vmatpush1.msra.mxu0 0.0
    %201 = vmatprep.subr.mxu0 0.0
    %202 = vmatpush1.msra.mxu0 0.0
    %203 = vmatprep.subr.mxu0 0.0
    %204 = vmatpush1.msra.mxu0 0.0
    %205 = vmatprep.subr.mxu0 0.0
    %206 = vmatpush1.msra.mxu0 0.0
    %207 = vmatprep.subr.mxu0 0.0
    %208 = vmatpush1.msra.mxu0 0.0
    %209 = vmatprep.subr.mxu0 0.0
    %210 = vmatpush1.msra.mxu0 0.0
    %211 = vmatprep.subr.mxu0 0.0
    %212 = vmatpush1.msra.mxu0 0.0
    %213 = vmatprep.subr.mxu0 0.0
    %214 = vmatpush1.msra.mxu0 0.0
    %215 = vmatprep.subr.mxu0 0.0
    %216 = vmatpush1.msra.mxu0 0.0
    %217 = vmatprep.subr.mxu0 0.0
    %218 = vmatpush1.msra.mxu0 0.0
    %219 = vmatprep.subr.mxu0 0.0
    %220 = vmatpush1.msra.mxu0 0.0
    %221 = vmatprep.subr.mxu0 0.0
    %222 = vmatpush1.msra.mxu0 0.0
    %223 = vmatprep.mubr.f32.mxu0 0.0
    %224 = vmatmul.mubr.f32.gmra.mrb[0].mxu0 %v157
    %v225 = vpop.f32.mrb[0].mxu0
    %v226 = vadd.f32 %v118, %v225
    %v227 = vpop.f32.mrb[0].mxu0
    %v228 = vadd.f32 %v122, %v227
    %229 = vdwg.mxu0
    %230 = vmatprep.subr.mxu0 %v84
    %231 = vmatpush1.msra.mxu0 %v83
    %232 = vmatprep.subr.mxu0 %v92
    %233 = vmatpush1.msra.mxu0 %v91
    %234 = vmatprep.subr.mxu0 %v100
    %235 = vmatpush1.msra.mxu0 %v99
    %236 = vmatprep.subr.mxu0 %v108
    %237 = vmatpush1.msra.mxu0 %v107
    %238 = vmatprep.subr.mxu0 0.0
    %239 = vmatpush1.msra.mxu0 0.0
    %240 = vmatprep.subr.mxu0 0.0
    %241 = vmatpush1.msra.mxu0 0.0
    %242 = vmatprep.subr.mxu0 0.0
    %243 = vmatpush1.msra.mxu0 0.0
    %244 = vmatprep.subr.mxu0 0.0
    %245 = vmatpush1.msra.mxu0 0.0
    %246 = vmatprep.subr.mxu0 0.0
    %247 = vmatpush1.msra.mxu0 0.0
    %248 = vmatprep.subr.mxu0 0.0
    %249 = vmatpush1.msra.mxu0 0.0
    %250 = vmatprep.subr.mxu0 0.0
    %251 = vmatpush1.msra.mxu0 0.0
    %252 = vmatprep.subr.mxu0 0.0
    %253 = vmatpush1.msra.mxu0 0.0
    %254 = vmatprep.subr.mxu0 0.0
    %255 = vmatpush1.msra.mxu0 0.0
    %256 = vmatprep.subr.mxu0 0.0
    %257 = vmatpush1.msra.mxu0 0.0
    %258 = vmatprep.subr.mxu0 0.0
    %259 = vmatpush1.msra.mxu0 0.0
    %260 = vmatprep.subr.mxu0 0.0
    %261 = vmatpush1.msra.mxu0 0.0
    %262 = vmatprep.subr.mxu0 0.0
    %263 = vmatpush1.msra.mxu0 0.0
    %264 = vmatprep.subr.mxu0 0.0
    %265 = vmatpush1.msra.mxu0 0.0
    %266 = vmatprep.subr.mxu0 0.0
    %267 = vmatpush1.msra.mxu0 0.0
    %268 = vmatprep.subr.mxu0 0.0
    %269 = vmatpush1.msra.mxu0 0.0
    %270 = vmatprep.subr.mxu0 0.0
    %271 = vmatpush1.msra.mxu0 0.0
    %272 = vmatprep.subr.mxu0 0.0
    %273 = vmatpush1.msra.mxu0 0.0
    %274 = vmatprep.subr.mxu0 0.0
    %275 = vmatpush1.msra.mxu0 0.0
    %276 = vmatprep.subr.mxu0 0.0
    %277 = vmatpush1.msra.mxu0 0.0
    %278 = vmatprep.subr.mxu0 0.0
    %279 = vmatpush1.msra.mxu0 0.0
    %280 = vmatprep.subr.mxu0 0.0
    %281 = vmatpush1.msra.mxu0 0.0
    %282 = vmatprep.subr.mxu0 0.0
    %283 = vmatpush1.msra.mxu0 0.0
    %284 = vmatprep.subr.mxu0 0.0
    %285 = vmatpush1.msra.mxu0 0.0
    %286 = vmatprep.subr.mxu0 0.0
    %287 = vmatpush1.msra.mxu0 0.0
    %288 = vmatprep.subr.mxu0 0.0
    %289 = vmatpush1.msra.mxu0 0.0
    %290 = vmatprep.subr.mxu0 0.0
    %291 = vmatpush1.msra.mxu0 0.0
    %292 = vmatprep.subr.mxu0 0.0
    %293 = vmatpush1.msra.mxu0 0.0
    %294 = vmatprep.mubr.f32.mxu0 0.0
    %295 = vmatmul.mubr.f32.gmra.mrb[0].mxu0 %v157
    %v296 = vpop.f32.mrb[0].mxu0
    %v297 = vadd.f32 %v126, %v296
    %v298 = vpop.f32.mrb[0].mxu0
    %v299 = vadd.f32 %v130, %v298
    %300 = vdwg.mxu0
    %301 = vmatprep.subr.mxu0 %v86
    %302 = vmatpush1.msra.mxu0 %v85
    %303 = vmatprep.subr.mxu0 %v94
    %304 = vmatpush1.msra.mxu0 %v93
    %305 = vmatprep.subr.mxu0 %v102
    %306 = vmatpush1.msra.mxu0 %v101
    %307 = vmatprep.subr.mxu0 %v110
    %308 = vmatpush1.msra.mxu0 %v109
    %309 = vmatprep.subr.mxu0 0.0
    %310 = vmatpush1.msra.mxu0 0.0
    %311 = vmatprep.subr.mxu0 0.0
    %312 = vmatpush1.msra.mxu0 0.0
    %313 = vmatprep.subr.mxu0 0.0
    %314 = vmatpush1.msra.mxu0 0.0
    %315 = vmatprep.subr.mxu0 0.0
    %316 = vmatpush1.msra.mxu0 0.0
    %317 = vmatprep.subr.mxu0 0.0
    %318 = vmatpush1.msra.mxu0 0.0
    %319 = vmatprep.subr.mxu0 0.0
    %320 = vmatpush1.msra.mxu0 0.0
    %321 = vmatprep.subr.mxu0 0.0
    %322 = vmatpush1.msra.mxu0 0.0
    %323 = vmatprep.subr.mxu0 0.0
    %324 = vmatpush1.msra.mxu0 0.0
    %325 = vmatprep.subr.mxu0 0.0
    %326 = vmatpush1.msra.mxu0 0.0
    %327 = vmatprep.subr.mxu0 0.0
    %328 = vmatpush1.msra.mxu0 0.0
    %329 = vmatprep.subr.mxu0 0.0
    %330 = vmatpush1.msra.mxu0 0.0
    %331 = vmatprep.subr.mxu0 0.0
    %332 = vmatpush1.msra.mxu0 0.0
    %333 = vmatprep.subr.mxu0 0.0
    %334 = vmatpush1.msra.mxu0 0.0
    %335 = vmatprep.subr.mxu0 0.0
    %336 = vmatpush1.msra.mxu0 0.0
    %337 = vmatprep.subr.mxu0 0.0
    %338 = vmatpush1.msra.mxu0 0.0
    %339 = vmatprep.subr.mxu0 0.0
    %340 = vmatpush1.msra.mxu0 0.0
    %341 = vmatprep.subr.mxu0 0.0
    %342 = vmatpush1.msra.mxu0 0.0
    %343 = vmatprep.subr.mxu0 0.0
    %344 = vmatpush1.msra.mxu0 0.0
    %345 = vmatprep.subr.mxu0 0.0
    %346 = vmatpush1.msra.mxu0 0.0
    %347 = vmatprep.subr.mxu0 0.0
    %348 = vmatpush1.msra.mxu0 0.0
    %349 = vmatprep.subr.mxu0 0.0
    %350 = vmatpush1.msra.mxu0 0.0
    %351 = vmatprep.subr.mxu0 0.0
    %352 = vmatpush1.msra.mxu0 0.0
    %353 = vmatprep.subr.mxu0 0.0
    %354 = vmatpush1.msra.mxu0 0.0
    %355 = vmatprep.subr.mxu0 0.0
    %356 = vmatpush1.msra.mxu0 0.0
    %357 = vmatprep.subr.mxu0 0.0
    %358 = vmatpush1.msra.mxu0 0.0
    %359 = vmatprep.subr.mxu0 0.0
    %360 = vmatpush1.msra.mxu0 0.0
    %361 = vmatprep.subr.mxu0 0.0
    %362 = vmatpush1.msra.mxu0 0.0
    %363 = vmatprep.subr.mxu0 0.0
    %364 = vmatpush1.msra.mxu0 0.0
    %365 = vmatprep.mubr.f32.mxu0 0.0
    %366 = vmatmul.mubr.f32.gmra.mrb[0].mxu0 %v157
    %v367 = vpop.f32.mrb[0].mxu0
    %v368 = vadd.f32 %v134, %v367
    %v369 = vpop.f32.mrb[0].mxu0
    %v370 = vadd.f32 %v138, %v369
    %371 = vdwg.mxu0
    %372 = vmatprep.subr.mxu0 %v88
    %373 = vmatpush1.msra.mxu0 %v87
    %374 = vmatprep.subr.mxu0 %v96
    %375 = vmatpush1.msra.mxu0 %v95
    %376 = vmatprep.subr.mxu0 %v104
    %377 = vmatpush1.msra.mxu0 %v103
    %378 = vmatprep.subr.mxu0 %v112
    %379 = vmatpush1.msra.mxu0 %v111
    %380 = vmatprep.subr.mxu0 0.0
    %381 = vmatpush1.msra.mxu0 0.0
    %382 = vmatprep.subr.mxu0 0.0
    %383 = vmatpush1.msra.mxu0 0.0
    %384 = vmatprep.subr.mxu0 0.0
    %385 = vmatpush1.msra.mxu0 0.0
    %386 = vmatprep.subr.mxu0 0.0
    %387 = vmatpush1.msra.mxu0 0.0
    %388 = vmatprep.subr.mxu0 0.0
    %389 = vmatpush1.msra.mxu0 0.0
    %390 = vmatprep.subr.mxu0 0.0
    %391 = vmatpush1.msra.mxu0 0.0
    %392 = vmatprep.subr.mxu0 0.0
    %393 = vmatpush1.msra.mxu0 0.0
    %394 = vmatprep.subr.mxu0 0.0
    %395 = vmatpush1.msra.mxu0 0.0
    %396 = vmatprep.subr.mxu0 0.0
    %397 = vmatpush1.msra.mxu0 0.0
    %398 = vmatprep.subr.mxu0 0.0
    %399 = vmatpush1.msra.mxu0 0.0
    %400 = vmatprep.subr.mxu0 0.0
    %401 = vmatpush1.msra.mxu0 0.0
    %402 = vmatprep.subr.mxu0 0.0
    %403 = vmatpush1.msra.mxu0 0.0
    %404 = vmatprep.subr.mxu0 0.0
    %405 = vmatpush1.msra.mxu0 0.0
    %406 = vmatprep.subr.mxu0 0.0
    %407 = vmatpush1.msra.mxu0 0.0
    %408 = vmatprep.subr.mxu0 0.0
    %409 = vmatpush1.msra.mxu0 0.0
    %410 = vmatprep.subr.mxu0 0.0
    %411 = vmatpush1.msra.mxu0 0.0
    %412 = vmatprep.subr.mxu0 0.0
    %413 = vmatpush1.msra.mxu0 0.0
    %414 = vmatprep.subr.mxu0 0.0
    %415 = vmatpush1.msra.mxu0 0.0
    %416 = vmatprep.subr.mxu0 0.0
    %417 = vmatpush1.msra.mxu0 0.0
    %418 = vmatprep.subr.mxu0 0.0
    %419 = vmatpush1.msra.mxu0 0.0
    %420 = vmatprep.subr.mxu0 0.0
    %421 = vmatpush1.msra.mxu0 0.0
    %422 = vmatprep.subr.mxu0 0.0
    %423 = vmatpush1.msra.mxu0 0.0
    %424 = vmatprep.subr.mxu0 0.0
    %425 = vmatpush1.msra.mxu0 0.0
    %426 = vmatprep.subr.mxu0 0.0
    %427 = vmatpush1.msra.mxu0 0.0
    %428 = vmatprep.subr.mxu0 0.0
    %429 = vmatpush1.msra.mxu0 0.0
    %430 = vmatprep.subr.mxu0 0.0
    %431 = vmatpush1.msra.mxu0 0.0
    %432 = vmatprep.subr.mxu0 0.0
    %433 = vmatpush1.msra.mxu0 0.0
    %434 = vmatprep.subr.mxu0 0.0
    %435 = vmatpush1.msra.mxu0 0.0
    %436 = vmatprep.mubr.f32.mxu0 0.0
    %437 = vmatmul.mubr.f32.gmra.mrb[0].mxu0 %v157
    %v438 = vpop.f32.mrb[0].mxu0
    %v439 = vadd.f32 %v142, %v438
    %v440 = vpop.f32.mrb[0].mxu0
    %v441 = vadd.f32 %v146, %v440
    %442 = vdwg.mxu0
    %vm443 = vcmask 1041408
    %v444 = vsel %vm443, %v226, 0.0
    %v445 = vrot.slane %v444, 4
    %v446 = vadd.f32 %v444, %v445
    %v447 = vrot.slane %v446, 2
    %v448 = vadd.f32 %v446, %v447
    %v449 = vrot.slane %v448, 1
    %v450 = vadd.f32 %v448, %v449
    %v451 = vsel %vm443, %v228, 0.0
    %v452 = vrot.slane %v451, 4
    %v453 = vadd.f32 %v451, %v452
    %v454 = vrot.slane %v453, 2
    %v455 = vadd.f32 %v453, %v454
    %v456 = vrot.slane %v455, 1
    %v457 = vadd.f32 %v455, %v456
    %v458 = vsel %vm443, %v297, 0.0
    %v459 = vrot.slane %v458, 4
    %v460 = vadd.f32 %v458, %v459
    %v461 = vrot.slane %v460, 2
    %v462 = vadd.f32 %v460, %v461
    %v463 = vrot.slane %v462, 1
    %v464 = vadd.f32 %v462, %v463
    %v465 = vsel %vm443, %v299, 0.0
    %v466 = vrot.slane %v465, 4
    %v467 = vadd.f32 %v465, %v466
    %v468 = vrot.slane %v467, 2
    %v469 = vadd.f32 %v467, %v468
    %v470 = vrot.slane %v469, 1
    %v471 = vadd.f32 %v469, %v470
    %v472 = vsel %vm443, %v368, 0.0
    %v473 = vrot.slane %v472, 4
    %v474 = vadd.f32 %v472, %v473
    %v475 = vrot.slane %v474, 2
    %v476 = vadd.f32 %v474, %v475
    %v477 = vrot.slane %v476, 1
    %v478 = vadd.f32 %v476, %v477
    %v479 = vsel %vm443, %v370, 0.0
    %v480 = vrot.slane %v479, 4
    %v481 = vadd.f32 %v479, %v480
    %v482 = vrot.slane %v481, 2
    %v483 = vadd.f32 %v481, %v482
    %v484 = vrot.slane %v483, 1
    %v485 = vadd.f32 %v483, %v484
    %v486 = vsel %vm443, %v439, 0.0
    %v487 = vrot.slane %v486, 4
    %v488 = vadd.f32 %v486, %v487
    %v489 = vrot.slane %v488, 2
    %v490 = vadd.f32 %v488, %v489
    %v491 = vrot.slane %v490, 1
    %v492 = vadd.f32 %v490, %v491
    %v493 = vsel %vm443, %v441, 0.0
    %v494 = vrot.slane %v493, 4
    %v495 = vadd.f32 %v493, %v494
    %v496 = vrot.slane %v495, 2
    %v497 = vadd.f32 %v495, %v496
    %v498 = vrot.slane %v497, 1
    %v499 = vadd.f32 %v497, %v498
    %v500 = vadd.f32 %v450, 0.0
    %v501 = vadd.f32 %v457, 0.0
    %v502 = vadd.f32 %v500, %v464
    %v503 = vadd.f32 %v501, %v471
    %v504 = vadd.f32 %v502, %v478
    %v505 = vadd.f32 %v503, %v485
    %v506 = vadd.f32 %v504, %v492
    %v507 = vadd.f32 %v505, %v499
    %v508 = vrcp.pop 8.0
    %v509 = vmul.f32 %v506, %v508
    %v510 = vmul.f32 %v507, %v508
    %v511 = vlaneseq
    %v512 = vshrl.u32 %v511, 7
    %v513 = vsub.s32 0, %v512
    %v514 = vrot.slane %v509, %v513
    %v515 = vlaneseq
    %v516 = vshrl.u32 %v515, 7
    %v517 = vsub.s32 0, %v516
    %v518 = vrot.slane %v510, %v517
    %v519 = vsub.f32 %v226, %v514
    %v520 = vsub.f32 %v228, %v518
    %v521 = vsub.f32 %v297, %v514
    %v522 = vsub.f32 %v299, %v518
    %v523 = vsub.f32 %v368, %v514
    %v524 = vsub.f32 %v370, %v518
    %v525 = vsub.f32 %v439, %v514
    %v526 = vsub.f32 %v441, %v518
    %v527 = vmul.f32 %v519, %v519
    %v528 = vmul.f32 %v520, %v520
    %v529 = vmul.f32 %v521, %v521
    %v530 = vmul.f32 %v522, %v522
    %v531 = vmul.f32 %v523, %v523
    %v532 = vmul.f32 %v524, %v524
    %v533 = vmul.f32 %v525, %v525
    %v534 = vmul.f32 %v526, %v526
    %v535 = vsel %vm443, %v527, 0.0
    %v536 = vrot.slane %v535, 4
    %v537 = vadd.f32 %v535, %v536
    %v538 = vrot.slane %v537, 2
    %v539 = vadd.f32 %v537, %v538
    %v540 = vrot.slane %v539, 1
    %v541 = vadd.f32 %v539, %v540
    %v542 = vsel %vm443, %v528, 0.0
    %v543 = vrot.slane %v542, 4
    %v544 = vadd.f32 %v542, %v543
    %v545 = vrot.slane %v544, 2
    %v546 = vadd.f32 %v544, %v545
    %v547 = vrot.slane %v546, 1
    %v548 = vadd.f32 %v546, %v547
    %v549 = vsel %vm443, %v529, 0.0
    %v550 = vrot.slane %v549, 4
    %v551 = vadd.f32 %v549, %v550
    %v552 = vrot.slane %v551, 2
    %v553 = vadd.f32 %v551, %v552
    %v554 = vrot.slane %v553, 1
    %v555 = vadd.f32 %v553, %v554
    %v556 = vsel %vm443, %v530, 0.0
    %v557 = vrot.slane %v556, 4
    %v558 = vadd.f32 %v556, %v557
    %v559 = vrot.slane %v558, 2
    %v560 = vadd.f32 %v558, %v559
    %v561 = vrot.slane %v560, 1
    %v562 = vadd.f32 %v560, %v561
    %v563 = vsel %vm443, %v531, 0.0
    %v564 = vrot.slane %v563, 4
    %v565 = vadd.f32 %v563, %v564
    %v566 = vrot.slane %v565, 2
    %v567 = vadd.f32 %v565, %v566
    %v568 = vrot.slane %v567, 1
    %v569 = vadd.f32 %v567, %v568
    %v570 = vsel %vm443, %v532, 0.0
    %v571 = vrot.slane %v570, 4
    %v572 = vadd.f32 %v570, %v571
    %v573 = vrot.slane %v572, 2
    %v574 = vadd.f32 %v572, %v573
    %v575 = vrot.slane %v574, 1
    %v576 = vadd.f32 %v574, %v575
    %v577 = vsel %vm443, %v533, 0.0
    %v578 = vrot.slane %v577, 4
    %v579 = vadd.f32 %v577, %v578
    %v580 = vrot.slane %v579, 2
    %v581 = vadd.f32 %v579, %v580
    %v582 = vrot.slane %v581, 1
    %v583 = vadd.f32 %v581, %v582
    %v584 = vsel %vm443, %v534, 0.0
    %v585 = vrot.slane %v584, 4
    %v586 = vadd.f32 %v584, %v585
    %v587 = vrot.slane %v586, 2
    %v588 = vadd.f32 %v586, %v587
    %v589 = vrot.slane %v588, 1
    %v590 = vadd.f32 %v588, %v589
    %v591 = vadd.f32 %v541, 0.0
    %v592 = vadd.f32 %v548, 0.0
    %v593 = vadd.f32 %v591, %v555
    %v594 = vadd.f32 %v592, %v562
    %v595 = vadd.f32 %v593, %v569
    %v596 = vadd.f32 %v594, %v576
    %v597 = vadd.f32 %v595, %v583
    %v598 = vadd.f32 %v596, %v590
    %v599 = vmul.f32 %v597, %v508
    %v600 = vmul.f32 %v598, %v508
    %v601 = vld [vmem:[#allocation7] sm:$0x3]
    %v602 = vadd.f32 %v599, 1e-05
    %v603 = vadd.f32 %v600, 1e-05
    %v604 = vrsqrt.pop %v602
    %v605 = vrsqrt.pop %v603
    %v608 = vcombine.low %v604, %v605
    %v610 = vunpack.c.l.s4 1966171168
    %v611 = vunpack.c.0.s8 %v610
    %v612 = vlaneseq
    %v613 = vshrl.u32 %v612, 7
    %v614 = vsub.s32 %v611, %v613
    %v615 = vrot.slane %v608, %v614
    %v617 = vunpack.c.l.s4 1966171168
    %v618 = vunpack.c.0.s8 %v617
    %v619 = vlaneseq
    %v620 = vshrl.u32 %v619, 7
    %v621 = vsub.s32 %v618, %v620
    %v622 = vrot.slane %v615, %v621
    %v624 = vmul.f32 %v601, %v622
    %v625 = vld [vmem:[#allocation9] sm:$0x3]
    %v627 = vlaneseq
    %v628 = vshrl.u32 %v627, 7
    %v629 = vsub.s32 0, %v628
    %v630 = vrot.slane %v624, %v629
    %v631 = vlaneseq
    %v632 = vshrl.u32 %v631, 7
    %v633 = vsub.s32 1, %v632
    %v634 = vrot.slane %v624, %v633
    %v637 = vmul.f32 %v509, %v630
    %v638 = vmul.f32 %v510, %v634
    %v641 = vcombine.low %v637, %v638
    %v643 = vunpack.c.l.s4 1966171168
    %v644 = vunpack.c.0.s8 %v643
    %v645 = vlaneseq
    %v646 = vshrl.u32 %v645, 7
    %v647 = vsub.s32 %v644, %v646
    %v648 = vrot.slane %v641, %v647
    %v650 = vunpack.c.l.s4 1966171168
    %v651 = vunpack.c.0.s8 %v650
    %v652 = vlaneseq
    %v653 = vshrl.u32 %v652, 7
    %v654 = vsub.s32 %v651, %v653
    %v655 = vrot.slane %v648, %v654
    %v657 = vsub.f32 %v625, %v655
    %v659 = vlaneseq
    %v660 = vshrl.u32 %v659, 7
    %v661 = vsub.s32 0, %v660
    %v662 = vrot.slane %v657, %v661
    %v663 = vlaneseq
    %v664 = vshrl.u32 %v663, 7
    %v665 = vsub.s32 1, %v664
    %v666 = vrot.slane %v657, %v665
    %v669 = vlaneseq
    %v670 = vshrl.u32 %v669, 7
    %v671 = vsub.s32 0, %v670
    %v672 = vrot.slane %v630, %v671
    %v673 = vlaneseq
    %v674 = vshrl.u32 %v673, 7
    %v675 = vsub.s32 0, %v674
    %v676 = vrot.slane %v634, %v675
    %v677 = vmul.f32 %v226, %v672
    %v678 = vmul.f32 %v228, %v676
    %v679 = vmul.f32 %v297, %v672
    %v680 = vmul.f32 %v299, %v676
    %v681 = vmul.f32 %v368, %v672
    %v682 = vmul.f32 %v370, %v676
    %v683 = vmul.f32 %v439, %v672
    %v684 = vmul.f32 %v441, %v676
    %v685 = vlaneseq
    %v686 = vshrl.u32 %v685, 7
    %v687 = vsub.s32 0, %v686
    %v688 = vrot.slane %v662, %v687
    %v689 = vlaneseq
    %v690 = vshrl.u32 %v689, 7
    %v691 = vsub.s32 0, %v690
    %v692 = vrot.slane %v666, %v691
    %v693 = vadd.f32 %v677, %v688
    %v694 = vadd.f32 %v678, %v692
    %v695 = vadd.f32 %v679, %v688
    %v696 = vadd.f32 %v680, %v692
    %v697 = vadd.f32 %v681, %v688
    %v698 = vadd.f32 %v682, %v692
    %v699 = vadd.f32 %v683, %v688
    %v700 = vadd.f32 %v684, %v692
    %v709 = vcombine.low %v693, %v694
    %v710 = vcombine.low %v695, %v696
    %v712 = vunpack.c.l.s4 1983009808
    %v713 = vunpack.c.0.s8 %v712
    %v714 = vlaneseq
    %v715 = vshrl.u32 %v714, 7
    %v716 = vsub.s32 %v713, %v715
    %v717 = vrot.slane %v709, %v716
    %v719 = vunpack.c.l.s4 1983009808
    %v720 = vunpack.c.0.s8 %v719
    %v721 = vlaneseq
    %v722 = vshrl.u32 %v721, 7
    %v723 = vsub.s32 %v720, %v722
    %v724 = vrot.slane %v710, %v723
    %v725 = vcombine.low %v717, %v724
    %v726 = vcombine.low %v697, %v698
    %v727 = vcombine.low %v699, %v700
    %v729 = vunpack.c.l.s4 1983009808
    %v730 = vunpack.c.0.s8 %v729
    %v731 = vlaneseq
    %v732 = vshrl.u32 %v731, 7
    %v733 = vsub.s32 %v730, %v732
    %v734 = vrot.slane %v726, %v733
    %v736 = vunpack.c.l.s4 1983009808
    %v737 = vunpack.c.0.s8 %v736
    %v738 = vlaneseq
    %v739 = vshrl.u32 %v738, 7
    %v740 = vsub.s32 %v737, %v739
    %v741 = vrot.slane %v727, %v740
    %v742 = vcombine.low %v734, %v741
    %745 = vst [vmem:[%s5] sm:$0xff] %v725
    %746 = vst [vmem:[%s5 + $0x8] sm:$0xff] %v742
    // Predicated region
    $region42: #{generator_forward.4} parent=1 // pred_check
      _
    $region43: #{generator_forward.4} parent=1 // pred_check_branch
      %748 = sbr.rel (0) target = $region45
    $region44: #{generator_forward.4} parent=1 // pred_region
      _
    $region45: #{generator_forward.4} parent=1 // pred_fallthru
      _
    // Predicated region
    $region46: #{generator_forward.4} parent=1 // pred_check
      _
    $region47: #{generator_forward.4} parent=1 // pred_check_branch
      %750 = sbr.rel (0) target = $region49
    $region48: #{generator_forward.4} parent=1 // pred_region
      _
    $region49: #{generator_forward.4} parent=1 // pred_fallthru
      _
    %751 = vsyncpa [#allocation3], 1
    %752 = vsyncpa [#allocation5], 1
    %753 = vsyncpa [#allocation8], 1

// kernel: generator_forward.5
$region0: #{generator_forward.5}
  #allocation0 [shape = 'u32[]', space=smem, size = 0x4, offset = 0x4, fixed_abs, tag = 'smem constant byte address 0x4 - core index']
  #allocation1 [shape = 'u32[144,128]{1,0:T(1,128)}', space=vmem, size = 0x12000, scoped, tag = 'internal scratch']
  %s0 = inlined_call_operand.vmem [shape: f32[4,8,1024], index: 0, kind: input, shape index: {}]
  %s1 = inlined_call_operand.hbm [shape: f32[4,1024,128], index: 1, kind: input, shape index: {}]
  %s2 = inlined_call_operand.hbm [shape: f32[1,1,128], index: 2, kind: input, shape index: {}]
  %s3 = inlined_call_operand.hbm [shape: f32[1,1,128], index: 3, kind: input, shape index: {}]
  %s4 = inlined_call_operand.vmem [shape: f32[4,8,128], index: 4, kind: output, shape index: {}]
  %s5 = sld [smem:[#allocation0]]
  $region38: #{generator_forward.5} parent=0
    _
  %s7 = ssub.s32 1, %s5
  %s8 = scalar_select 0, %s7, %s5
  $region1: #{generator_forward.5} parent=0
    #allocation2 [shape = 'u8[2097152]{0}', space=vmem, size = 0x200000, scoped, tag = 'input window, operand 1, single buffered']
    #allocation3 [shape = 's32[1]{0}', space=sflag, size = 0x4, scoped, tag = 'scoped memory for generator_forward.5']
    #allocation4 [shape = 'u8[512]{0}', space=vmem, size = 0x400, scoped, tag = 'input window, operand 2, single buffered']
    #allocation5 [shape = 's32[1]{0}', space=sflag, size = 0x4, scoped, tag = 'scoped memory for generator_forward.5']
    #allocation6 [shape = 'u8[512]{0}', space=vmem, size = 0x400, scoped, tag = 'input window, operand 3, single buffered']
    %9 = vsyncpa [#allocation3], 0
    %10 = vsyncpa [#allocation5], 0
    // Predicated region
    $region2: #{generator_forward.5} parent=1 // pred_check
      _
    $region3: #{generator_forward.5} parent=1 // pred_check_branch
      %12 = sbr.rel (0) target = $region5
    $region4: #{generator_forward.5} parent=1 // pred_region
      _
    $region5: #{generator_forward.5} parent=1 // pred_fallthru
      _
    // Predicated region
    $region6: #{generator_forward.5} parent=1 // pred_check
      _
    $region7: #{generator_forward.5} parent=1 // pred_check_branch
      %14 = sbr.rel (0) target = $region9
    $region8: #{generator_forward.5} parent=1 // pred_region
      %s16 = ssub.s32 65536, 65536
      %17 = vsyncadd [#allocation3], %s16
      %s18 = sshll.u32 [#allocation2], 4
      %s19 = int_to_ptr.vmem [resolvable:$true] %s18
      %24 = dma.hbm_to_vmem [thread:$0]  %s1, 65536, %s19, [#allocation3], 128, 128, 8
    $region9: #{generator_forward.5} parent=1 // pred_fallthru
      _
    // Predicated region
    $region10: #{generator_forward.5} parent=1 // pred_check
      _
    $region11: #{generator_forward.5} parent=1 // pred_check_branch
      %26 = sbr.rel (0) target = $region13
    $region12: #{generator_forward.5} parent=1 // pred_region
      %s28 = ssub.s32 16, 16
      %29 = vsyncadd [#allocation5], %s28
      %s31 = sshll.u32 [#allocation4], 4
      %s32 = int_to_ptr.vmem [resolvable:$true] %s31
      %34 = dma.hbm_to_vmem [thread:$0]  %s2, 16, %s32, [#allocation5]
    $region13: #{generator_forward.5} parent=1 // pred_fallthru
      _
    // Predicated region
    $region14: #{generator_forward.5} parent=1 // pred_check
      _
    $region15: #{generator_forward.5} parent=1 // pred_check_branch
      %36 = sbr.rel (0) target = $region17
    $region16: #{generator_forward.5} parent=1 // pred_region
      %s38 = ssub.s32 16, 16
      %39 = vsyncadd [#allocation5], %s38
      %s41 = sshll.u32 [#allocation6], 4
      %s42 = int_to_ptr.vmem [resolvable:$true] %s41
      %44 = dma.hbm_to_vmem [thread:$0]  %s3, 16, %s42, [#allocation5]
    $region17: #{generator_forward.5} parent=1 // pred_fallthru
      _
    // Predicated region
    $region18: #{generator_forward.5} parent=1 // pred_check
      _
    $region19: #{generator_forward.5} parent=1 // pred_check_branch
      %46 = sbr.rel (0) target = $region21
    $region20: #{generator_forward.5} parent=1 // pred_region
      %47 = dma.done [#allocation3], 65536
    $region21: #{generator_forward.5} parent=1 // pred_fallthru
      _
    // Predicated region
    $region22: #{generator_forward.5} parent=1 // pred_check
      _
    $region23: #{generator_forward.5} parent=1 // pred_check_branch
      %49 = sbr.rel (0) target = $region25
    $region24: #{generator_forward.5} parent=1 // pred_region
      %50 = dma.done [#allocation5], 16
    $region25: #{generator_forward.5} parent=1 // pred_fallthru
      _
    // Predicated region
    $region26: #{generator_forward.5} parent=1 // pred_check
      _
    $region27: #{generator_forward.5} parent=1 // pred_check_branch
      %52 = sbr.rel (0) target = $region29
    $region28: #{generator_forward.5} parent=1 // pred_region
      %53 = dma.done [#allocation5], 16
    $region29: #{generator_forward.5} parent=1 // pred_fallthru
      _
    %v54 = vld [vmem:[%s0] sm:$0xff]
    %v55 = vld [vmem:[%s0 + $0x8] sm:$0xff]
    %v56 = vld [vmem:[%s0 + $0x10] sm:$0xff]
    %v57 = vld [vmem:[%s0 + $0x18] sm:$0xff]
    %v58 = vld [vmem:[%s0 + $0x20] sm:$0xff]
    %v59 = vld [vmem:[%s0 + $0x28] sm:$0xff]
    %v60 = vld [vmem:[%s0 + $0x30] sm:$0xff]
    %v61 = vld [vmem:[%s0 + $0x38] sm:$0xff]
    %v62 = vld [vmem:[%s0 + $0x40] sm:$0xff]
    %v63 = vld [vmem:[%s0 + $0x48] sm:$0xff]
    %v64 = vld [vmem:[%s0 + $0x50] sm:$0xff]
    %v65 = vld [vmem:[%s0 + $0x58] sm:$0xff]
    %v66 = vld [vmem:[%s0 + $0x60] sm:$0xff]
    %v67 = vld [vmem:[%s0 + $0x68] sm:$0xff]
    %v68 = vld [vmem:[%s0 + $0x70] sm:$0xff]
    %v69 = vld [vmem:[%s0 + $0x78] sm:$0xff]
    %v70 = vld [vmem:[%s0 + $0x80] sm:$0xff]
    %v71 = vld [vmem:[%s0 + $0x88] sm:$0xff]
    %v72 = vld [vmem:[%s0 + $0x90] sm:$0xff]
    %v73 = vld [vmem:[%s0 + $0x98] sm:$0xff]
    %v74 = vld [vmem:[%s0 + $0xa0] sm:$0xff]
    %v75 = vld [vmem:[%s0 + $0xa8] sm:$0xff]
    %v76 = vld [vmem:[%s0 + $0xb0] sm:$0xff]
    %v77 = vld [vmem:[%s0 + $0xb8] sm:$0xff]
    %v78 = vld [vmem:[%s0 + $0xc0] sm:$0xff]
    %v79 = vld [vmem:[%s0 + $0xc8] sm:$0xff]
    %v80 = vld [vmem:[%s0 + $0xd0] sm:$0xff]
    %v81 = vld [vmem:[%s0 + $0xd8] sm:$0xff]
    %v82 = vld [vmem:[%s0 + $0xe0] sm:$0xff]
    %v83 = vld [vmem:[%s0 + $0xe8] sm:$0xff]
    %v84 = vld [vmem:[%s0 + $0xf0] sm:$0xff]
    %v85 = vld [vmem:[%s0 + $0xf8] sm:$0xff]
    %v86 = vld [vmem:[#allocation2] sm:$0xff]
    %v87 = vld [vmem:[#allocation2 + $0x8] sm:$0xff]
    %v88 = vld [vmem:[#allocation2 + $0x10] sm:$0xff]
    %v89 = vld [vmem:[#allocation2 + $0x18] sm:$0xff]
    %v90 = vld [vmem:[#allocation2 + $0x20] sm:$0xff]
    %v91 = vld [vmem:[#allocation2 + $0x28] sm:$0xff]
    %v92 = vld [vmem:[#allocation2 + $0x30] sm:$0xff]
    %v93 = vld [vmem:[#allocation2 + $0x38] sm:$0xff]
    %v94 = vld [vmem:[#allocation2 + $0x40] sm:$0xff]
    %v95 = vld [vmem:[#allocation2 + $0x48] sm:$0xff]
    %v96 = vld [vmem:[#allocation2 + $0x50] sm:$0xff]
    %v97 = vld [vmem:[#allocation2 + $0x58] sm:$0xff]
    %v98 = vld [vmem:[#allocation2 + $0x60] sm:$0xff]
    %v99 = vld [vmem:[#allocation2 + $0x68] sm:$0xff]
    %v100 = vld [vmem:[#allocation2 + $0x70] sm:$0xff]
    %v101 = vld [vmem:[#allocation2 + $0x78] sm:$0xff]
    %v102 = vld [vmem:[#allocation2 + $0x80] sm:$0xff]
    %v103 = vld [vmem:[#allocation2 + $0x88] sm:$0xff]
    %v104 = vld [vmem:[#allocation2 + $0x90] sm:$0xff]
    %v105 = vld [vmem:[#allocation2 + $0x98] sm:$0xff]
    %v106 = vld [vmem:[#allocation2 + $0xa0] sm:$0xff]
    %v107 = vld [vmem:[#allocation2 + $0xa8] sm:$0xff]
    %v108 = vld [vmem:[#allocation2 + $0xb0] sm:$0xff]
    %v109 = vld [vmem:[#allocation2 + $0xb8] sm:$0xff]
    %v110 = vld [vmem:[#allocation2 + $0xc0] sm:$0xff]
    %v111 = vld [vmem:[#allocation2 + $0xc8] sm:$0xff]
    %v112 = vld [vmem:[#allocation2 + $0xd0] sm:$0xff]
    %v113 = vld [vmem:[#allocation2 + $0xd8] sm:$0xff]
    %v114 = vld [vmem:[#allocation2 + $0xe0] sm:$0xff]
    %v115 = vld [vmem:[#allocation2 + $0xe8] sm:$0xff]
    %v116 = vld [vmem:[#allocation2 + $0xf0] sm:$0xff]
    %v117 = vld [vmem:[#allocation2 + $0xf8] sm:$0xff]
    %v118 = vld [vmem:[#allocation2 + $0x100] sm:$0xff]
    %v119 = vld [vmem:[#allocation2 + $0x108] sm:$0xff]
    %v120 = vld [vmem:[#allocation2 + $0x110] sm:$0xff]
    %v121 = vld [vmem:[#allocation2 + $0x118] sm:$0xff]
    %v122 = vld [vmem:[#allocation2 + $0x120] sm:$0xff]
    %v123 = vld [vmem:[#allocation2 + $0x128] sm:$0xff]
    %v124 = vld [vmem:[#allocation2 + $0x130] sm:$0xff]
    %v125 = vld [vmem:[#allocation2 + $0x138] sm:$0xff]
    %v126 = vld [vmem:[#allocation2 + $0x140] sm:$0xff]
    %v127 = vld [vmem:[#allocation2 + $0x148] sm:$0xff]
    %v128 = vld [vmem:[#allocation2 + $0x150] sm:$0xff]
    %v129 = vld [vmem:[#allocation2 + $0x158] sm:$0xff]
    %v130 = vld [vmem:[#allocation2 + $0x160] sm:$0xff]
    %v131 = vld [vmem:[#allocation2 + $0x168] sm:$0xff]
    %v132 = vld [vmem:[#allocation2 + $0x170] sm:$0xff]
    %v133 = vld [vmem:[#allocation2 + $0x178] sm:$0xff]
    %v134 = vld [vmem:[#allocation2 + $0x180] sm:$0xff]
    %v135 = vld [vmem:[#allocation2 + $0x188] sm:$0xff]
    %v136 = vld [vmem:[#allocation2 + $0x190] sm:$0xff]
    %v137 = vld [vmem:[#allocation2 + $0x198] sm:$0xff]
    %v138 = vld [vmem:[#allocation2 + $0x1a0] sm:$0xff]
    %v139 = vld [vmem:[#allocation2 + $0x1a8] sm:$0xff]
    %v140 = vld [vmem:[#allocation2 + $0x1b0] sm:$0xff]
    %v141 = vld [vmem:[#allocation2 + $0x1b8] sm:$0xff]
    %v142 = vld [vmem:[#allocation2 + $0x1c0] sm:$0xff]
    %v143 = vld [vmem:[#allocation2 + $0x1c8] sm:$0xff]
    %v144 = vld [vmem:[#allocation2 + $0x1d0] sm:$0xff]
    %v145 = vld [vmem:[#allocation2 + $0x1d8] sm:$0xff]
    %v146 = vld [vmem:[#allocation2 + $0x1e0] sm:$0xff]
    %v147 = vld [vmem:[#allocation2 + $0x1e8] sm:$0xff]
    %v148 = vld [vmem:[#allocation2 + $0x1f0] sm:$0xff]
    %v149 = vld [vmem:[#allocation2 + $0x1f8] sm:$0xff]
    %v150 = vld [vmem:[#allocation2 + $0x200] sm:$0xff]
    %v151 = vld [vmem:[#allocation2 + $0x208] sm:$0xff]
    %v152 = vld [vmem:[#allocation2 + $0x210] sm:$0xff]
    %v153 = vld [vmem:[#allocation2 + $0x218] sm:$0xff]
    %v154 = vld [vmem:[#allocation2 + $0x220] sm:$0xff]
    %v155 = vld [vmem:[#allocation2 + $0x228] sm:$0xff]
    %v156 = vld [vmem:[#allocation2 + $0x230] sm:$0xff]
    %v157 = vld [vmem:[#allocation2 + $0x238] sm:$0xff]
    %v158 = vld [vmem:[#allocation2 + $0x240] sm:$0xff]
    %v159 = vld [vmem:[#allocation2 + $0x248] sm:$0xff]
    %v160 = vld [vmem:[#allocation2 + $0x250] sm:$0xff]
    %v161 = vld [vmem:[#allocation2 + $0x258] sm:$0xff]
    %v162 = vld [vmem:[#allocation2 + $0x260] sm:$0xff]
    %v163 = vld [vmem:[#allocation2 + $0x268] sm:$0xff]
    %v164 = vld [vmem:[#allocation2 + $0x270] sm:$0xff]
    %v165 = vld [vmem:[#allocation2 + $0x278] sm:$0xff]
    %v166 = vld [vmem:[#allocation2 + $0x280] sm:$0xff]
    %v167 = vld [vmem:[#allocation2 + $0x288] sm:$0xff]
    %v168 = vld [vmem:[#allocation2 + $0x290] sm:$0xff]
    %v169 = vld [vmem:[#allocation2 + $0x298] sm:$0xff]
    %v170 = vld [vmem:[#allocation2 + $0x2a0] sm:$0xff]
    %v171 = vld [vmem:[#allocation2 + $0x2a8] sm:$0xff]
    %v172 = vld [vmem:[#allocation2 + $0x2b0] sm:$0xff]
    %v173 = vld [vmem:[#allocation2 + $0x2b8] sm:$0xff]
    %v174 = vld [vmem:[#allocation2 + $0x2c0] sm:$0xff]
    %v175 = vld [vmem:[#allocation2 + $0x2c8] sm:$0xff]
    %v176 = vld [vmem:[#allocation2 + $0x2d0] sm:$0xff]
    %v177 = vld [vmem:[#allocation2 + $0x2d8] sm:$0xff]
    %v178 = vld [vmem:[#allocation2 + $0x2e0] sm:$0xff]
    %v179 = vld [vmem:[#allocation2 + $0x2e8] sm:$0xff]
    %v180 = vld [vmem:[#allocation2 + $0x2f0] sm:$0xff]
    %v181 = vld [vmem:[#allocation2 + $0x2f8] sm:$0xff]
    %v182 = vld [vmem:[#allocation2 + $0x300] sm:$0xff]
    %v183 = vld [vmem:[#allocation2 + $0x308] sm:$0xff]
    %v184 = vld [vmem:[#allocation2 + $0x310] sm:$0xff]
    %v185 = vld [vmem:[#allocation2 + $0x318] sm:$0xff]
    %v186 = vld [vmem:[#allocation2 + $0x320] sm:$0xff]
    %v187 = vld [vmem:[#allocation2 + $0x328] sm:$0xff]
    %v188 = vld [vmem:[#allocation2 + $0x330] sm:$0xff]
    %v189 = vld [vmem:[#allocation2 + $0x338] sm:$0xff]
    %v190 = vld [vmem:[#allocation2 + $0x340] sm:$0xff]
    %v191 = vld [vmem:[#allocation2 + $0x348] sm:$0xff]
    %v192 = vld [vmem:[#allocation2 + $0x350] sm:$0xff]
    %v193 = vld [vmem:[#allocation2 + $0x358] sm:$0xff]
    %v194 = vld [vmem:[#allocation2 + $0x360] sm:$0xff]
    %v195 = vld [vmem:[#allocation2 + $0x368] sm:$0xff]
    %v196 = vld [vmem:[#allocation2 + $0x370] sm:$0xff]
    %v197 = vld [vmem:[#allocation2 + $0x378] sm:$0xff]
    %v198 = vld [vmem:[#allocation2 + $0x380] sm:$0xff]
    %v199 = vld [vmem:[#allocation2 + $0x388] sm:$0xff]
    %v200 = vld [vmem:[#allocation2 + $0x390] sm:$0xff]
    %v201 = vld [vmem:[#allocation2 + $0x398] sm:$0xff]
    %v202 = vld [vmem:[#allocation2 + $0x3a0] sm:$0xff]
    %v203 = vld [vmem:[#allocation2 + $0x3a8] sm:$0xff]
    %v204 = vld [vmem:[#allocation2 + $0x3b0] sm:$0xff]
    %v205 = vld [vmem:[#allocation2 + $0x3b8] sm:$0xff]
    %v206 = vld [vmem:[#allocation2 + $0x3c0] sm:$0xff]
    %v207 = vld [vmem:[#allocation2 + $0x3c8] sm:$0xff]
    %v208 = vld [vmem:[#allocation2 + $0x3d0] sm:$0xff]
    %v209 = vld [vmem:[#allocation2 + $0x3d8] sm:$0xff]
    %v210 = vld [vmem:[#allocation2 + $0x3e0] sm:$0xff]
    %v211 = vld [vmem:[#allocation2 + $0x3e8] sm:$0xff]
    %v212 = vld [vmem:[#allocation2 + $0x3f0] sm:$0xff]
    %v213 = vld [vmem:[#allocation2 + $0x3f8] sm:$0xff]
    %v214 = vld [vmem:[#allocation2 + $0x400] sm:$0xff]
    %v215 = vld [vmem:[#allocation2 + $0x408] sm:$0xff]
    %v216 = vld [vmem:[#allocation2 + $0x410] sm:$0xff]
    %v217 = vld [vmem:[#allocation2 + $0x418] sm:$0xff]
    %v218 = vld [vmem:[#allocation2 + $0x420] sm:$0xff]
    %v219 = vld [vmem:[#allocation2 + $0x428] sm:$0xff]
    %v220 = vld [vmem:[#allocation2 + $0x430] sm:$0xff]
    %v221 = vld [vmem:[#allocation2 + $0x438] sm:$0xff]
    %v222 = vld [vmem:[#allocation2 + $0x440] sm:$0xff]
    %v223 = vld [vmem:[#allocation2 + $0x448] sm:$0xff]
    %v224 = vld [vmem:[#allocation2 + $0x450] sm:$0xff]
    %v225 = vld [vmem:[#allocation2 + $0x458] sm:$0xff]
    %v226 = vld [vmem:[#allocation2 + $0x460] sm:$0xff]
    %v227 = vld [vmem:[#allocation2 + $0x468] sm:$0xff]
    %v228 = vld [vmem:[#allocation2 + $0x470] sm:$0xff]
    %v229 = vld [vmem:[#allocation2 + $0x478] sm:$0xff]
    %v230 = vld [vmem:[#allocation2 + $0x480] sm:$0xff]
    %v231 = vld [vmem:[#allocation2 + $0x488] sm:$0xff]
    %v232 = vld [vmem:[#allocation2 + $0x490] sm:$0xff]
    %v233 = vld [vmem:[#allocation2 + $0x498] sm:$0xff]
    %v234 = vld [vmem:[#allocation2 + $0x4a0] sm:$0xff]
    %v235 = vld [vmem:[#allocation2 + $0x4a8] sm:$0xff]
    %v236 = vld [vmem:[#allocation2 + $0x4b0] sm:$0xff]
    %v237 = vld [vmem:[#allocation2 + $0x4b8] sm:$0xff]
    %v238 = vld [vmem:[#allocation2 + $0x4c0] sm:$0xff]
    %v239 = vld [vmem:[#allocation2 + $0x4c8] sm:$0xff]
    %v240 = vld [vmem:[#allocation2 + $0x4d0] sm:$0xff]
    %v241 = vld [vmem:[#allocation2 + $0x4d8] sm:$0xff]
    %v242 = vld [vmem:[#allocation2 + $0x4e0] sm:$0xff]
    %v243 = vld [vmem:[#allocation2 + $0x4e8] sm:$0xff]
    %v244 = vld [vmem:[#allocation2 + $0x4f0] sm:$0xff]
    %v245 = vld [vmem:[#allocation2 + $0x4f8] sm:$0xff]
    %v246 = vld [vmem:[#allocation2 + $0x500] sm:$0xff]
    %v247 = vld [vmem:[#allocation2 + $0x508] sm:$0xff]
    %v248 = vld [vmem:[#allocation2 + $0x510] sm:$0xff]
    %v249 = vld [vmem:[#allocation2 + $0x518] sm:$0xff]
    %v250 = vld [vmem:[#allocation2 + $0x520] sm:$0xff]
    %v251 = vld [vmem:[#allocation2 + $0x528] sm:$0xff]
    %v252 = vld [vmem:[#allocation2 + $0x530] sm:$0xff]
    %v253 = vld [vmem:[#allocation2 + $0x538] sm:$0xff]
    %v254 = vld [vmem:[#allocation2 + $0x540] sm:$0xff]
    %v255 = vld [vmem:[#allocation2 + $0x548] sm:$0xff]
    %v256 = vld [vmem:[#allocation2 + $0x550] sm:$0xff]
    %v257 = vld [vmem:[#allocation2 + $0x558] sm:$0xff]
    %v258 = vld [vmem:[#allocation2 + $0x560] sm:$0xff]
    %v259 = vld [vmem:[#allocation2 + $0x568] sm:$0xff]
    %v260 = vld [vmem:[#allocation2 + $0x570] sm:$0xff]
    %v261 = vld [vmem:[#allocation2 + $0x578] sm:$0xff]
    %v262 = vld [vmem:[#allocation2 + $0x580] sm:$0xff]
    %v263 = vld [vmem:[#allocation2 + $0x588] sm:$0xff]
    %v264 = vld [vmem:[#allocation2 + $0x590] sm:$0xff]
    %v265 = vld [vmem:[#allocation2 + $0x598] sm:$0xff]
    %v266 = vld [vmem:[#allocation2 + $0x5a0] sm:$0xff]
    %v267 = vld [vmem:[#allocation2 + $0x5a8] sm:$0xff]
    %v268 = vld [vmem:[#allocation2 + $0x5b0] sm:$0xff]
    %v269 = vld [vmem:[#allocation2 + $0x5b8] sm:$0xff]
    %v270 = vld [vmem:[#allocation2 + $0x5c0] sm:$0xff]
    %v271 = vld [vmem:[#allocation2 + $0x5c8] sm:$0xff]
    %v272 = vld [vmem:[#allocation2 + $0x5d0] sm:$0xff]
    %v273 = vld [vmem:[#allocation2 + $0x5d8] sm:$0xff]
    %v274 = vld [vmem:[#allocation2 + $0x5e0] sm:$0xff]
    %v275 = vld [vmem:[#allocation2 + $0x5e8] sm:$0xff]
    %v276 = vld [vmem:[#allocation2 + $0x5f0] sm:$0xff]
    %v277 = vld [vmem:[#allocation2 + $0x5f8] sm:$0xff]
    %v278 = vld [vmem:[#allocation2 + $0x600] sm:$0xff]
    %v279 = vld [vmem:[#allocation2 + $0x608] sm:$0xff]
    %v280 = vld [vmem:[#allocation2 + $0x610] sm:$0xff]
    %v281 = vld [vmem:[#allocation2 + $0x618] sm:$0xff]
    %v282 = vld [vmem:[#allocation2 + $0x620] sm:$0xff]
    %v283 = vld [vmem:[#allocation2 + $0x628] sm:$0xff]
    %v284 = vld [vmem:[#allocation2 + $0x630] sm:$0xff]
    %v285 = vld [vmem:[#allocation2 + $0x638] sm:$0xff]
    %v286 = vld [vmem:[#allocation2 + $0x640] sm:$0xff]
    %v287 = vld [vmem:[#allocation2 + $0x648] sm:$0xff]
    %v288 = vld [vmem:[#allocation2 + $0x650] sm:$0xff]
    %v289 = vld [vmem:[#allocation2 + $0x658] sm:$0xff]
    %v290 = vld [vmem:[#allocation2 + $0x660] sm:$0xff]
    %v291 = vld [vmem:[#allocation2 + $0x668] sm:$0xff]
    %v292 = vld [vmem:[#allocation2 + $0x670] sm:$0xff]
    %v293 = vld [vmem:[#allocation2 + $0x678] sm:$0xff]
    %v294 = vld [vmem:[#allocation2 + $0x680] sm:$0xff]
    %v295 = vld [vmem:[#allocation2 + $0x688] sm:$0xff]
    %v296 = vld [vmem:[#allocation2 + $0x690] sm:$0xff]
    %v297 = vld [vmem:[#allocation2 + $0x698] sm:$0xff]
    %v298 = vld [vmem:[#allocation2 + $0x6a0] sm:$0xff]
    %v299 = vld [vmem:[#allocation2 + $0x6a8] sm:$0xff]
    %v300 = vld [vmem:[#allocation2 + $0x6b0] sm:$0xff]
    %v301 = vld [vmem:[#allocation2 + $0x6b8] sm:$0xff]
    %v302 = vld [vmem:[#allocation2 + $0x6c0] sm:$0xff]
    %v303 = vld [vmem:[#allocation2 + $0x6c8] sm:$0xff]
    %v304 = vld [vmem:[#allocation2 + $0x6d0] sm:$0xff]
    %v305 = vld [vmem:[#allocation2 + $0x6d8] sm:$0xff]
    %v306 = vld [vmem:[#allocation2 + $0x6e0] sm:$0xff]
    %v307 = vld [vmem:[#allocation2 + $0x6e8] sm:$0xff]
    %v308 = vld [vmem:[#allocation2 + $0x6f0] sm:$0xff]
    %v309 = vld [vmem:[#allocation2 + $0x6f8] sm:$0xff]
    %v310 = vld [vmem:[#allocation2 + $0x700] sm:$0xff]
    %v311 = vld [vmem:[#allocation2 + $0x708] sm:$0xff]
    %v312 = vld [vmem:[#allocation2 + $0x710] sm:$0xff]
    %v313 = vld [vmem:[#allocation2 + $0x718] sm:$0xff]
    %v314 = vld [vmem:[#allocation2 + $0x720] sm:$0xff]
    %v315 = vld [vmem:[#allocation2 + $0x728] sm:$0xff]
    %v316 = vld [vmem:[#allocation2 + $0x730] sm:$0xff]
    %v317 = vld [vmem:[#allocation2 + $0x738] sm:$0xff]
    %v318 = vld [vmem:[#allocation2 + $0x740] sm:$0xff]
    %v319 = vld [vmem:[#allocation2 + $0x748] sm:$0xff]
    %v320 = vld [vmem:[#allocation2 + $0x750] sm:$0xff]
    %v321 = vld [vmem:[#allocation2 + $0x758] sm:$0xff]
    %v322 = vld [vmem:[#allocation2 + $0x760] sm:$0xff]
    %v323 = vld [vmem:[#allocation2 + $0x768] sm:$0xff]
    %v324 = vld [vmem:[#allocation2 + $0x770] sm:$0xff]
    %v325 = vld [vmem:[#allocation2 + $0x778] sm:$0xff]
    %v326 = vld [vmem:[#allocation2 + $0x780] sm:$0xff]
    %v327 = vld [vmem:[#allocation2 + $0x788] sm:$0xff]
    %v328 = vld [vmem:[#allocation2 + $0x790] sm:$0xff]
    %v329 = vld [vmem:[#allocation2 + $0x798] sm:$0xff]
    %v330 = vld [vmem:[#allocation2 + $0x7a0] sm:$0xff]
    %v331 = vld [vmem:[#allocation2 + $0x7a8] sm:$0xff]
    %v332 = vld [vmem:[#allocation2 + $0x7b0] sm:$0xff]
    %v333 = vld [vmem:[#allocation2 + $0x7b8] sm:$0xff]
    %v334 = vld [vmem:[#allocation2 + $0x7c0] sm:$0xff]
    %v335 = vld [vmem:[#allocation2 + $0x7c8] sm:$0xff]
    %v336 = vld [vmem:[#allocation2 + $0x7d0] sm:$0xff]
    %v337 = vld [vmem:[#allocation2 + $0x7d8] sm:$0xff]
    %v338 = vld [vmem:[#allocation2 + $0x7e0] sm:$0xff]
    %v339 = vld [vmem:[#allocation2 + $0x7e8] sm:$0xff]
    %v340 = vld [vmem:[#allocation2 + $0x7f0] sm:$0xff]
    %v341 = vld [vmem:[#allocation2 + $0x7f8] sm:$0xff]
    %v342 = vld [vmem:[#allocation2 + $0x800] sm:$0xff]
    %v343 = vld [vmem:[#allocation2 + $0x808] sm:$0xff]
    %v344 = vld [vmem:[#allocation2 + $0x810] sm:$0xff]
    %v345 = vld [vmem:[#allocation2 + $0x818] sm:$0xff]
    %v346 = vld [vmem:[#allocation2 + $0x820] sm:$0xff]
    %v347 = vld [vmem:[#allocation2 + $0x828] sm:$0xff]
    %v348 = vld [vmem:[#allocation2 + $0x830] sm:$0xff]
    %v349 = vld [vmem:[#allocation2 + $0x838] sm:$0xff]
    %v350 = vld [vmem:[#allocation2 + $0x840] sm:$0xff]
    %v351 = vld [vmem:[#allocation2 + $0x848] sm:$0xff]
    %v352 = vld [vmem:[#allocation2 + $0x850] sm:$0xff]
    %v353 = vld [vmem:[#allocation2 + $0x858] sm:$0xff]
    %v354 = vld [vmem:[#allocation2 + $0x860] sm:$0xff]
    %v355 = vld [vmem:[#allocation2 + $0x868] sm:$0xff]
    %v356 = vld [vmem:[#allocation2 + $0x870] sm:$0xff]
    %v357 = vld [vmem:[#allocation2 + $0x878] sm:$0xff]
    %v358 = vld [vmem:[#allocation2 + $0x880] sm:$0xff]
    %v359 = vld [vmem:[#allocation2 + $0x888] sm:$0xff]
    %v360 = vld [vmem:[#allocation2 + $0x890] sm:$0xff]
    %v361 = vld [vmem:[#allocation2 + $0x898] sm:$0xff]
    %v362 = vld [vmem:[#allocation2 + $0x8a0] sm:$0xff]
    %v363 = vld [vmem:[#allocation2 + $0x8a8] sm:$0xff]
    %v364 = vld [vmem:[#allocation2 + $0x8b0] sm:$0xff]
    %v365 = vld [vmem:[#allocation2 + $0x8b8] sm:$0xff]
    %v366 = vld [vmem:[#allocation2 + $0x8c0] sm:$0xff]
    %v367 = vld [vmem:[#allocation2 + $0x8c8] sm:$0xff]
    %v368 = vld [vmem:[#allocation2 + $0x8d0] sm:$0xff]
    %v369 = vld [vmem:[#allocation2 + $0x8d8] sm:$0xff]
    %v370 = vld [vmem:[#allocation2 + $0x8e0] sm:$0xff]
    %v371 = vld [vmem:[#allocation2 + $0x8e8] sm:$0xff]
    %v372 = vld [vmem:[#allocation2 + $0x8f0] sm:$0xff]
    %v373 = vld [vmem:[#allocation2 + $0x8f8] sm:$0xff]
    %v374 = vld [vmem:[#allocation2 + $0x900] sm:$0xff]
    %v375 = vld [vmem:[#allocation2 + $0x908] sm:$0xff]
    %v376 = vld [vmem:[#allocation2 + $0x910] sm:$0xff]
    %v377 = vld [vmem:[#allocation2 + $0x918] sm:$0xff]
    %v378 = vld [vmem:[#allocation2 + $0x920] sm:$0xff]
    %v379 = vld [vmem:[#allocation2 + $0x928] sm:$0xff]
    %v380 = vld [vmem:[#allocation2 + $0x930] sm:$0xff]
    %v381 = vld [vmem:[#allocation2 + $0x938] sm:$0xff]
    %v382 = vld [vmem:[#allocation2 + $0x940] sm:$0xff]
    %v383 = vld [vmem:[#allocation2 + $0x948] sm:$0xff]
    %v384 = vld [vmem:[#allocation2 + $0x950] sm:$0xff]
    %v385 = vld [vmem:[#allocation2 + $0x958] sm:$0xff]
    %v386 = vld [vmem:[#allocation2 + $0x960] sm:$0xff]
    %v387 = vld [vmem:[#allocation2 + $0x968] sm:$0xff]
    %v388 = vld [vmem:[#allocation2 + $0x970] sm:$0xff]
    %v389 = vld [vmem:[#allocation2 + $0x978] sm:$0xff]
    %v390 = vld [vmem:[#allocation2 + $0x980] sm:$0xff]
    %v391 = vld [vmem:[#allocation2 + $0x988] sm:$0xff]
    %v392 = vld [vmem:[#allocation2 + $0x990] sm:$0xff]
    %v393 = vld [vmem:[#allocation2 + $0x998] sm:$0xff]
    %v394 = vld [vmem:[#allocation2 + $0x9a0] sm:$0xff]
    %v395 = vld [vmem:[#allocation2 + $0x9a8] sm:$0xff]
    %v396 = vld [vmem:[#allocation2 + $0x9b0] sm:$0xff]
    %v397 = vld [vmem:[#allocation2 + $0x9b8] sm:$0xff]
    %v398 = vld [vmem:[#allocation2 + $0x9c0] sm:$0xff]
    %v399 = vld [vmem:[#allocation2 + $0x9c8] sm:$0xff]
    %v400 = vld [vmem:[#allocation2 + $0x9d0] sm:$0xff]
    %v401 = vld [vmem:[#allocation2 + $0x9d8] sm:$0xff]
    %v402 = vld [vmem:[#allocation2 + $0x9e0] sm:$0xff]
    %v403 = vld [vmem:[#allocation2 + $0x9e8] sm:$0xff]
    %v404 = vld [vmem:[#allocation2 + $0x9f0] sm:$0xff]
    %v405 = vld [vmem:[#allocation2 + $0x9f8] sm:$0xff]
    %v406 = vld [vmem:[#allocation2 + $0xa00] sm:$0xff]
    %v407 = vld [vmem:[#allocation2 + $0xa08] sm:$0xff]
    %v408 = vld [vmem:[#allocation2 + $0xa10] sm:$0xff]
    %v409 = vld [vmem:[#allocation2 + $0xa18] sm:$0xff]
    %v410 = vld [vmem:[#allocation2 + $0xa20] sm:$0xff]
    %v411 = vld [vmem:[#allocation2 + $0xa28] sm:$0xff]
    %v412 = vld [vmem:[#allocation2 + $0xa30] sm:$0xff]
    %v413 = vld [vmem:[#allocation2 + $0xa38] sm:$0xff]
    %v414 = vld [vmem:[#allocation2 + $0xa40] sm:$0xff]
    %v415 = vld [vmem:[#allocation2 + $0xa48] sm:$0xff]
    %v416 = vld [vmem:[#allocation2 + $0xa50] sm:$0xff]
    %v417 = vld [vmem:[#allocation2 + $0xa58] sm:$0xff]
    %v418 = vld [vmem:[#allocation2 + $0xa60] sm:$0xff]
    %v419 = vld [vmem:[#allocation2 + $0xa68] sm:$0xff]
    %v420 = vld [vmem:[#allocation2 + $0xa70] sm:$0xff]
    %v421 = vld [vmem:[#allocation2 + $0xa78] sm:$0xff]
    %v422 = vld [vmem:[#allocation2 + $0xa80] sm:$0xff]
    %v423 = vld [vmem:[#allocation2 + $0xa88] sm:$0xff]
    %v424 = vld [vmem:[#allocation2 + $0xa90] sm:$0xff]
    %v425 = vld [vmem:[#allocation2 + $0xa98] sm:$0xff]
    %v426 = vld [vmem:[#allocation2 + $0xaa0] sm:$0xff]
    %v427 = vld [vmem:[#allocation2 + $0xaa8] sm:$0xff]
    %v428 = vld [vmem:[#allocation2 + $0xab0] sm:$0xff]
    %v429 = vld [vmem:[#allocation2 + $0xab8] sm:$0xff]
    %v430 = vld [vmem:[#allocation2 + $0xac0] sm:$0xff]
    %v431 = vld [vmem:[#allocation2 + $0xac8] sm:$0xff]
    %v432 = vld [vmem:[#allocation2 + $0xad0] sm:$0xff]
    %v433 = vld [vmem:[#allocation2 + $0xad8] sm:$0xff]
    %v434 = vld [vmem:[#allocation2 + $0xae0] sm:$0xff]
    %v435 = vld [vmem:[#allocation2 + $0xae8] sm:$0xff]
    %v436 = vld [vmem:[#allocation2 + $0xaf0] sm:$0xff]
    %v437 = vld [vmem:[#allocation2 + $0xaf8] sm:$0xff]
    %v438 = vld [vmem:[#allocation2 + $0xb00] sm:$0xff]
    %v439 = vld [vmem:[#allocation2 + $0xb08] sm:$0xff]
    %v440 = vld [vmem:[#allocation2 + $0xb10] sm:$0xff]
    %v441 = vld [vmem:[#allocation2 + $0xb18] sm:$0xff]
    %v442 = vld [vmem:[#allocation2 + $0xb20] sm:$0xff]
    %v443 = vld [vmem:[#allocation2 + $0xb28] sm:$0xff]
    %v444 = vld [vmem:[#allocation2 + $0xb30] sm:$0xff]
    %v445 = vld [vmem:[#allocation2 + $0xb38] sm:$0xff]
    %v446 = vld [vmem:[#allocation2 + $0xb40] sm:$0xff]
    %v447 = vld [vmem:[#allocation2 + $0xb48] sm:$0xff]
    %v448 = vld [vmem:[#allocation2 + $0xb50] sm:$0xff]
    %v449 = vld [vmem:[#allocation2 + $0xb58] sm:$0xff]
    %v450 = vld [vmem:[#allocation2 + $0xb60] sm:$0xff]
    %v451 = vld [vmem:[#allocation2 + $0xb68] sm:$0xff]
    %v452 = vld [vmem:[#allocation2 + $0xb70] sm:$0xff]
    %v453 = vld [vmem:[#allocation2 + $0xb78] sm:$0xff]
    %v454 = vld [vmem:[#allocation2 + $0xb80] sm:$0xff]
    %v455 = vld [vmem:[#allocation2 + $0xb88] sm:$0xff]
    %v456 = vld [vmem:[#allocation2 + $0xb90] sm:$0xff]
    %v457 = vld [vmem:[#allocation2 + $0xb98] sm:$0xff]
    %v458 = vld [vmem:[#allocation2 + $0xba0] sm:$0xff]
    %v459 = vld [vmem:[#allocation2 + $0xba8] sm:$0xff]
    %v460 = vld [vmem:[#allocation2 + $0xbb0] sm:$0xff]
    %v461 = vld [vmem:[#allocation2 + $0xbb8] sm:$0xff]
    %v462 = vld [vmem:[#allocation2 + $0xbc0] sm:$0xff]
    %v463 = vld [vmem:[#allocation2 + $0xbc8] sm:$0xff]
    %v464 = vld [vmem:[#allocation2 + $0xbd0] sm:$0xff]
    %v465 = vld [vmem:[#allocation2 + $0xbd8] sm:$0xff]
    %v466 = vld [vmem:[#allocation2 + $0xbe0] sm:$0xff]
    %v467 = vld [vmem:[#allocation2 + $0xbe8] sm:$0xff]
    %v468 = vld [vmem:[#allocation2 + $0xbf0] sm:$0xff]
    %v469 = vld [vmem:[#allocation2 + $0xbf8] sm:$0xff]
    %v470 = vld [vmem:[#allocation2 + $0xc00] sm:$0xff]
    %v471 = vld [vmem:[#allocation2 + $0xc08] sm:$0xff]
    %v472 = vld [vmem:[#allocation2 + $0xc10] sm:$0xff]
    %v473 = vld [vmem:[#allocation2 + $0xc18] sm:$0xff]
    %v474 = vld [vmem:[#allocation2 + $0xc20] sm:$0xff]
    %v475 = vld [vmem:[#allocation2 + $0xc28] sm:$0xff]
    %v476 = vld [vmem:[#allocation2 + $0xc30] sm:$0xff]
    %v477 = vld [vmem:[#allocation2 + $0xc38] sm:$0xff]
    %v478 = vld [vmem:[#allocation2 + $0xc40] sm:$0xff]
    %v479 = vld [vmem:[#allocation2 + $0xc48] sm:$0xff]
    %v480 = vld [vmem:[#allocation2 + $0xc50] sm:$0xff]
    %v481 = vld [vmem:[#allocation2 + $0xc58] sm:$0xff]
    %v482 = vld [vmem:[#allocation2 + $0xc60] sm:$0xff]
    %v483 = vld [vmem:[#allocation2 + $0xc68] sm:$0xff]
    %v484 = vld [vmem:[#allocation2 + $0xc70] sm:$0xff]
    %v485 = vld [vmem:[#allocation2 + $0xc78] sm:$0xff]
    %v486 = vld [vmem:[#allocation2 + $0xc80] sm:$0xff]
    %v487 = vld [vmem:[#allocation2 + $0xc88] sm:$0xff]
    %v488 = vld [vmem:[#allocation2 + $0xc90] sm:$0xff]
    %v489 = vld [vmem:[#allocation2 + $0xc98] sm:$0xff]
    %v490 = vld [vmem:[#allocation2 + $0xca0] sm:$0xff]
    %v491 = vld [vmem:[#allocation2 + $0xca8] sm:$0xff]
    %v492 = vld [vmem:[#allocation2 + $0xcb0] sm:$0xff]
    %v493 = vld [vmem:[#allocation2 + $0xcb8] sm:$0xff]
    %v494 = vld [vmem:[#allocation2 + $0xcc0] sm:$0xff]
    %v495 = vld [vmem:[#allocation2 + $0xcc8] sm:$0xff]
    %v496 = vld [vmem:[#allocation2 + $0xcd0] sm:$0xff]
    %v497 = vld [vmem:[#allocation2 + $0xcd8] sm:$0xff]
    %v498 = vld [vmem:[#allocation2 + $0xce0] sm:$0xff]
    %v499 = vld [vmem:[#allocation2 + $0xce8] sm:$0xff]
    %v500 = vld [vmem:[#allocation2 + $0xcf0] sm:$0xff]
    %v501 = vld [vmem:[#allocation2 + $0xcf8] sm:$0xff]
    %v502 = vld [vmem:[#allocation2 + $0xd00] sm:$0xff]
    %v503 = vld [vmem:[#allocation2 + $0xd08] sm:$0xff]
    %v504 = vld [vmem:[#allocation2 + $0xd10] sm:$0xff]
    %v505 = vld [vmem:[#allocation2 + $0xd18] sm:$0xff]
    %v506 = vld [vmem:[#allocation2 + $0xd20] sm:$0xff]
    %v507 = vld [vmem:[#allocation2 + $0xd28] sm:$0xff]
    %v508 = vld [vmem:[#allocation2 + $0xd30] sm:$0xff]
    %v509 = vld [vmem:[#allocation2 + $0xd38] sm:$0xff]
    %v510 = vld [vmem:[#allocation2 + $0xd40] sm:$0xff]
    %v511 = vld [vmem:[#allocation2 + $0xd48] sm:$0xff]
    %v512 = vld [vmem:[#allocation2 + $0xd50] sm:$0xff]
    %v513 = vld [vmem:[#allocation2 + $0xd58] sm:$0xff]
    %v514 = vld [vmem:[#allocation2 + $0xd60] sm:$0xff]
    %v515 = vld [vmem:[#allocation2 + $0xd68] sm:$0xff]
    %v516 = vld [vmem:[#allocation2 + $0xd70] sm:$0xff]
    %v517 = vld [vmem:[#allocation2 + $0xd78] sm:$0xff]
    %v518 = vld [vmem:[#allocation2 + $0xd80] sm:$0xff]
    %v519 = vld [vmem:[#allocation2 + $0xd88] sm:$0xff]
    %v520 = vld [vmem:[#allocation2 + $0xd90] sm:$0xff]
    %v521 = vld [vmem:[#allocation2 + $0xd98] sm:$0xff]
    %v522 = vld [vmem:[#allocation2 + $0xda0] sm:$0xff]
    %v523 = vld [vmem:[#allocation2 + $0xda8] sm:$0xff]
    %v524 = vld [vmem:[#allocation2 + $0xdb0] sm:$0xff]
    %v525 = vld [vmem:[#allocation2 + $0xdb8] sm:$0xff]
    %v526 = vld [vmem:[#allocation2 + $0xdc0] sm:$0xff]
    %v527 = vld [vmem:[#allocation2 + $0xdc8] sm:$0xff]
    %v528 = vld [vmem:[#allocation2 + $0xdd0] sm:$0xff]
    %v529 = vld [vmem:[#allocation2 + $0xdd8] sm:$0xff]
    %v530 = vld [vmem:[#allocation2 + $0xde0] sm:$0xff]
    %v531 = vld [vmem:[#allocation2 + $0xde8] sm:$0xff]
    %v532 = vld [vmem:[#allocation2 + $0xdf0] sm:$0xff]
    %v533 = vld [vmem:[#allocation2 + $0xdf8] sm:$0xff]
    %v534 = vld [vmem:[#allocation2 + $0xe00] sm:$0xff]
    %v535 = vld [vmem:[#allocation2 + $0xe08] sm:$0xff]
    %v536 = vld [vmem:[#allocation2 + $0xe10] sm:$0xff]
    %v537 = vld [vmem:[#allocation2 + $0xe18] sm:$0xff]
    %v538 = vld [vmem:[#allocation2 + $0xe20] sm:$0xff]
    %v539 = vld [vmem:[#allocation2 + $0xe28] sm:$0xff]
    %v540 = vld [vmem:[#allocation2 + $0xe30] sm:$0xff]
    %v541 = vld [vmem:[#allocation2 + $0xe38] sm:$0xff]
    %v542 = vld [vmem:[#allocation2 + $0xe40] sm:$0xff]
    %v543 = vld [vmem:[#allocation2 + $0xe48] sm:$0xff]
    %v544 = vld [vmem:[#allocation2 + $0xe50] sm:$0xff]
    %v545 = vld [vmem:[#allocation2 + $0xe58] sm:$0xff]
    %v546 = vld [vmem:[#allocation2 + $0xe60] sm:$0xff]
    %v547 = vld [vmem:[#allocation2 + $0xe68] sm:$0xff]
    %v548 = vld [vmem:[#allocation2 + $0xe70] sm:$0xff]
    %v549 = vld [vmem:[#allocation2 + $0xe78] sm:$0xff]
    %v550 = vld [vmem:[#allocation2 + $0xe80] sm:$0xff]
    %v551 = vld [vmem:[#allocation2 + $0xe88] sm:$0xff]
    %v552 = vld [vmem:[#allocation2 + $0xe90] sm:$0xff]
    %v553 = vld [vmem:[#allocation2 + $0xe98] sm:$0xff]
    %v554 = vld [vmem:[#allocation2 + $0xea0] sm:$0xff]
    %v555 = vld [vmem:[#allocation2 + $0xea8] sm:$0xff]
    %v556 = vld [vmem:[#allocation2 + $0xeb0] sm:$0xff]
    %v557 = vld [vmem:[#allocation2 + $0xeb8] sm:$0xff]
    %v558 = vld [vmem:[#allocation2 + $0xec0] sm:$0xff]
    %v559 = vld [vmem:[#allocation2 + $0xec8] sm:$0xff]
    %v560 = vld [vmem:[#allocation2 + $0xed0] sm:$0xff]
    %v561 = vld [vmem:[#allocation2 + $0xed8] sm:$0xff]
    %v562 = vld [vmem:[#allocation2 + $0xee0] sm:$0xff]
    %v563 = vld [vmem:[#allocation2 + $0xee8] sm:$0xff]
    %v564 = vld [vmem:[#allocation2 + $0xef0] sm:$0xff]
    %v565 = vld [vmem:[#allocation2 + $0xef8] sm:$0xff]
    %v566 = vld [vmem:[#allocation2 + $0xf00] sm:$0xff]
    %v567 = vld [vmem:[#allocation2 + $0xf08] sm:$0xff]
    %v568 = vld [vmem:[#allocation2 + $0xf10] sm:$0xff]
    %v569 = vld [vmem:[#allocation2 + $0xf18] sm:$0xff]
    %v570 = vld [vmem:[#allocation2 + $0xf20] sm:$0xff]
    %v571 = vld [vmem:[#allocation2 + $0xf28] sm:$0xff]
    %v572 = vld [vmem:[#allocation2 + $0xf30] sm:$0xff]
    %v573 = vld [vmem:[#allocation2 + $0xf38] sm:$0xff]
    %v574 = vld [vmem:[#allocation2 + $0xf40] sm:$0xff]
    %v575 = vld [vmem:[#allocation2 + $0xf48] sm:$0xff]
    %v576 = vld [vmem:[#allocation2 + $0xf50] sm:$0xff]
    %v577 = vld [vmem:[#allocation2 + $0xf58] sm:$0xff]
    %v578 = vld [vmem:[#allocation2 + $0xf60] sm:$0xff]
    %v579 = vld [vmem:[#allocation2 + $0xf68] sm:$0xff]
    %v580 = vld [vmem:[#allocation2 + $0xf70] sm:$0xff]
    %v581 = vld [vmem:[#allocation2 + $0xf78] sm:$0xff]
    %v582 = vld [vmem:[#allocation2 + $0xf80] sm:$0xff]
    %v583 = vld [vmem:[#allocation2 + $0xf88] sm:$0xff]
    %v584 = vld [vmem:[#allocation2 + $0xf90] sm:$0xff]
    %v585 = vld [vmem:[#allocation2 + $0xf98] sm:$0xff]
    %v586 = vld [vmem:[#allocation2 + $0xfa0] sm:$0xff]
    %v587 = vld [vmem:[#allocation2 + $0xfa8] sm:$0xff]
    %v588 = vld [vmem:[#allocation2 + $0xfb0] sm:$0xff]
    %v589 = vld [vmem:[#allocation2 + $0xfb8] sm:$0xff]
    %v590 = vld [vmem:[#allocation2 + $0xfc0] sm:$0xff]
    %v591 = vld [vmem:[#allocation2 + $0xfc8] sm:$0xff]
    %v592 = vld [vmem:[#allocation2 + $0xfd0] sm:$0xff]
    %v593 = vld [vmem:[#allocation2 + $0xfd8] sm:$0xff]
    %v594 = vld [vmem:[#allocation2 + $0xfe0] sm:$0xff]
    %v595 = vld [vmem:[#allocation2 + $0xfe8] sm:$0xff]
    %v596 = vld [vmem:[#allocation2 + $0xff0] sm:$0xff]
    %v597 = vld [vmem:[#allocation2 + $0xff8] sm:$0xff]
    %598 = vmatprep.subr.mxu0 0.0
    %599 = vmatpush1.msra.mxu0 %v86
    %600 = vmatprep.subr.mxu0 0.0
    %601 = vmatpush1.msra.mxu0 %v87
    %602 = vmatprep.subr.mxu0 0.0
    %603 = vmatpush1.msra.mxu0 %v88
    %604 = vmatprep.subr.mxu0 0.0
    %605 = vmatpush1.msra.mxu0 %v89
    %606 = vmatprep.subr.mxu0 0.0
    %607 = vmatpush1.msra.mxu0 %v90
    %608 = vmatprep.subr.mxu0 0.0
    %609 = vmatpush1.msra.mxu0 %v91
    %610 = vmatprep.subr.mxu0 0.0
    %611 = vmatpush1.msra.mxu0 %v92
    %612 = vmatprep.subr.mxu0 0.0
    %613 = vmatpush1.msra.mxu0 %v93
    %614 = vmatprep.subr.mxu0 0.0
    %615 = vmatpush1.msra.mxu0 %v94
    %616 = vmatprep.subr.mxu0 0.0
    %617 = vmatpush1.msra.mxu0 %v95
    %618 = vmatprep.subr.mxu0 0.0
    %619 = vmatpush1.msra.mxu0 %v96
    %620 = vmatprep.subr.mxu0 0.0
    %621 = vmatpush1.msra.mxu0 %v97
    %622 = vmatprep.subr.mxu0 0.0
    %623 = vmatpush1.msra.mxu0 %v98
    %624 = vmatprep.subr.mxu0 0.0
    %625 = vmatpush1.msra.mxu0 %v99
    %626 = vmatprep.subr.mxu0 0.0
    %627 = vmatpush1.msra.mxu0 %v100
    %628 = vmatprep.subr.mxu0 0.0
    %629 = vmatpush1.msra.mxu0 %v101
    %630 = vmatprep.subr.mxu0 0.0
    %631 = vmatpush1.msra.mxu0 %v102
    %632 = vmatprep.subr.mxu0 0.0
    %633 = vmatpush1.msra.mxu0 %v103
    %634 = vmatprep.subr.mxu0 0.0
    %635 = vmatpush1.msra.mxu0 %v104
    %636 = vmatprep.subr.mxu0 0.0
    %637 = vmatpush1.msra.mxu0 %v105
    %638 = vmatprep.subr.mxu0 0.0
    %639 = vmatpush1.msra.mxu0 %v106
    %640 = vmatprep.subr.mxu0 0.0
    %641 = vmatpush1.msra.mxu0 %v107
    %642 = vmatprep.subr.mxu0 0.0
    %643 = vmatpush1.msra.mxu0 %v108
    %644 = vmatprep.subr.mxu0 0.0
    %645 = vmatpush1.msra.mxu0 %v109
    %646 = vmatprep.subr.mxu0 0.0
    %647 = vmatpush1.msra.mxu0 %v110
    %648 = vmatprep.subr.mxu0 0.0
    %649 = vmatpush1.msra.mxu0 %v111
    %650 = vmatprep.subr.mxu0 0.0
    %651 = vmatpush1.msra.mxu0 %v112
    %652 = vmatprep.subr.mxu0 0.0
    %653 = vmatpush1.msra.mxu0 %v113
    %654 = vmatprep.subr.mxu0 0.0
    %655 = vmatpush1.msra.mxu0 %v114
    %656 = vmatprep.subr.mxu0 0.0
    %657 = vmatpush1.msra.mxu0 %v115
    %658 = vmatprep.subr.mxu0 0.0
    %659 = vmatpush1.msra.mxu0 %v116
    %660 = vmatprep.subr.mxu0 0.0
    %661 = vmatpush1.msra.mxu0 %v117
    %662 = vmatprep.mubr.f32.mxu0 %v55
    %663 = vmatmul.mubr.f32.gmra.mrb[0].mxu0 %v54
    %v664 = vpop.f32.mrb[0].mxu0
    %v665 = vadd.f32 0.0, %v664
    %v666 = vpop.f32.mrb[0].mxu0
    %667 = vdwg.mxu0
    %668 = vmatprep.subr.mxu0 0.0
    %669 = vmatpush1.msra.mxu0 %v118
    %670 = vmatprep.subr.mxu0 0.0
    %671 = vmatpush1.msra.mxu0 %v119
    %672 = vmatprep.subr.mxu0 0.0
    %673 = vmatpush1.msra.mxu0 %v120
    %674 = vmatprep.subr.mxu0 0.0
    %675 = vmatpush1.msra.mxu0 %v121
    %676 = vmatprep.subr.mxu0 0.0
    %677 = vmatpush1.msra.mxu0 %v122
    %678 = vmatprep.subr.mxu0 0.0
    %679 = vmatpush1.msra.mxu0 %v123
    %680 = vmatprep.subr.mxu0 0.0
    %681 = vmatpush1.msra.mxu0 %v124
    %682 = vmatprep.subr.mxu0 0.0
    %683 = vmatpush1.msra.mxu0 %v125
    %684 = vmatprep.subr.mxu0 0.0
    %685 = vmatpush1.msra.mxu0 %v126
    %686 = vmatprep.subr.mxu0 0.0
    %687 = vmatpush1.msra.mxu0 %v127
    %688 = vmatprep.subr.mxu0 0.0
    %689 = vmatpush1.msra.mxu0 %v128
    %690 = vmatprep.subr.mxu0 0.0
    %691 = vmatpush1.msra.mxu0 %v129
    %692 = vmatprep.subr.mxu0 0.0
    %693 = vmatpush1.msra.mxu0 %v130
    %694 = vmatprep.subr.mxu0 0.0
    %695 = vmatpush1.msra.mxu0 %v131
    %696 = vmatprep.subr.mxu0 0.0
    %697 = vmatpush1.msra.mxu0 %v132
    %698 = vmatprep.subr.mxu0 0.0
    %699 = vmatpush1.msra.mxu0 %v133
    %700 = vmatprep.subr.mxu0 0.0
    %701 = vmatpush1.msra.mxu0 %v134
    %702 = vmatprep.subr.mxu0 0.0
    %703 = vmatpush1.msra.mxu0 %v135
    %704 = vmatprep.subr.mxu0 0.0
    %705 = vmatpush1.msra.mxu0 %v136
    %706 = vmatprep.subr.mxu0 0.0
    %707 = vmatpush1.msra.mxu0 %v137
    %708 = vmatprep.subr.mxu0 0.0
    %709 = vmatpush1.msra.mxu0 %v138
    %710 = vmatprep.subr.mxu0 0.0
    %711 = vmatpush1.msra.mxu0 %v139
    %712 = vmatprep.subr.mxu0 0.0
    %713 = vmatpush1.msra.mxu0 %v140
    %714 = vmatprep.subr.mxu0 0.0
    %715 = vmatpush1.msra.mxu0 %v141
    %716 = vmatprep.subr.mxu0 0.0
    %717 = vmatpush1.msra.mxu0 %v142
    %718 = vmatprep.subr.mxu0 0.0
    %719 = vmatpush1.msra.mxu0 %v143
    %720 = vmatprep.subr.mxu0 0.0
    %721 = vmatpush1.msra.mxu0 %v144
    %722 = vmatprep.subr.mxu0 0.0
    %723 = vmatpush1.msra.mxu0 %v145
    %724 = vmatprep.subr.mxu0 0.0
    %725 = vmatpush1.msra.mxu0 %v146
    %726 = vmatprep.subr.mxu0 0.0
    %727 = vmatpush1.msra.mxu0 %v147
    %728 = vmatprep.subr.mxu0 0.0
    %729 = vmatpush1.msra.mxu0 %v148
    %730 = vmatprep.subr.mxu0 0.0
    %731 = vmatpush1.msra.mxu0 %v149
    %732 = vmatprep.mubr.f32.mxu0 %v57
    %733 = vmatmul.mubr.f32.gmra.mrb[0].mxu0 %v56
    %v734 = vpop.f32.mrb[0].mxu0
    %v735 = vadd.f32 %v665, %v734
    %v736 = vpop.f32.mrb[0].mxu0
    %737 = vdwg.mxu0
    %738 = vmatprep.subr.mxu0 0.0
    %739 = vmatpush1.msra.mxu0 %v150
    %740 = vmatprep.subr.mxu0 0.0
    %741 = vmatpush1.msra.mxu0 %v151
    %742 = vmatprep.subr.mxu0 0.0
    %743 = vmatpush1.msra.mxu0 %v152
    %744 = vmatprep.subr.mxu0 0.0
    %745 = vmatpush1.msra.mxu0 %v153
    %746 = vmatprep.subr.mxu0 0.0
    %747 = vmatpush1.msra.mxu0 %v154
    %748 = vmatprep.subr.mxu0 0.0
    %749 = vmatpush1.msra.mxu0 %v155
    %750 = vmatprep.subr.mxu0 0.0
    %751 = vmatpush1.msra.mxu0 %v156
    %752 = vmatprep.subr.mxu0 0.0
    %753 = vmatpush1.msra.mxu0 %v157
    %754 = vmatprep.subr.mxu0 0.0
    %755 = vmatpush1.msra.mxu0 %v158
    %756 = vmatprep.subr.mxu0 0.0
    %757 = vmatpush1.msra.mxu0 %v159
    %758 = vmatprep.subr.mxu0 0.0
    %759 = vmatpush1.msra.mxu0 %v160
    %760 = vmatprep.subr.mxu0 0.0
    %761 = vmatpush1.msra.mxu0 %v161
    %762 = vmatprep.subr.mxu0 0.0
    %763 = vmatpush1.msra.mxu0 %v162
    %764 = vmatprep.subr.mxu0 0.0
    %765 = vmatpush1.msra.mxu0 %v163
    %766 = vmatprep.subr.mxu0 0.0
    %767 = vmatpush1.msra.mxu0 %v164
    %768 = vmatprep.subr.mxu0 0.0
    %769 = vmatpush1.msra.mxu0 %v165
    %770 = vmatprep.subr.mxu0 0.0
    %771 = vmatpush1.msra.mxu0 %v166
    %772 = vmatprep.subr.mxu0 0.0
    %773 = vmatpush1.msra.mxu0 %v167
    %774 = vmatprep.subr.mxu0 0.0
    %775 = vmatpush1.msra.mxu0 %v168
    %776 = vmatprep.subr.mxu0 0.0
    %777 = vmatpush1.msra.mxu0 %v169
    %778 = vmatprep.subr.mxu0 0.0
    %779 = vmatpush1.msra.mxu0 %v170
    %780 = vmatprep.subr.mxu0 0.0
    %781 = vmatpush1.msra.mxu0 %v171
    %782 = vmatprep.subr.mxu0 0.0
    %783 = vmatpush1.msra.mxu0 %v172
    %784 = vmatprep.subr.mxu0 0.0
    %785 = vmatpush1.msra.mxu0 %v173
    %786 = vmatprep.subr.mxu0 0.0
    %787 = vmatpush1.msra.mxu0 %v174
    %788 = vmatprep.subr.mxu0 0.0
    %789 = vmatpush1.msra.mxu0 %v175
    %790 = vmatprep.subr.mxu0 0.0
    %791 = vmatpush1.msra.mxu0 %v176
    %792 = vmatprep.subr.mxu0 0.0
    %793 = vmatpush1.msra.mxu0 %v177
    %794 = vmatprep.subr.mxu0 0.0
    %795 = vmatpush1.msra.mxu0 %v178
    %796 = vmatprep.subr.mxu0 0.0
    %797 = vmatpush1.msra.mxu0 %v179
    %798 = vmatprep.subr.mxu0 0.0
    %799 = vmatpush1.msra.mxu0 %v180
    %800 = vmatprep.subr.mxu0 0.0
    %801 = vmatpush1.msra.mxu0 %v181
    %802 = vmatprep.mubr.f32.mxu0 %v59
    %803 = vmatmul.mubr.f32.gmra.mrb[0].mxu0 %v58
    %v804 = vpop.f32.mrb[0].mxu0
    %v805 = vadd.f32 %v735, %v804
    %v806 = vpop.f32.mrb[0].mxu0
    %807 = vdwg.mxu0
    %808 = vmatprep.subr.mxu0 0.0
    %809 = vmatpush1.msra.mxu0 %v182
    %810 = vmatprep.subr.mxu0 0.0
    %811 = vmatpush1.msra.mxu0 %v183
    %812 = vmatprep.subr.mxu0 0.0
    %813 = vmatpush1.msra.mxu0 %v184
    %814 = vmatprep.subr.mxu0 0.0
    %815 = vmatpush1.msra.mxu0 %v185
    %816 = vmatprep.subr.mxu0 0.0
    %817 = vmatpush1.msra.mxu0 %v186
    %818 = vmatprep.subr.mxu0 0.0
    %819 = vmatpush1.msra.mxu0 %v187
    %820 = vmatprep.subr.mxu0 0.0
    %821 = vmatpush1.msra.mxu0 %v188
    %822 = vmatprep.subr.mxu0 0.0
    %823 = vmatpush1.msra.mxu0 %v189
    %824 = vmatprep.subr.mxu0 0.0
    %825 = vmatpush1.msra.mxu0 %v190
    %826 = vmatprep.subr.mxu0 0.0
    %827 = vmatpush1.msra.mxu0 %v191
    %828 = vmatprep.subr.mxu0 0.0
    %829 = vmatpush1.msra.mxu0 %v192
    %830 = vmatprep.subr.mxu0 0.0
    %831 = vmatpush1.msra.mxu0 %v193
    %832 = vmatprep.subr.mxu0 0.0
    %833 = vmatpush1.msra.mxu0 %v194
    %834 = vmatprep.subr.mxu0 0.0
    %835 = vmatpush1.msra.mxu0 %v195
    %836 = vmatprep.subr.mxu0 0.0
    %837 = vmatpush1.msra.mxu0 %v196
    %838 = vmatprep.subr.mxu0 0.0
    %839 = vmatpush1.msra.mxu0 %v197
    %840 = vmatprep.subr.mxu0 0.0
    %841 = vmatpush1.msra.mxu0 %v198
    %842 = vmatprep.subr.mxu0 0.0
    %843 = vmatpush1.msra.mxu0 %v199
    %844 = vmatprep.subr.mxu0 0.0
    %845 = vmatpush1.msra.mxu0 %v200
    %846 = vmatprep.subr.mxu0 0.0
    %847 = vmatpush1.msra.mxu0 %v201
    %848 = vmatprep.subr.mxu0 0.0
    %849 = vmatpush1.msra.mxu0 %v202
    %850 = vmatprep.subr.mxu0 0.0
    %851 = vmatpush1.msra.mxu0 %v203
    %852 = vmatprep.subr.mxu0 0.0
    %853 = vmatpush1.msra.mxu0 %v204
    %854 = vmatprep.subr.mxu0 0.0
    %855 = vmatpush1.msra.mxu0 %v205
    %856 = vmatprep.subr.mxu0 0.0
    %857 = vmatpush1.msra.mxu0 %v206
    %858 = vmatprep.subr.mxu0 0.0
    %859 = vmatpush1.msra.mxu0 %v207
    %860 = vmatprep.subr.mxu0 0.0
    %861 = vmatpush1.msra.mxu0 %v208
    %862 = vmatprep.subr.mxu0 0.0
    %863 = vmatpush1.msra.mxu0 %v209
    %864 = vmatprep.subr.mxu0 0.0
    %865 = vmatpush1.msra.mxu0 %v210
    %866 = vmatprep.subr.mxu0 0.0
    %867 = vmatpush1.msra.mxu0 %v211
    %868 = vmatprep.subr.mxu0 0.0
    %869 = vmatpush1.msra.mxu0 %v212
    %870 = vmatprep.subr.mxu0 0.0
    %871 = vmatpush1.msra.mxu0 %v213
    %872 = vmatprep.mubr.f32.mxu0 %v61
    %873 = vmatmul.mubr.f32.gmra.mrb[0].mxu0 %v60
    %v874 = vpop.f32.mrb[0].mxu0
    %v875 = vadd.f32 %v805, %v874
    %v876 = vpop.f32.mrb[0].mxu0
    %877 = vdwg.mxu0
    %878 = vmatprep.subr.mxu0 0.0
    %879 = vmatpush1.msra.mxu0 %v214
    %880 = vmatprep.subr.mxu0 0.0
    %881 = vmatpush1.msra.mxu0 %v215
    %882 = vmatprep.subr.mxu0 0.0
    %883 = vmatpush1.msra.mxu0 %v216
    %884 = vmatprep.subr.mxu0 0.0
    %885 = vmatpush1.msra.mxu0 %v217
    %886 = vmatprep.subr.mxu0 0.0
    %887 = vmatpush1.msra.mxu0 %v218
    %888 = vmatprep.subr.mxu0 0.0
    %889 = vmatpush1.msra.mxu0 %v219
    %890 = vmatprep.subr.mxu0 0.0
    %891 = vmatpush1.msra.mxu0 %v220
    %892 = vmatprep.subr.mxu0 0.0
    %893 = vmatpush1.msra.mxu0 %v221
    %894 = vmatprep.subr.mxu0 0.0
    %895 = vmatpush1.msra.mxu0 %v222
    %896 = vmatprep.subr.mxu0 0.0
    %897 = vmatpush1.msra.mxu0 %v223
    %898 = vmatprep.subr.mxu0 0.0
    %899 = vmatpush1.msra.mxu0 %v224
    %900 = vmatprep.subr.mxu0 0.0
    %901 = vmatpush1.msra.mxu0 %v225
    %902 = vmatprep.subr.mxu0 0.0
    %903 = vmatpush1.msra.mxu0 %v226
    %904 = vmatprep.subr.mxu0 0.0
    %905 = vmatpush1.msra.mxu0 %v227
    %906 = vmatprep.subr.mxu0 0.0
    %907 = vmatpush1.msra.mxu0 %v228
    %908 = vmatprep.subr.mxu0 0.0
    %909 = vmatpush1.msra.mxu0 %v229
    %910 = vmatprep.subr.mxu0 0.0
    %911 = vmatpush1.msra.mxu0 %v230
    %912 = vmatprep.subr.mxu0 0.0
    %913 = vmatpush1.msra.mxu0 %v231
    %914 = vmatprep.subr.mxu0 0.0
    %915 = vmatpush1.msra.mxu0 %v232
    %916 = vmatprep.subr.mxu0 0.0
    %917 = vmatpush1.msra.mxu0 %v233
    %918 = vmatprep.subr.mxu0 0.0
    %919 = vmatpush1.msra.mxu0 %v234
    %920 = vmatprep.subr.mxu0 0.0
    %921 = vmatpush1.msra.mxu0 %v235
    %922 = vmatprep.subr.mxu0 0.0
    %923 = vmatpush1.msra.mxu0 %v236
    %924 = vmatprep.subr.mxu0 0.0
    %925 = vmatpush1.msra.mxu0 %v237
    %926 = vmatprep.subr.mxu0 0.0
    %927 = vmatpush1.msra.mxu0 %v238
    %928 = vmatprep.subr.mxu0 0.0
    %929 = vmatpush1.msra.mxu0 %v239
    %930 = vmatprep.subr.mxu0 0.0
    %931 = vmatpush1.msra.mxu0 %v240
    %932 = vmatprep.subr.mxu0 0.0
    %933 = vmatpush1.msra.mxu0 %v241
    %934 = vmatprep.subr.mxu0 0.0
    %935 = vmatpush1.msra.mxu0 %v242
    %936 = vmatprep.subr.mxu0 0.0
    %937 = vmatpush1.msra.mxu0 %v243
    %938 = vmatprep.subr.mxu0 0.0
    %939 = vmatpush1.msra.mxu0 %v244
    %940 = vmatprep.subr.mxu0 0.0
    %941 = vmatpush1.msra.mxu0 %v245
    %942 = vmatprep.mubr.f32.mxu0 %v63
    %943 = vmatmul.mubr.f32.gmra.mrb[0].mxu0 %v62
    %v944 = vpop.f32.mrb[0].mxu0
    %v945 = vadd.f32 0.0, %v944
    %v946 = vpop.f32.mrb[0].mxu0
    %947 = vdwg.mxu0
    %948 = vmatprep.subr.mxu0 0.0
    %949 = vmatpush1.msra.mxu0 %v246
    %950 = vmatprep.subr.mxu0 0.0
    %951 = vmatpush1.msra.mxu0 %v247
    %952 = vmatprep.subr.mxu0 0.0
    %953 = vmatpush1.msra.mxu0 %v248
    %954 = vmatprep.subr.mxu0 0.0
    %955 = vmatpush1.msra.mxu0 %v249
    %956 = vmatprep.subr.mxu0 0.0
    %957 = vmatpush1.msra.mxu0 %v250
    %958 = vmatprep.subr.mxu0 0.0
    %959 = vmatpush1.msra.mxu0 %v251
    %960 = vmatprep.subr.mxu0 0.0
    %961 = vmatpush1.msra.mxu0 %v252
    %962 = vmatprep.subr.mxu0 0.0
    %963 = vmatpush1.msra.mxu0 %v253
    %964 = vmatprep.subr.mxu0 0.0
    %965 = vmatpush1.msra.mxu0 %v254
    %966 = vmatprep.subr.mxu0 0.0
    %967 = vmatpush1.msra.mxu0 %v255
    %968 = vmatprep.subr.mxu0 0.0
    %969 = vmatpush1.msra.mxu0 %v256
    %970 = vmatprep.subr.mxu0 0.0
    %971 = vmatpush1.msra.mxu0 %v257
    %972 = vmatprep.subr.mxu0 0.0
    %973 = vmatpush1.msra.mxu0 %v258
    %974 = vmatprep.subr.mxu0 0.0
    %975 = vmatpush1.msra.mxu0 %v259
    %976 = vmatprep.subr.mxu0 0.0
    %977 = vmatpush1.msra.mxu0 %v260
    %978 = vmatprep.subr.mxu0 0.0
    %979 = vmatpush1.msra.mxu0 %v261
    %980 = vmatprep.subr.mxu0 0.0
    %981 = vmatpush1.msra.mxu0 %v262
    %982 = vmatprep.subr.mxu0 0.0
    %983 = vmatpush1.msra.mxu0 %v263
    %984 = vmatprep.subr.mxu0 0.0
    %985 = vmatpush1.msra.mxu0 %v264
    %986 = vmatprep.subr.mxu0 0.0
    %987 = vmatpush1.msra.mxu0 %v265
    %988 = vmatprep.subr.mxu0 0.0
    %989 = vmatpush1.msra.mxu0 %v266
    %990 = vmatprep.subr.mxu0 0.0
    %991 = vmatpush1.msra.mxu0 %v267
    %992 = vmatprep.subr.mxu0 0.0
    %993 = vmatpush1.msra.mxu0 %v268
    %994 = vmatprep.subr.mxu0 0.0
    %995 = vmatpush1.msra.mxu0 %v269
    %996 = vmatprep.subr.mxu0 0.0
    %997 = vmatpush1.msra.mxu0 %v270
    %998 = vmatprep.subr.mxu0 0.0
    %999 = vmatpush1.msra.mxu0 %v271
    %1000 = vmatprep.subr.mxu0 0.0
    %1001 = vmatpush1.msra.mxu0 %v272
    %1002 = vmatprep.subr.mxu0 0.0
    %1003 = vmatpush1.msra.mxu0 %v273
    %1004 = vmatprep.subr.mxu0 0.0
    %1005 = vmatpush1.msra.mxu0 %v274
    %1006 = vmatprep.subr.mxu0 0.0
    %1007 = vmatpush1.msra.mxu0 %v275
    %1008 = vmatprep.subr.mxu0 0.0
    %1009 = vmatpush1.msra.mxu0 %v276
    %1010 = vmatprep.subr.mxu0 0.0
    %1011 = vmatpush1.msra.mxu0 %v277
    %1012 = vmatprep.mubr.f32.mxu0 %v65
    %1013 = vmatmul.mubr.f32.gmra.mrb[0].mxu0 %v64
    %v1014 = vpop.f32.mrb[0].mxu0
    %v1015 = vadd.f32 %v945, %v1014
    %v1016 = vpop.f32.mrb[0].mxu0
    %1017 = vdwg.mxu0
    %1018 = vmatprep.subr.mxu0 0.0
    %1019 = vmatpush1.msra.mxu0 %v278
    %1020 = vmatprep.subr.mxu0 0.0
    %1021 = vmatpush1.msra.mxu0 %v279
    %1022 = vmatprep.subr.mxu0 0.0
    %1023 = vmatpush1.msra.mxu0 %v280
    %1024 = vmatprep.subr.mxu0 0.0
    %1025 = vmatpush1.msra.mxu0 %v281
    %1026 = vmatprep.subr.mxu0 0.0
    %1027 = vmatpush1.msra.mxu0 %v282
    %1028 = vmatprep.subr.mxu0 0.0
    %1029 = vmatpush1.msra.mxu0 %v283
    %1030 = vmatprep.subr.mxu0 0.0
    %1031 = vmatpush1.msra.mxu0 %v284
    %1032 = vmatprep.subr.mxu0 0.0
    %1033 = vmatpush1.msra.mxu0 %v285
    %1034 = vmatprep.subr.mxu0 0.0
    %1035 = vmatpush1.msra.mxu0 %v286
    %1036 = vmatprep.subr.mxu0 0.0
    %1037 = vmatpush1.msra.mxu0 %v287
    %1038 = vmatprep.subr.mxu0 0.0
    %1039 = vmatpush1.msra.mxu0 %v288
    %1040 = vmatprep.subr.mxu0 0.0
    %1041 = vmatpush1.msra.mxu0 %v289
    %1042 = vmatprep.subr.mxu0 0.0
    %1043 = vmatpush1.msra.mxu0 %v290
    %1044 = vmatprep.subr.mxu0 0.0
    %1045 = vmatpush1.msra.mxu0 %v291
    %1046 = vmatprep.subr.mxu0 0.0
    %1047 = vmatpush1.msra.mxu0 %v292
    %1048 = vmatprep.subr.mxu0 0.0
    %1049 = vmatpush1.msra.mxu0 %v293
    %1050 = vmatprep.subr.mxu0 0.0
    %1051 = vmatpush1.msra.mxu0 %v294
    %1052 = vmatprep.subr.mxu0 0.0
    %1053 = vmatpush1.msra.mxu0 %v295
    %1054 = vmatprep.subr.mxu0 0.0
    %1055 = vmatpush1.msra.mxu0 %v296
    %1056 = vmatprep.subr.mxu0 0.0
    %1057 = vmatpush1.msra.mxu0 %v297
    %1058 = vmatprep.subr.mxu0 0.0
    %1059 = vmatpush1.msra.mxu0 %v298
    %1060 = vmatprep.subr.mxu0 0.0
    %1061 = vmatpush1.msra.mxu0 %v299
    %1062 = vmatprep.subr.mxu0 0.0
    %1063 = vmatpush1.msra.mxu0 %v300
    %1064 = vmatprep.subr.mxu0 0.0
    %1065 = vmatpush1.msra.mxu0 %v301
    %1066 = vmatprep.subr.mxu0 0.0
    %1067 = vmatpush1.msra.mxu0 %v302
    %1068 = vmatprep.subr.mxu0 0.0
    %1069 = vmatpush1.msra.mxu0 %v303
    %1070 = vmatprep.subr.mxu0 0.0
    %1071 = vmatpush1.msra.mxu0 %v304
    %1072 = vmatprep.subr.mxu0 0.0
    %1073 = vmatpush1.msra.mxu0 %v305
    %1074 = vmatprep.subr.mxu0 0.0
    %1075 = vmatpush1.msra.mxu0 %v306
    %1076 = vmatprep.subr.mxu0 0.0
    %1077 = vmatpush1.msra.mxu0 %v307
    %1078 = vmatprep.subr.mxu0 0.0
    %1079 = vmatpush1.msra.mxu0 %v308
    %1080 = vmatprep.subr.mxu0 0.0
    %1081 = vmatpush1.msra.mxu0 %v309
    %1082 = vmatprep.mubr.f32.mxu0 %v67
    %1083 = vmatmul.mubr.f32.gmra.mrb[0].mxu0 %v66
    %v1084 = vpop.f32.mrb[0].mxu0
    %v1085 = vadd.f32 %v1015, %v1084
    %v1086 = vpop.f32.mrb[0].mxu0
    %1087 = vdwg.mxu0
    %1088 = vmatprep.subr.mxu0 0.0
    %1089 = vmatpush1.msra.mxu0 %v310
    %1090 = vmatprep.subr.mxu0 0.0
    %1091 = vmatpush1.msra.mxu0 %v311
    %1092 = vmatprep.subr.mxu0 0.0
    %1093 = vmatpush1.msra.mxu0 %v312
    %1094 = vmatprep.subr.mxu0 0.0
    %1095 = vmatpush1.msra.mxu0 %v313
    %1096 = vmatprep.subr.mxu0 0.0
    %1097 = vmatpush1.msra.mxu0 %v314
    %1098 = vmatprep.subr.mxu0 0.0
    %1099 = vmatpush1.msra.mxu0 %v315
    %1100 = vmatprep.subr.mxu0 0.0
    %1101 = vmatpush1.msra.mxu0 %v316
    %1102 = vmatprep.subr.mxu0 0.0
    %1103 = vmatpush1.msra.mxu0 %v317
    %1104 = vmatprep.subr.mxu0 0.0
    %1105 = vmatpush1.msra.mxu0 %v318
    %1106 = vmatprep.subr.mxu0 0.0
    %1107 = vmatpush1.msra.mxu0 %v319
    %1108 = vmatprep.subr.mxu0 0.0
    %1109 = vmatpush1.msra.mxu0 %v320
    %1110 = vmatprep.subr.mxu0 0.0
    %1111 = vmatpush1.msra.mxu0 %v321
    %1112 = vmatprep.subr.mxu0 0.0
    %1113 = vmatpush1.msra.mxu0 %v322
    %1114 = vmatprep.subr.mxu0 0.0
    %1115 = vmatpush1.msra.mxu0 %v323
    %1116 = vmatprep.subr.mxu0 0.0
    %1117 = vmatpush1.msra.mxu0 %v324
    %1118 = vmatprep.subr.mxu0 0.0
    %1119 = vmatpush1.msra.mxu0 %v325
    %1120 = vmatprep.subr.mxu0 0.0
    %1121 = vmatpush1.msra.mxu0 %v326
    %1122 = vmatprep.subr.mxu0 0.0
    %1123 = vmatpush1.msra.mxu0 %v327
    %1124 = vmatprep.subr.mxu0 0.0
    %1125 = vmatpush1.msra.mxu0 %v328
    %1126 = vmatprep.subr.mxu0 0.0
    %1127 = vmatpush1.msra.mxu0 %v329
    %1128 = vmatprep.subr.mxu0 0.0
    %1129 = vmatpush1.msra.mxu0 %v330
    %1130 = vmatprep.subr.mxu0 0.0
    %1131 = vmatpush1.msra.mxu0 %v331
    %1132 = vmatprep.subr.mxu0 0.0
    %1133 = vmatpush1.msra.mxu0 %v332
    %1134 = vmatprep.subr.mxu0 0.0
    %1135 = vmatpush1.msra.mxu0 %v333
    %1136 = vmatprep.subr.mxu0 0.0
    %1137 = vmatpush1.msra.mxu0 %v334
    %1138 = vmatprep.subr.mxu0 0.0
    %1139 = vmatpush1.msra.mxu0 %v335
    %1140 = vmatprep.subr.mxu0 0.0
    %1141 = vmatpush1.msra.mxu0 %v336
    %1142 = vmatprep.subr.mxu0 0.0
    %1143 = vmatpush1.msra.mxu0 %v337
    %1144 = vmatprep.subr.mxu0 0.0
    %1145 = vmatpush1.msra.mxu0 %v338
    %1146 = vmatprep.subr.mxu0 0.0
    %1147 = vmatpush1.msra.mxu0 %v339
    %1148 = vmatprep.subr.mxu0 0.0
    %1149 = vmatpush1.msra.mxu0 %v340
    %1150 = vmatprep.subr.mxu0 0.0
    %1151 = vmatpush1.msra.mxu0 %v341
    %1152 = vmatprep.mubr.f32.mxu0 %v69
    %1153 = vmatmul.mubr.f32.gmra.mrb[0].mxu0 %v68
    %v1154 = vpop.f32.mrb[0].mxu0
    %v1155 = vadd.f32 %v1085, %v1154
    %v1156 = vpop.f32.mrb[0].mxu0
    %1157 = vdwg.mxu0
    %1158 = vmatprep.subr.mxu0 0.0
    %1159 = vmatpush1.msra.mxu0 %v342
    %1160 = vmatprep.subr.mxu0 0.0
    %1161 = vmatpush1.msra.mxu0 %v343
    %1162 = vmatprep.subr.mxu0 0.0
    %1163 = vmatpush1.msra.mxu0 %v344
    %1164 = vmatprep.subr.mxu0 0.0
    %1165 = vmatpush1.msra.mxu0 %v345
    %1166 = vmatprep.subr.mxu0 0.0
    %1167 = vmatpush1.msra.mxu0 %v346
    %1168 = vmatprep.subr.mxu0 0.0
    %1169 = vmatpush1.msra.mxu0 %v347
    %1170 = vmatprep.subr.mxu0 0.0
    %1171 = vmatpush1.msra.mxu0 %v348
    %1172 = vmatprep.subr.mxu0 0.0
    %1173 = vmatpush1.msra.mxu0 %v349
    %1174 = vmatprep.subr.mxu0 0.0
    %1175 = vmatpush1.msra.mxu0 %v350
    %1176 = vmatprep.subr.mxu0 0.0
    %1177 = vmatpush1.msra.mxu0 %v351
    %1178 = vmatprep.subr.mxu0 0.0
    %1179 = vmatpush1.msra.mxu0 %v352
    %1180 = vmatprep.subr.mxu0 0.0
    %1181 = vmatpush1.msra.mxu0 %v353
    %1182 = vmatprep.subr.mxu0 0.0
    %1183 = vmatpush1.msra.mxu0 %v354
    %1184 = vmatprep.subr.mxu0 0.0
    %1185 = vmatpush1.msra.mxu0 %v355
    %1186 = vmatprep.subr.mxu0 0.0
    %1187 = vmatpush1.msra.mxu0 %v356
    %1188 = vmatprep.subr.mxu0 0.0
    %1189 = vmatpush1.msra.mxu0 %v357
    %1190 = vmatprep.subr.mxu0 0.0
    %1191 = vmatpush1.msra.mxu0 %v358
    %1192 = vmatprep.subr.mxu0 0.0
    %1193 = vmatpush1.msra.mxu0 %v359
    %1194 = vmatprep.subr.mxu0 0.0
    %1195 = vmatpush1.msra.mxu0 %v360
    %1196 = vmatprep.subr.mxu0 0.0
    %1197 = vmatpush1.msra.mxu0 %v361
    %1198 = vmatprep.subr.mxu0 0.0
    %1199 = vmatpush1.msra.mxu0 %v362
    %1200 = vmatprep.subr.mxu0 0.0
    %1201 = vmatpush1.msra.mxu0 %v363
    %1202 = vmatprep.subr.mxu0 0.0
    %1203 = vmatpush1.msra.mxu0 %v364
    %1204 = vmatprep.subr.mxu0 0.0
    %1205 = vmatpush1.msra.mxu0 %v365
    %1206 = vmatprep.subr.mxu0 0.0
    %1207 = vmatpush1.msra.mxu0 %v366
    %1208 = vmatprep.subr.mxu0 0.0
    %1209 = vmatpush1.msra.mxu0 %v367
    %1210 = vmatprep.subr.mxu0 0.0
    %1211 = vmatpush1.msra.mxu0 %v368
    %1212 = vmatprep.subr.mxu0 0.0
    %1213 = vmatpush1.msra.mxu0 %v369
    %1214 = vmatprep.subr.mxu0 0.0
    %1215 = vmatpush1.msra.mxu0 %v370
    %1216 = vmatprep.subr.mxu0 0.0
    %1217 = vmatpush1.msra.mxu0 %v371
    %1218 = vmatprep.subr.mxu0 0.0
    %1219 = vmatpush1.msra.mxu0 %v372
    %1220 = vmatprep.subr.mxu0 0.0
    %1221 = vmatpush1.msra.mxu0 %v373
    %1222 = vmatprep.mubr.f32.mxu0 %v71
    %1223 = vmatmul.mubr.f32.gmra.mrb[0].mxu0 %v70
    %v1224 = vpop.f32.mrb[0].mxu0
    %v1225 = vadd.f32 0.0, %v1224
    %v1226 = vpop.f32.mrb[0].mxu0
    %1227 = vdwg.mxu0
    %1228 = vmatprep.subr.mxu0 0.0
    %1229 = vmatpush1.msra.mxu0 %v374
    %1230 = vmatprep.subr.mxu0 0.0
    %1231 = vmatpush1.msra.mxu0 %v375
    %1232 = vmatprep.subr.mxu0 0.0
    %1233 = vmatpush1.msra.mxu0 %v376
    %1234 = vmatprep.subr.mxu0 0.0
    %1235 = vmatpush1.msra.mxu0 %v377
    %1236 = vmatprep.subr.mxu0 0.0
    %1237 = vmatpush1.msra.mxu0 %v378
    %1238 = vmatprep.subr.mxu0 0.0
    %1239 = vmatpush1.msra.mxu0 %v379
    %1240 = vmatprep.subr.mxu0 0.0
    %1241 = vmatpush1.msra.mxu0 %v380
    %1242 = vmatprep.subr.mxu0 0.0
    %1243 = vmatpush1.msra.mxu0 %v381
    %1244 = vmatprep.subr.mxu0 0.0
    %1245 = vmatpush1.msra.mxu0 %v382
    %1246 = vmatprep.subr.mxu0 0.0
    %1247 = vmatpush1.msra.mxu0 %v383
    %1248 = vmatprep.subr.mxu0 0.0
    %1249 = vmatpush1.msra.mxu0 %v384
    %1250 = vmatprep.subr.mxu0 0.0
    %1251 = vmatpush1.msra.mxu0 %v385
    %1252 = vmatprep.subr.mxu0 0.0
    %1253 = vmatpush1.msra.mxu0 %v386
    %1254 = vmatprep.subr.mxu0 0.0
    %1255 = vmatpush1.msra.mxu0 %v387
    %1256 = vmatprep.subr.mxu0 0.0
    %1257 = vmatpush1.msra.mxu0 %v388
    %1258 = vmatprep.subr.mxu0 0.0
    %1259 = vmatpush1.msra.mxu0 %v389
    %1260 = vmatprep.subr.mxu0 0.0
    %1261 = vmatpush1.msra.mxu0 %v390
    %1262 = vmatprep.subr.mxu0 0.0
    %1263 = vmatpush1.msra.mxu0 %v391
    %1264 = vmatprep.subr.mxu0 0.0
    %1265 = vmatpush1.msra.mxu0 %v392
    %1266 = vmatprep.subr.mxu0 0.0
    %1267 = vmatpush1.msra.mxu0 %v393
    %1268 = vmatprep.subr.mxu0 0.0
    %1269 = vmatpush1.msra.mxu0 %v394
    %1270 = vmatprep.subr.mxu0 0.0
    %1271 = vmatpush1.msra.mxu0 %v395
    %1272 = vmatprep.subr.mxu0 0.0
    %1273 = vmatpush1.msra.mxu0 %v396
    %1274 = vmatprep.subr.mxu0 0.0
    %1275 = vmatpush1.msra.mxu0 %v397
    %1276 = vmatprep.subr.mxu0 0.0
    %1277 = vmatpush1.msra.mxu0 %v398
    %1278 = vmatprep.subr.mxu0 0.0
    %1279 = vmatpush1.msra.mxu0 %v399
    %1280 = vmatprep.subr.mxu0 0.0
    %1281 = vmatpush1.msra.mxu0 %v400
    %1282 = vmatprep.subr.mxu0 0.0
    %1283 = vmatpush1.msra.mxu0 %v401
    %1284 = vmatprep.subr.mxu0 0.0
    %1285 = vmatpush1.msra.mxu0 %v402
    %1286 = vmatprep.subr.mxu0 0.0
    %1287 = vmatpush1.msra.mxu0 %v403
    %1288 = vmatprep.subr.mxu0 0.0
    %1289 = vmatpush1.msra.mxu0 %v404
    %1290 = vmatprep.subr.mxu0 0.0
    %1291 = vmatpush1.msra.mxu0 %v405
    %1292 = vmatprep.mubr.f32.mxu0 %v73
    %1293 = vmatmul.mubr.f32.gmra.mrb[0].mxu0 %v72
    %v1294 = vpop.f32.mrb[0].mxu0
    %v1295 = vadd.f32 %v1225, %v1294
    %v1296 = vpop.f32.mrb[0].mxu0
    %1297 = vdwg.mxu0
    %1298 = vmatprep.subr.mxu0 0.0
    %1299 = vmatpush1.msra.mxu0 %v406
    %1300 = vmatprep.subr.mxu0 0.0
    %1301 = vmatpush1.msra.mxu0 %v407
    %1302 = vmatprep.subr.mxu0 0.0
    %1303 = vmatpush1.msra.mxu0 %v408
    %1304 = vmatprep.subr.mxu0 0.0
    %1305 = vmatpush1.msra.mxu0 %v409
    %1306 = vmatprep.subr.mxu0 0.0
    %1307 = vmatpush1.msra.mxu0 %v410
    %1308 = vmatprep.subr.mxu0 0.0
    %1309 = vmatpush1.msra.mxu0 %v411
    %1310 = vmatprep.subr.mxu0 0.0
    %1311 = vmatpush1.msra.mxu0 %v412
    %1312 = vmatprep.subr.mxu0 0.0
    %1313 = vmatpush1.msra.mxu0 %v413
    %1314 = vmatprep.subr.mxu0 0.0
    %1315 = vmatpush1.msra.mxu0 %v414
    %1316 = vmatprep.subr.mxu0 0.0
    %1317 = vmatpush1.msra.mxu0 %v415
    %1318 = vmatprep.subr.mxu0 0.0
    %1319 = vmatpush1.msra.mxu0 %v416
    %1320 = vmatprep.subr.mxu0 0.0
    %1321 = vmatpush1.msra.mxu0 %v417
    %1322 = vmatprep.subr.mxu0 0.0
    %1323 = vmatpush1.msra.mxu0 %v418
    %1324 = vmatprep.subr.mxu0 0.0
    %1325 = vmatpush1.msra.mxu0 %v419
    %1326 = vmatprep.subr.mxu0 0.0
    %1327 = vmatpush1.msra.mxu0 %v420
    %1328 = vmatprep.subr.mxu0 0.0
    %1329 = vmatpush1.msra.mxu0 %v421
    %1330 = vmatprep.subr.mxu0 0.0
    %1331 = vmatpush1.msra.mxu0 %v422
    %1332 = vmatprep.subr.mxu0 0.0
    %1333 = vmatpush1.msra.mxu0 %v423
    %1334 = vmatprep.subr.mxu0 0.0
    %1335 = vmatpush1.msra.mxu0 %v424
    %1336 = vmatprep.subr.mxu0 0.0
    %1337 = vmatpush1.msra.mxu0 %v425
    %1338 = vmatprep.subr.mxu0 0.0
    %1339 = vmatpush1.msra.mxu0 %v426
    %1340 = vmatprep.subr.mxu0 0.0
    %1341 = vmatpush1.msra.mxu0 %v427
    %1342 = vmatprep.subr.mxu0 0.0
    %1343 = vmatpush1.msra.mxu0 %v428
    %1344 = vmatprep.subr.mxu0 0.0
    %1345 = vmatpush1.msra.mxu0 %v429
    %1346 = vmatprep.subr.mxu0 0.0
    %1347 = vmatpush1.msra.mxu0 %v430
    %1348 = vmatprep.subr.mxu0 0.0
    %1349 = vmatpush1.msra.mxu0 %v431
    %1350 = vmatprep.subr.mxu0 0.0
    %1351 = vmatpush1.msra.mxu0 %v432
    %1352 = vmatprep.subr.mxu0 0.0
    %1353 = vmatpush1.msra.mxu0 %v433
    %1354 = vmatprep.subr.mxu0 0.0
    %1355 = vmatpush1.msra.mxu0 %v434
    %1356 = vmatprep.subr.mxu0 0.0
    %1357 = vmatpush1.msra.mxu0 %v435
    %1358 = vmatprep.subr.mxu0 0.0
    %1359 = vmatpush1.msra.mxu0 %v436
    %1360 = vmatprep.subr.mxu0 0.0
    %1361 = vmatpush1.msra.mxu0 %v437
    %1362 = vmatprep.mubr.f32.mxu0 %v75
    %1363 = vmatmul.mubr.f32.gmra.mrb[0].mxu0 %v74
    %v1364 = vpop.f32.mrb[0].mxu0
    %v1365 = vadd.f32 %v1295, %v1364
    %v1366 = vpop.f32.mrb[0].mxu0
    %1367 = vdwg.mxu0
    %1368 = vmatprep.subr.mxu0 0.0
    %1369 = vmatpush1.msra.mxu0 %v438
    %1370 = vmatprep.subr.mxu0 0.0
    %1371 = vmatpush1.msra.mxu0 %v439
    %1372 = vmatprep.subr.mxu0 0.0
    %1373 = vmatpush1.msra.mxu0 %v440
    %1374 = vmatprep.subr.mxu0 0.0
    %1375 = vmatpush1.msra.mxu0 %v441
    %1376 = vmatprep.subr.mxu0 0.0
    %1377 = vmatpush1.msra.mxu0 %v442
    %1378 = vmatprep.subr.mxu0 0.0
    %1379 = vmatpush1.msra.mxu0 %v443
    %1380 = vmatprep.subr.mxu0 0.0
    %1381 = vmatpush1.msra.mxu0 %v444
    %1382 = vmatprep.subr.mxu0 0.0
    %1383 = vmatpush1.msra.mxu0 %v445
    %1384 = vmatprep.subr.mxu0 0.0
    %1385 = vmatpush1.msra.mxu0 %v446
    %1386 = vmatprep.subr.mxu0 0.0
    %1387 = vmatpush1.msra.mxu0 %v447
    %1388 = vmatprep.subr.mxu0 0.0
    %1389 = vmatpush1.msra.mxu0 %v448
    %1390 = vmatprep.subr.mxu0 0.0
    %1391 = vmatpush1.msra.mxu0 %v449
    %1392 = vmatprep.subr.mxu0 0.0
    %1393 = vmatpush1.msra.mxu0 %v450
    %1394 = vmatprep.subr.mxu0 0.0
    %1395 = vmatpush1.msra.mxu0 %v451
    %1396 = vmatprep.subr.mxu0 0.0
    %1397 = vmatpush1.msra.mxu0 %v452
    %1398 = vmatprep.subr.mxu0 0.0
    %1399 = vmatpush1.msra.mxu0 %v453
    %1400 = vmatprep.subr.mxu0 0.0
    %1401 = vmatpush1.msra.mxu0 %v454
    %1402 = vmatprep.subr.mxu0 0.0
    %1403 = vmatpush1.msra.mxu0 %v455
    %1404 = vmatprep.subr.mxu0 0.0
    %1405 = vmatpush1.msra.mxu0 %v456
    %1406 = vmatprep.subr.mxu0 0.0
    %1407 = vmatpush1.msra.mxu0 %v457
    %1408 = vmatprep.subr.mxu0 0.0
    %1409 = vmatpush1.msra.mxu0 %v458
    %1410 = vmatprep.subr.mxu0 0.0
    %1411 = vmatpush1.msra.mxu0 %v459
    %1412 = vmatprep.subr.mxu0 0.0
    %1413 = vmatpush1.msra.mxu0 %v460
    %1414 = vmatprep.subr.mxu0 0.0
    %1415 = vmatpush1.msra.mxu0 %v461
    %1416 = vmatprep.subr.mxu0 0.0
    %1417 = vmatpush1.msra.mxu0 %v462
    %1418 = vmatprep.subr.mxu0 0.0
    %1419 = vmatpush1.msra.mxu0 %v463
    %1420 = vmatprep.subr.mxu0 0.0
    %1421 = vmatpush1.msra.mxu0 %v464
    %1422 = vmatprep.subr.mxu0 0.0
    %1423 = vmatpush1.msra.mxu0 %v465
    %1424 = vmatprep.subr.mxu0 0.0
    %1425 = vmatpush1.msra.mxu0 %v466
    %1426 = vmatprep.subr.mxu0 0.0
    %1427 = vmatpush1.msra.mxu0 %v467
    %1428 = vmatprep.subr.mxu0 0.0
    %1429 = vmatpush1.msra.mxu0 %v468
    %1430 = vmatprep.subr.mxu0 0.0
    %1431 = vmatpush1.msra.mxu0 %v469
    %1432 = vmatprep.mubr.f32.mxu0 %v77
    %1433 = vmatmul.mubr.f32.gmra.mrb[0].mxu0 %v76
    %v1434 = vpop.f32.mrb[0].mxu0
    %v1435 = vadd.f32 %v1365, %v1434
    %v1436 = vpop.f32.mrb[0].mxu0
    %1437 = vdwg.mxu0
    %1438 = vmatprep.subr.mxu0 0.0
    %1439 = vmatpush1.msra.mxu0 %v470
    %1440 = vmatprep.subr.mxu0 0.0
    %1441 = vmatpush1.msra.mxu0 %v471
    %1442 = vmatprep.subr.mxu0 0.0
    %1443 = vmatpush1.msra.mxu0 %v472
    %1444 = vmatprep.subr.mxu0 0.0
    %1445 = vmatpush1.msra.mxu0 %v473
    %1446 = vmatprep.subr.mxu0 0.0
    %1447 = vmatpush1.msra.mxu0 %v474
    %1448 = vmatprep.subr.mxu0 0.0
    %1449 = vmatpush1.msra.mxu0 %v475
    %1450 = vmatprep.subr.mxu0 0.0
    %1451 = vmatpush1.msra.mxu0 %v476
    %1452 = vmatprep.subr.mxu0 0.0
    %1453 = vmatpush1.msra.mxu0 %v477
    %1454 = vmatprep.subr.mxu0 0.0
    %1455 = vmatpush1.msra.mxu0 %v478
    %1456 = vmatprep.subr.mxu0 0.0
    %1457 = vmatpush1.msra.mxu0 %v479
    %1458 = vmatprep.subr.mxu0 0.0
    %1459 = vmatpush1.msra.mxu0 %v480
    %1460 = vmatprep.subr.mxu0 0.0
    %1461 = vmatpush1.msra.mxu0 %v481
    %1462 = vmatprep.subr.mxu0 0.0
    %1463 = vmatpush1.msra.mxu0 %v482
    %1464 = vmatprep.subr.mxu0 0.0
    %1465 = vmatpush1.msra.mxu0 %v483
    %1466 = vmatprep.subr.mxu0 0.0
    %1467 = vmatpush1.msra.mxu0 %v484
    %1468 = vmatprep.subr.mxu0 0.0
    %1469 = vmatpush1.msra.mxu0 %v485
    %1470 = vmatprep.subr.mxu0 0.0
    %1471 = vmatpush1.msra.mxu0 %v486
    %1472 = vmatprep.subr.mxu0 0.0
    %1473 = vmatpush1.msra.mxu0 %v487
    %1474 = vmatprep.subr.mxu0 0.0
    %1475 = vmatpush1.msra.mxu0 %v488
    %1476 = vmatprep.subr.mxu0 0.0
    %1477 = vmatpush1.msra.mxu0 %v489
    %1478 = vmatprep.subr.mxu0 0.0
    %1479 = vmatpush1.msra.mxu0 %v490
    %1480 = vmatprep.subr.mxu0 0.0
    %1481 = vmatpush1.msra.mxu0 %v491
    %1482 = vmatprep.subr.mxu0 0.0
    %1483 = vmatpush1.msra.mxu0 %v492
    %1484 = vmatprep.subr.mxu0 0.0
    %1485 = vmatpush1.msra.mxu0 %v493
    %1486 = vmatprep.subr.mxu0 0.0
    %1487 = vmatpush1.msra.mxu0 %v494
    %1488 = vmatprep.subr.mxu0 0.0
    %1489 = vmatpush1.msra.mxu0 %v495
    %1490 = vmatprep.subr.mxu0 0.0
    %1491 = vmatpush1.msra.mxu0 %v496
    %1492 = vmatprep.subr.mxu0 0.0
    %1493 = vmatpush1.msra.mxu0 %v497
    %1494 = vmatprep.subr.mxu0 0.0
    %1495 = vmatpush1.msra.mxu0 %v498
    %1496 = vmatprep.subr.mxu0 0.0
    %1497 = vmatpush1.msra.mxu0 %v499
    %1498 = vmatprep.subr.mxu0 0.0
    %1499 = vmatpush1.msra.mxu0 %v500
    %1500 = vmatprep.subr.mxu0 0.0
    %1501 = vmatpush1.msra.mxu0 %v501
    %1502 = vmatprep.mubr.f32.mxu0 %v79
    %1503 = vmatmul.mubr.f32.gmra.mrb[0].mxu0 %v78
    %v1504 = vpop.f32.mrb[0].mxu0
    %v1505 = vadd.f32 0.0, %v1504
    %v1506 = vpop.f32.mrb[0].mxu0
    %1507 = vdwg.mxu0
    %1508 = vmatprep.subr.mxu0 0.0
    %1509 = vmatpush1.msra.mxu0 %v502
    %1510 = vmatprep.subr.mxu0 0.0
    %1511 = vmatpush1.msra.mxu0 %v503
    %1512 = vmatprep.subr.mxu0 0.0
    %1513 = vmatpush1.msra.mxu0 %v504
    %1514 = vmatprep.subr.mxu0 0.0
    %1515 = vmatpush1.msra.mxu0 %v505
    %1516 = vmatprep.subr.mxu0 0.0
    %1517 = vmatpush1.msra.mxu0 %v506
    %1518 = vmatprep.subr.mxu0 0.0
    %1519 = vmatpush1.msra.mxu0 %v507
    %1520 = vmatprep.subr.mxu0 0.0
    %1521 = vmatpush1.msra.mxu0 %v508
    %1522 = vmatprep.subr.mxu0 0.0
    %1523 = vmatpush1.msra.mxu0 %v509
    %1524 = vmatprep.subr.mxu0 0.0
    %1525 = vmatpush1.msra.mxu0 %v510
    %1526 = vmatprep.subr.mxu0 0.0
    %1527 = vmatpush1.msra.mxu0 %v511
    %1528 = vmatprep.subr.mxu0 0.0
    %1529 = vmatpush1.msra.mxu0 %v512
    %1530 = vmatprep.subr.mxu0 0.0
    %1531 = vmatpush1.msra.mxu0 %v513
    %1532 = vmatprep.subr.mxu0 0.0
    %1533 = vmatpush1.msra.mxu0 %v514
    %1534 = vmatprep.subr.mxu0 0.0
    %1535 = vmatpush1.msra.mxu0 %v515
    %1536 = vmatprep.subr.mxu0 0.0
    %1537 = vmatpush1.msra.mxu0 %v516
    %1538 = vmatprep.subr.mxu0 0.0
    %1539 = vmatpush1.msra.mxu0 %v517
    %1540 = vmatprep.subr.mxu0 0.0
    %1541 = vmatpush1.msra.mxu0 %v518
    %1542 = vmatprep.subr.mxu0 0.0
    %1543 = vmatpush1.msra.mxu0 %v519
    %1544 = vmatprep.subr.mxu0 0.0
    %1545 = vmatpush1.msra.mxu0 %v520
    %1546 = vmatprep.subr.mxu0 0.0
    %1547 = vmatpush1.msra.mxu0 %v521
    %1548 = vmatprep.subr.mxu0 0.0
    %1549 = vmatpush1.msra.mxu0 %v522
    %1550 = vmatprep.subr.mxu0 0.0
    %1551 = vmatpush1.msra.mxu0 %v523
    %1552 = vmatprep.subr.mxu0 0.0
    %1553 = vmatpush1.msra.mxu0 %v524
    %1554 = vmatprep.subr.mxu0 0.0
    %1555 = vmatpush1.msra.mxu0 %v525
    %1556 = vmatprep.subr.mxu0 0.0
    %1557 = vmatpush1.msra.mxu0 %v526
    %1558 = vmatprep.subr.mxu0 0.0
    %1559 = vmatpush1.msra.mxu0 %v527
    %1560 = vmatprep.subr.mxu0 0.0
    %1561 = vmatpush1.msra.mxu0 %v528
    %1562 = vmatprep.subr.mxu0 0.0
    %1563 = vmatpush1.msra.mxu0 %v529
    %1564 = vmatprep.subr.mxu0 0.0
    %1565 = vmatpush1.msra.mxu0 %v530
    %1566 = vmatprep.subr.mxu0 0.0
    %1567 = vmatpush1.msra.mxu0 %v531
    %1568 = vmatprep.subr.mxu0 0.0
    %1569 = vmatpush1.msra.mxu0 %v532
    %1570 = vmatprep.subr.mxu0 0.0
    %1571 = vmatpush1.msra.mxu0 %v533
    %1572 = vmatprep.mubr.f32.mxu0 %v81
    %1573 = vmatmul.mubr.f32.gmra.mrb[0].mxu0 %v80
    %v1574 = vpop.f32.mrb[0].mxu0
    %v1575 = vadd.f32 %v1505, %v1574
    %v1576 = vpop.f32.mrb[0].mxu0
    %1577 = vdwg.mxu0
    %1578 = vmatprep.subr.mxu0 0.0
    %1579 = vmatpush1.msra.mxu0 %v534
    %1580 = vmatprep.subr.mxu0 0.0
    %1581 = vmatpush1.msra.mxu0 %v535
    %1582 = vmatprep.subr.mxu0 0.0
    %1583 = vmatpush1.msra.mxu0 %v536
    %1584 = vmatprep.subr.mxu0 0.0
    %1585 = vmatpush1.msra.mxu0 %v537
    %1586 = vmatprep.subr.mxu0 0.0
    %1587 = vmatpush1.msra.mxu0 %v538
    %1588 = vmatprep.subr.mxu0 0.0
    %1589 = vmatpush1.msra.mxu0 %v539
    %1590 = vmatprep.subr.mxu0 0.0
    %1591 = vmatpush1.msra.mxu0 %v540
    %1592 = vmatprep.subr.mxu0 0.0
    %1593 = vmatpush1.msra.mxu0 %v541
    %1594 = vmatprep.subr.mxu0 0.0
    %1595 = vmatpush1.msra.mxu0 %v542
    %1596 = vmatprep.subr.mxu0 0.0
    %1597 = vmatpush1.msra.mxu0 %v543
    %1598 = vmatprep.subr.mxu0 0.0
    %1599 = vmatpush1.msra.mxu0 %v544
    %1600 = vmatprep.subr.mxu0 0.0
    %1601 = vmatpush1.msra.mxu0 %v545
    %1602 = vmatprep.subr.mxu0 0.0
    %1603 = vmatpush1.msra.mxu0 %v546
    %1604 = vmatprep.subr.mxu0 0.0
    %1605 = vmatpush1.msra.mxu0 %v547
    %1606 = vmatprep.subr.mxu0 0.0
    %1607 = vmatpush1.msra.mxu0 %v548
    %1608 = vmatprep.subr.mxu0 0.0
    %1609 = vmatpush1.msra.mxu0 %v549
    %1610 = vmatprep.subr.mxu0 0.0
    %1611 = vmatpush1.msra.mxu0 %v550
    %1612 = vmatprep.subr.mxu0 0.0
    %1613 = vmatpush1.msra.mxu0 %v551
    %1614 = vmatprep.subr.mxu0 0.0
    %1615 = vmatpush1.msra.mxu0 %v552
    %1616 = vmatprep.subr.mxu0 0.0
    %1617 = vmatpush1.msra.mxu0 %v553
    %1618 = vmatprep.subr.mxu0 0.0
    %1619 = vmatpush1.msra.mxu0 %v554
    %1620 = vmatprep.subr.mxu0 0.0
    %1621 = vmatpush1.msra.mxu0 %v555
    %1622 = vmatprep.subr.mxu0 0.0
    %1623 = vmatpush1.msra.mxu0 %v556
    %1624 = vmatprep.subr.mxu0 0.0
    %1625 = vmatpush1.msra.mxu0 %v557
    %1626 = vmatprep.subr.mxu0 0.0
    %1627 = vmatpush1.msra.mxu0 %v558
    %1628 = vmatprep.subr.mxu0 0.0
    %1629 = vmatpush1.msra.mxu0 %v559
    %1630 = vmatprep.subr.mxu0 0.0
    %1631 = vmatpush1.msra.mxu0 %v560
    %1632 = vmatprep.subr.mxu0 0.0
    %1633 = vmatpush1.msra.mxu0 %v561
    %1634 = vmatprep.subr.mxu0 0.0
    %1635 = vmatpush1.msra.mxu0 %v562
    %1636 = vmatprep.subr.mxu0 0.0
    %1637 = vmatpush1.msra.mxu0 %v563
    %1638 = vmatprep.subr.mxu0 0.0
    %1639 = vmatpush1.msra.mxu0 %v564
    %1640 = vmatprep.subr.mxu0 0.0
    %1641 = vmatpush1.msra.mxu0 %v565
    %1642 = vmatprep.mubr.f32.mxu0 %v83
    %1643 = vmatmul.mubr.f32.gmra.mrb[0].mxu0 %v82
    %v1644 = vpop.f32.mrb[0].mxu0
    %v1645 = vadd.f32 %v1575, %v1644
    %v1646 = vpop.f32.mrb[0].mxu0
    %1647 = vdwg.mxu0
    %1648 = vmatprep.subr.mxu0 0.0
    %1649 = vmatpush1.msra.mxu0 %v566
    %1650 = vmatprep.subr.mxu0 0.0
    %1651 = vmatpush1.msra.mxu0 %v567
    %1652 = vmatprep.subr.mxu0 0.0
    %1653 = vmatpush1.msra.mxu0 %v568
    %1654 = vmatprep.subr.mxu0 0.0
    %1655 = vmatpush1.msra.mxu0 %v569
    %1656 = vmatprep.subr.mxu0 0.0
    %1657 = vmatpush1.msra.mxu0 %v570
    %1658 = vmatprep.subr.mxu0 0.0
    %1659 = vmatpush1.msra.mxu0 %v571
    %1660 = vmatprep.subr.mxu0 0.0
    %1661 = vmatpush1.msra.mxu0 %v572
    %1662 = vmatprep.subr.mxu0 0.0
    %1663 = vmatpush1.msra.mxu0 %v573
    %1664 = vmatprep.subr.mxu0 0.0
    %1665 = vmatpush1.msra.mxu0 %v574
    %1666 = vmatprep.subr.mxu0 0.0
    %1667 = vmatpush1.msra.mxu0 %v575
    %1668 = vmatprep.subr.mxu0 0.0
    %1669 = vmatpush1.msra.mxu0 %v576
    %1670 = vmatprep.subr.mxu0 0.0
    %1671 = vmatpush1.msra.mxu0 %v577
    %1672 = vmatprep.subr.mxu0 0.0
    %1673 = vmatpush1.msra.mxu0 %v578
    %1674 = vmatprep.subr.mxu0 0.0
    %1675 = vmatpush1.msra.mxu0 %v579
    %1676 = vmatprep.subr.mxu0 0.0
    %1677 = vmatpush1.msra.mxu0 %v580
    %1678 = vmatprep.subr.mxu0 0.0
    %1679 = vmatpush1.msra.mxu0 %v581
    %1680 = vmatprep.subr.mxu0 0.0
    %1681 = vmatpush1.msra.mxu0 %v582
    %1682 = vmatprep.subr.mxu0 0.0
    %1683 = vmatpush1.msra.mxu0 %v583
    %1684 = vmatprep.subr.mxu0 0.0
    %1685 = vmatpush1.msra.mxu0 %v584
    %1686 = vmatprep.subr.mxu0 0.0
    %1687 = vmatpush1.msra.mxu0 %v585
    %1688 = vmatprep.subr.mxu0 0.0
    %1689 = vmatpush1.msra.mxu0 %v586
    %1690 = vmatprep.subr.mxu0 0.0
    %1691 = vmatpush1.msra.mxu0 %v587
    %1692 = vmatprep.subr.mxu0 0.0
    %1693 = vmatpush1.msra.mxu0 %v588
    %1694 = vmatprep.subr.mxu0 0.0
    %1695 = vmatpush1.msra.mxu0 %v589
    %1696 = vmatprep.subr.mxu0 0.0
    %1697 = vmatpush1.msra.mxu0 %v590
    %1698 = vmatprep.subr.mxu0 0.0
    %1699 = vmatpush1.msra.mxu0 %v591
    %1700 = vmatprep.subr.mxu0 0.0
    %1701 = vmatpush1.msra.mxu0 %v592
    %1702 = vmatprep.subr.mxu0 0.0
    %1703 = vmatpush1.msra.mxu0 %v593
    %1704 = vmatprep.subr.mxu0 0.0
    %1705 = vmatpush1.msra.mxu0 %v594
    %1706 = vmatprep.subr.mxu0 0.0
    %1707 = vmatpush1.msra.mxu0 %v595
    %1708 = vmatprep.subr.mxu0 0.0
    %1709 = vmatpush1.msra.mxu0 %v596
    %1710 = vmatprep.subr.mxu0 0.0
    %1711 = vmatpush1.msra.mxu0 %v597
    %1712 = vmatprep.mubr.f32.mxu0 %v85
    %1713 = vmatmul.mubr.f32.gmra.mrb[0].mxu0 %v84
    %v1714 = vpop.f32.mrb[0].mxu0
    %v1715 = vadd.f32 %v1645, %v1714
    %v1716 = vpop.f32.mrb[0].mxu0
    %1717 = vdwg.mxu0
    %v1718 = vadd.f32 %v875, %v1155
    %v1719 = vadd.f32 %v1718, %v1435
    %v1720 = vadd.f32 %v1719, %v1715
    %v1721 = vrot.slane %v1720, 4
    %v1722 = vadd.f32 %v1720, %v1721
    %v1723 = vrot.slane %v1722, 2
    %v1724 = vadd.f32 %v1722, %v1723
    %v1725 = vrot.slane %v1724, 1
    %v1726 = vadd.f32 %v1724, %v1725
    %v1727 = vrcp.pop 32.0
    %v1728 = vmul.f32 %v1726, %v1727
    %v1729 = vsub.f32 %v875, %v1728
    %v1730 = vsub.f32 %v1155, %v1728
    %v1731 = vsub.f32 %v1435, %v1728
    %v1732 = vsub.f32 %v1715, %v1728
    %v1733 = vmul.f32 %v1729, %v1729
    %v1734 = vmul.f32 %v1730, %v1730
    %v1735 = vmul.f32 %v1731, %v1731
    %v1736 = vmul.f32 %v1732, %v1732
    %v1737 = vadd.f32 %v1733, %v1734
    %v1738 = vadd.f32 %v1737, %v1735
    %v1739 = vadd.f32 %v1738, %v1736
    %v1740 = vrot.slane %v1739, 4
    %v1741 = vadd.f32 %v1739, %v1740
    %v1742 = vrot.slane %v1741, 2
    %v1743 = vadd.f32 %v1741, %v1742
    %v1744 = vrot.slane %v1743, 1
    %v1745 = vadd.f32 %v1743, %v1744
    %v1746 = vmul.f32 %v1745, %v1727
    %v1747 = vld [vmem:[#allocation4] sm:$0x1]
    %v1748 = vadd.f32 %v1746, 1e-05
    %v1749 = vrsqrt.pop %v1748
    %v1750 = vmul.f32 %v1747, %v1749
    %v1751 = vld [vmem:[#allocation6] sm:$0x1]
    %v1752 = vmul.f32 %v1728, %v1750
    %v1753 = vsub.f32 %v1751, %v1752
    %v1755 = vlaneseq
    %v1756 = vshrl.u32 %v1755, 7
    %v1757 = vsub.s32 0, %v1756
    %v1758 = vrot.slane %v1750, %v1757
    %v1760 = vmul.f32 %v875, %v1758
    %v1761 = vmul.f32 %v1155, %v1758
    %v1762 = vmul.f32 %v1435, %v1758
    %v1763 = vmul.f32 %v1715, %v1758
    %v1765 = vlaneseq
    %v1766 = vshrl.u32 %v1765, 7
    %v1767 = vsub.s32 0, %v1766
    %v1768 = vrot.slane %v1753, %v1767
    %v1770 = vadd.f32 %v1760, %v1768
    %v1771 = vadd.f32 %v1761, %v1768
    %v1772 = vadd.f32 %v1762, %v1768
    %v1773 = vadd.f32 %v1763, %v1768
    %vm1774 = vcmp.gt.f32.partialorder %v1770, 0.0
    %vm1775 = vcmp.gt.f32.partialorder %v1771, 0.0
    %vm1776 = vcmp.gt.f32.partialorder %v1772, 0.0
    %vm1777 = vcmp.gt.f32.partialorder %v1773, 0.0
    %v1778 = vmul.f32 %v1770, 0.2
    %v1779 = vmul.f32 %v1771, 0.2
    %v1780 = vmul.f32 %v1772, 0.2
    %v1781 = vmul.f32 %v1773, 0.2
    %v1782 = vsel %vm1774, %v1770, %v1778
    %v1783 = vsel %vm1775, %v1771, %v1779
    %v1784 = vsel %vm1776, %v1772, %v1780
    %v1785 = vsel %vm1777, %v1773, %v1781
    %1786 = vst [vmem:[%s4] sm:$0xff] %v1782
    %1787 = vst [vmem:[%s4 + $0x8] sm:$0xff] %v1783
    %1788 = vst [vmem:[%s4 + $0x10] sm:$0xff] %v1784
    %1789 = vst [vmem:[%s4 + $0x18] sm:$0xff] %v1785
    // Predicated region
    $region30: #{generator_forward.5} parent=1 // pred_check
      _
    $region31: #{generator_forward.5} parent=1 // pred_check_branch
      %1791 = sbr.rel (0) target = $region33
    $region32: #{generator_forward.5} parent=1 // pred_region
      _
    $region33: #{generator_forward.5} parent=1 // pred_fallthru
      _
    // Predicated region
    $region34: #{generator_forward.5} parent=1 // pred_check
      _
    $region35: #{generator_forward.5} parent=1 // pred_check_branch
      %1793 = sbr.rel (0) target = $region37
    $region36: #{generator_forward.5} parent=1 // pred_region
      _
    $region37: #{generator_forward.5} parent=1 // pred_fallthru
      _
    %1794 = vsyncpa [#allocation3], 1
    %1795 = vsyncpa [#allocation5], 1

// kernel: generator_forward.6
$region0: #{generator_forward.6}
  #allocation0 [shape = 'u32[]', space=smem, size = 0x4, offset = 0x4, fixed_abs, tag = 'smem constant byte address 0x4 - core index']
  #allocation1 [shape = 'u32[144,128]{1,0:T(1,128)}', space=vmem, size = 0x12000, scoped, tag = 'internal scratch']
  %s0 = inlined_call_operand.vmem [shape: f32[4,32,512], index: 0, kind: input, shape index: {}]
  %s1 = inlined_call_operand.vmem [shape: f32[4,512,64], index: 1, kind: input, shape index: {}]
  %s2 = inlined_call_operand.vmem [shape: f32[1,1,64], index: 2, kind: input, shape index: {}]
  %s3 = inlined_call_operand.vmem [shape: f32[1,1,64], index: 3, kind: input, shape index: {}]
  %s4 = inlined_call_operand.vmem [shape: f32[4,32,64], index: 4, kind: output, shape index: {}]
  %s5 = sld [smem:[#allocation0]]
  $region26: #{generator_forward.6} parent=0
    _
  %s7 = ssub.s32 1, %s5
  %s8 = scalar_select 0, %s7, %s5
  // Predicated region
  $region2: #{generator_forward.6} parent=0 // pred_check
    _
  $region3: #{generator_forward.6} parent=0 // pred_check_branch
    %10 = sbr.rel (0) target = $region5
  $region4: #{generator_forward.6} parent=0 // pred_region
    _
  $region5: #{generator_forward.6} parent=0 // pred_fallthru
    _
  // Predicated region
  $region6: #{generator_forward.6} parent=0 // pred_check
    _
  $region7: #{generator_forward.6} parent=0 // pred_check_branch
    %12 = sbr.rel (0) target = $region9
  $region8: #{generator_forward.6} parent=0 // pred_region
    _
  $region9: #{generator_forward.6} parent=0 // pred_fallthru
    _
  // Predicated region
  $region10: #{generator_forward.6} parent=0 // pred_check
    _
  $region11: #{generator_forward.6} parent=0 // pred_check_branch
    %14 = sbr.rel (0) target = $region13
  $region12: #{generator_forward.6} parent=0 // pred_region
    _
  $region13: #{generator_forward.6} parent=0 // pred_fallthru
    _
  // Predicated region
  $region14: #{generator_forward.6} parent=0 // pred_check
    _
  $region15: #{generator_forward.6} parent=0 // pred_check_branch
    %16 = sbr.rel (0) target = $region17
  $region16: #{generator_forward.6} parent=0 // pred_region
    _
  $region17: #{generator_forward.6} parent=0 // pred_fallthru
    _
  %v17 = vld [vmem:[%s0] sm:$0xff]
  %v18 = vld [vmem:[%s0 + $0x8] sm:$0xff]
  %v19 = vld [vmem:[%s0 + $0x10] sm:$0xff]
  %v20 = vld [vmem:[%s0 + $0x18] sm:$0xff]
  %v21 = vld [vmem:[%s0 + $0x20] sm:$0xff]
  %v22 = vld [vmem:[%s0 + $0x28] sm:$0xff]
  %v23 = vld [vmem:[%s0 + $0x30] sm:$0xff]
  %v24 = vld [vmem:[%s0 + $0x38] sm:$0xff]
  %v25 = vld [vmem:[%s0 + $0x40] sm:$0xff]
  %v26 = vld [vmem:[%s0 + $0x48] sm:$0xff]
  %v27 = vld [vmem:[%s0 + $0x50] sm:$0xff]
  %v28 = vld [vmem:[%s0 + $0x58] sm:$0xff]
  %v29 = vld [vmem:[%s0 + $0x60] sm:$0xff]
  %v30 = vld [vmem:[%s0 + $0x68] sm:$0xff]
  %v31 = vld [vmem:[%s0 + $0x70] sm:$0xff]
  %v32 = vld [vmem:[%s0 + $0x78] sm:$0xff]
  %v33 = vld [vmem:[%s0 + $0x80] sm:$0xff]
  %v34 = vld [vmem:[%s0 + $0x88] sm:$0xff]
  %v35 = vld [vmem:[%s0 + $0x90] sm:$0xff]
  %v36 = vld [vmem:[%s0 + $0x98] sm:$0xff]
  %v37 = vld [vmem:[%s0 + $0xa0] sm:$0xff]
  %v38 = vld [vmem:[%s0 + $0xa8] sm:$0xff]
  %v39 = vld [vmem:[%s0 + $0xb0] sm:$0xff]
  %v40 = vld [vmem:[%s0 + $0xb8] sm:$0xff]
  %v41 = vld [vmem:[%s0 + $0xc0] sm:$0xff]
  %v42 = vld [vmem:[%s0 + $0xc8] sm:$0xff]
  %v43 = vld [vmem:[%s0 + $0xd0] sm:$0xff]
  %v44 = vld [vmem:[%s0 + $0xd8] sm:$0xff]
  %v45 = vld [vmem:[%s0 + $0xe0] sm:$0xff]
  %v46 = vld [vmem:[%s0 + $0xe8] sm:$0xff]
  %v47 = vld [vmem:[%s0 + $0xf0] sm:$0xff]
  %v48 = vld [vmem:[%s0 + $0xf8] sm:$0xff]
  %v49 = vld [vmem:[%s0 + $0x100] sm:$0xff]
  %v50 = vld [vmem:[%s0 + $0x108] sm:$0xff]
  %v51 = vld [vmem:[%s0 + $0x110] sm:$0xff]
  %v52 = vld [vmem:[%s0 + $0x118] sm:$0xff]
  %v53 = vld [vmem:[%s0 + $0x120] sm:$0xff]
  %v54 = vld [vmem:[%s0 + $0x128] sm:$0xff]
  %v55 = vld [vmem:[%s0 + $0x130] sm:$0xff]
  %v56 = vld [vmem:[%s0 + $0x138] sm:$0xff]
  %v57 = vld [vmem:[%s0 + $0x140] sm:$0xff]
  %v58 = vld [vmem:[%s0 + $0x148] sm:$0xff]
  %v59 = vld [vmem:[%s0 + $0x150] sm:$0xff]
  %v60 = vld [vmem:[%s0 + $0x158] sm:$0xff]
  %v61 = vld [vmem:[%s0 + $0x160] sm:$0xff]
  %v62 = vld [vmem:[%s0 + $0x168] sm:$0xff]
  %v63 = vld [vmem:[%s0 + $0x170] sm:$0xff]
  %v64 = vld [vmem:[%s0 + $0x178] sm:$0xff]
  %v65 = vld [vmem:[%s0 + $0x180] sm:$0xff]
  %v66 = vld [vmem:[%s0 + $0x188] sm:$0xff]
  %v67 = vld [vmem:[%s0 + $0x190] sm:$0xff]
  %v68 = vld [vmem:[%s0 + $0x198] sm:$0xff]
  %v69 = vld [vmem:[%s0 + $0x1a0] sm:$0xff]
  %v70 = vld [vmem:[%s0 + $0x1a8] sm:$0xff]
  %v71 = vld [vmem:[%s0 + $0x1b0] sm:$0xff]
  %v72 = vld [vmem:[%s0 + $0x1b8] sm:$0xff]
  %v73 = vld [vmem:[%s0 + $0x1c0] sm:$0xff]
  %v74 = vld [vmem:[%s0 + $0x1c8] sm:$0xff]
  %v75 = vld [vmem:[%s0 + $0x1d0] sm:$0xff]
  %v76 = vld [vmem:[%s0 + $0x1d8] sm:$0xff]
  %v77 = vld [vmem:[%s0 + $0x1e0] sm:$0xff]
  %v78 = vld [vmem:[%s0 + $0x1e8] sm:$0xff]
  %v79 = vld [vmem:[%s0 + $0x1f0] sm:$0xff]
  %v80 = vld [vmem:[%s0 + $0x1f8] sm:$0xff]
  %v81 = vld [vmem:[%s1] sm:$0xff]
  %v82 = vld [vmem:[%s1 + $0x8] sm:$0xff]
  %v83 = vld [vmem:[%s1 + $0x10] sm:$0xff]
  %v84 = vld [vmem:[%s1 + $0x18] sm:$0xff]
  %v85 = vld [vmem:[%s1 + $0x20] sm:$0xff]
  %v86 = vld [vmem:[%s1 + $0x28] sm:$0xff]
  %v87 = vld [vmem:[%s1 + $0x30] sm:$0xff]
  %v88 = vld [vmem:[%s1 + $0x38] sm:$0xff]
  %v89 = vld [vmem:[%s1 + $0x40] sm:$0xff]
  %v90 = vld [vmem:[%s1 + $0x48] sm:$0xff]
  %v91 = vld [vmem:[%s1 + $0x50] sm:$0xff]
  %v92 = vld [vmem:[%s1 + $0x58] sm:$0xff]
  %v93 = vld [vmem:[%s1 + $0x60] sm:$0xff]
  %v94 = vld [vmem:[%s1 + $0x68] sm:$0xff]
  %v95 = vld [vmem:[%s1 + $0x70] sm:$0xff]
  %v96 = vld [vmem:[%s1 + $0x78] sm:$0xff]
  %v97 = vld [vmem:[%s1 + $0x80] sm:$0xff]
  %v98 = vld [vmem:[%s1 + $0x88] sm:$0xff]
  %v99 = vld [vmem:[%s1 + $0x90] sm:$0xff]
  %v100 = vld [vmem:[%s1 + $0x98] sm:$0xff]
  %v101 = vld [vmem:[%s1 + $0xa0] sm:$0xff]
  %v102 = vld [vmem:[%s1 + $0xa8] sm:$0xff]
  %v103 = vld [vmem:[%s1 + $0xb0] sm:$0xff]
  %v104 = vld [vmem:[%s1 + $0xb8] sm:$0xff]
  %v105 = vld [vmem:[%s1 + $0xc0] sm:$0xff]
  %v106 = vld [vmem:[%s1 + $0xc8] sm:$0xff]
  %v107 = vld [vmem:[%s1 + $0xd0] sm:$0xff]
  %v108 = vld [vmem:[%s1 + $0xd8] sm:$0xff]
  %v109 = vld [vmem:[%s1 + $0xe0] sm:$0xff]
  %v110 = vld [vmem:[%s1 + $0xe8] sm:$0xff]
  %v111 = vld [vmem:[%s1 + $0xf0] sm:$0xff]
  %v112 = vld [vmem:[%s1 + $0xf8] sm:$0xff]
  %v113 = vld [vmem:[%s1 + $0x100] sm:$0xff]
  %v114 = vld [vmem:[%s1 + $0x108] sm:$0xff]
  %v115 = vld [vmem:[%s1 + $0x110] sm:$0xff]
  %v116 = vld [vmem:[%s1 + $0x118] sm:$0xff]
  %v117 = vld [vmem:[%s1 + $0x120] sm:$0xff]
  %v118 = vld [vmem:[%s1 + $0x128] sm:$0xff]
  %v119 = vld [vmem:[%s1 + $0x130] sm:$0xff]
  %v120 = vld [vmem:[%s1 + $0x138] sm:$0xff]
  %v121 = vld [vmem:[%s1 + $0x140] sm:$0xff]
  %v122 = vld [vmem:[%s1 + $0x148] sm:$0xff]
  %v123 = vld [vmem:[%s1 + $0x150] sm:$0xff]
  %v124 = vld [vmem:[%s1 + $0x158] sm:$0xff]
  %v125 = vld [vmem:[%s1 + $0x160] sm:$0xff]
  %v126 = vld [vmem:[%s1 + $0x168] sm:$0xff]
  %v127 = vld [vmem:[%s1 + $0x170] sm:$0xff]
  %v128 = vld [vmem:[%s1 + $0x178] sm:$0xff]
  %v129 = vld [vmem:[%s1 + $0x180] sm:$0xff]
  %v130 = vld [vmem:[%s1 + $0x188] sm:$0xff]
  %v131 = vld [vmem:[%s1 + $0x190] sm:$0xff]
  %v132 = vld [vmem:[%s1 + $0x198] sm:$0xff]
  %v133 = vld [vmem:[%s1 + $0x1a0] sm:$0xff]
  %v134 = vld [vmem:[%s1 + $0x1a8] sm:$0xff]
  %v135 = vld [vmem:[%s1 + $0x1b0] sm:$0xff]
  %v136 = vld [vmem:[%s1 + $0x1b8] sm:$0xff]
  %v137 = vld [vmem:[%s1 + $0x1c0] sm:$0xff]
  %v138 = vld [vmem:[%s1 + $0x1c8] sm:$0xff]
  %v139 = vld [vmem:[%s1 + $0x1d0] sm:$0xff]
  %v140 = vld [vmem:[%s1 + $0x1d8] sm:$0xff]
  %v141 = vld [vmem:[%s1 + $0x1e0] sm:$0xff]
  %v142 = vld [vmem:[%s1 + $0x1e8] sm:$0xff]
  %v143 = vld [vmem:[%s1 + $0x1f0] sm:$0xff]
  %v144 = vld [vmem:[%s1 + $0x1f8] sm:$0xff]
  %v145 = vld [vmem:[%s1 + $0x200] sm:$0xff]
  %v146 = vld [vmem:[%s1 + $0x208] sm:$0xff]
  %v147 = vld [vmem:[%s1 + $0x210] sm:$0xff]
  %v148 = vld [vmem:[%s1 + $0x218] sm:$0xff]
  %v149 = vld [vmem:[%s1 + $0x220] sm:$0xff]
  %v150 = vld [vmem:[%s1 + $0x228] sm:$0xff]
  %v151 = vld [vmem:[%s1 + $0x230] sm:$0xff]
  %v152 = vld [vmem:[%s1 + $0x238] sm:$0xff]
  %v153 = vld [vmem:[%s1 + $0x240] sm:$0xff]
  %v154 = vld [vmem:[%s1 + $0x248] sm:$0xff]
  %v155 = vld [vmem:[%s1 + $0x250] sm:$0xff]
  %v156 = vld [vmem:[%s1 + $0x258] sm:$0xff]
  %v157 = vld [vmem:[%s1 + $0x260] sm:$0xff]
  %v158 = vld [vmem:[%s1 + $0x268] sm:$0xff]
  %v159 = vld [vmem:[%s1 + $0x270] sm:$0xff]
  %v160 = vld [vmem:[%s1 + $0x278] sm:$0xff]
  %v161 = vld [vmem:[%s1 + $0x280] sm:$0xff]
  %v162 = vld [vmem:[%s1 + $0x288] sm:$0xff]
  %v163 = vld [vmem:[%s1 + $0x290] sm:$0xff]
  %v164 = vld [vmem:[%s1 + $0x298] sm:$0xff]
  %v165 = vld [vmem:[%s1 + $0x2a0] sm:$0xff]
  %v166 = vld [vmem:[%s1 + $0x2a8] sm:$0xff]
  %v167 = vld [vmem:[%s1 + $0x2b0] sm:$0xff]
  %v168 = vld [vmem:[%s1 + $0x2b8] sm:$0xff]
  %v169 = vld [vmem:[%s1 + $0x2c0] sm:$0xff]
  %v170 = vld [vmem:[%s1 + $0x2c8] sm:$0xff]
  %v171 = vld [vmem:[%s1 + $0x2d0] sm:$0xff]
  %v172 = vld [vmem:[%s1 + $0x2d8] sm:$0xff]
  %v173 = vld [vmem:[%s1 + $0x2e0] sm:$0xff]
  %v174 = vld [vmem:[%s1 + $0x2e8] sm:$0xff]
  %v175 = vld [vmem:[%s1 + $0x2f0] sm:$0xff]
  %v176 = vld [vmem:[%s1 + $0x2f8] sm:$0xff]
  %v177 = vld [vmem:[%s1 + $0x300] sm:$0xff]
  %v178 = vld [vmem:[%s1 + $0x308] sm:$0xff]
  %v179 = vld [vmem:[%s1 + $0x310] sm:$0xff]
  %v180 = vld [vmem:[%s1 + $0x318] sm:$0xff]
  %v181 = vld [vmem:[%s1 + $0x320] sm:$0xff]
  %v182 = vld [vmem:[%s1 + $0x328] sm:$0xff]
  %v183 = vld [vmem:[%s1 + $0x330] sm:$0xff]
  %v184 = vld [vmem:[%s1 + $0x338] sm:$0xff]
  %v185 = vld [vmem:[%s1 + $0x340] sm:$0xff]
  %v186 = vld [vmem:[%s1 + $0x348] sm:$0xff]
  %v187 = vld [vmem:[%s1 + $0x350] sm:$0xff]
  %v188 = vld [vmem:[%s1 + $0x358] sm:$0xff]
  %v189 = vld [vmem:[%s1 + $0x360] sm:$0xff]
  %v190 = vld [vmem:[%s1 + $0x368] sm:$0xff]
  %v191 = vld [vmem:[%s1 + $0x370] sm:$0xff]
  %v192 = vld [vmem:[%s1 + $0x378] sm:$0xff]
  %v193 = vld [vmem:[%s1 + $0x380] sm:$0xff]
  %v194 = vld [vmem:[%s1 + $0x388] sm:$0xff]
  %v195 = vld [vmem:[%s1 + $0x390] sm:$0xff]
  %v196 = vld [vmem:[%s1 + $0x398] sm:$0xff]
  %v197 = vld [vmem:[%s1 + $0x3a0] sm:$0xff]
  %v198 = vld [vmem:[%s1 + $0x3a8] sm:$0xff]
  %v199 = vld [vmem:[%s1 + $0x3b0] sm:$0xff]
  %v200 = vld [vmem:[%s1 + $0x3b8] sm:$0xff]
  %v201 = vld [vmem:[%s1 + $0x3c0] sm:$0xff]
  %v202 = vld [vmem:[%s1 + $0x3c8] sm:$0xff]
  %v203 = vld [vmem:[%s1 + $0x3d0] sm:$0xff]
  %v204 = vld [vmem:[%s1 + $0x3d8] sm:$0xff]
  %v205 = vld [vmem:[%s1 + $0x3e0] sm:$0xff]
  %v206 = vld [vmem:[%s1 + $0x3e8] sm:$0xff]
  %v207 = vld [vmem:[%s1 + $0x3f0] sm:$0xff]
  %v208 = vld [vmem:[%s1 + $0x3f8] sm:$0xff]
  %v209 = vld [vmem:[%s1 + $0x400] sm:$0xff]
  %v210 = vld [vmem:[%s1 + $0x408] sm:$0xff]
  %v211 = vld [vmem:[%s1 + $0x410] sm:$0xff]
  %v212 = vld [vmem:[%s1 + $0x418] sm:$0xff]
  %v213 = vld [vmem:[%s1 + $0x420] sm:$0xff]
  %v214 = vld [vmem:[%s1 + $0x428] sm:$0xff]
  %v215 = vld [vmem:[%s1 + $0x430] sm:$0xff]
  %v216 = vld [vmem:[%s1 + $0x438] sm:$0xff]
  %v217 = vld [vmem:[%s1 + $0x440] sm:$0xff]
  %v218 = vld [vmem:[%s1 + $0x448] sm:$0xff]
  %v219 = vld [vmem:[%s1 + $0x450] sm:$0xff]
  %v220 = vld [vmem:[%s1 + $0x458] sm:$0xff]
  %v221 = vld [vmem:[%s1 + $0x460] sm:$0xff]
  %v222 = vld [vmem:[%s1 + $0x468] sm:$0xff]
  %v223 = vld [vmem:[%s1 + $0x470] sm:$0xff]
  %v224 = vld [vmem:[%s1 + $0x478] sm:$0xff]
  %v225 = vld [vmem:[%s1 + $0x480] sm:$0xff]
  %v226 = vld [vmem:[%s1 + $0x488] sm:$0xff]
  %v227 = vld [vmem:[%s1 + $0x490] sm:$0xff]
  %v228 = vld [vmem:[%s1 + $0x498] sm:$0xff]
  %v229 = vld [vmem:[%s1 + $0x4a0] sm:$0xff]
  %v230 = vld [vmem:[%s1 + $0x4a8] sm:$0xff]
  %v231 = vld [vmem:[%s1 + $0x4b0] sm:$0xff]
  %v232 = vld [vmem:[%s1 + $0x4b8] sm:$0xff]
  %v233 = vld [vmem:[%s1 + $0x4c0] sm:$0xff]
  %v234 = vld [vmem:[%s1 + $0x4c8] sm:$0xff]
  %v235 = vld [vmem:[%s1 + $0x4d0] sm:$0xff]
  %v236 = vld [vmem:[%s1 + $0x4d8] sm:$0xff]
  %v237 = vld [vmem:[%s1 + $0x4e0] sm:$0xff]
  %v238 = vld [vmem:[%s1 + $0x4e8] sm:$0xff]
  %v239 = vld [vmem:[%s1 + $0x4f0] sm:$0xff]
  %v240 = vld [vmem:[%s1 + $0x4f8] sm:$0xff]
  %v241 = vld [vmem:[%s1 + $0x500] sm:$0xff]
  %v242 = vld [vmem:[%s1 + $0x508] sm:$0xff]
  %v243 = vld [vmem:[%s1 + $0x510] sm:$0xff]
  %v244 = vld [vmem:[%s1 + $0x518] sm:$0xff]
  %v245 = vld [vmem:[%s1 + $0x520] sm:$0xff]
  %v246 = vld [vmem:[%s1 + $0x528] sm:$0xff]
  %v247 = vld [vmem:[%s1 + $0x530] sm:$0xff]
  %v248 = vld [vmem:[%s1 + $0x538] sm:$0xff]
  %v249 = vld [vmem:[%s1 + $0x540] sm:$0xff]
  %v250 = vld [vmem:[%s1 + $0x548] sm:$0xff]
  %v251 = vld [vmem:[%s1 + $0x550] sm:$0xff]
  %v252 = vld [vmem:[%s1 + $0x558] sm:$0xff]
  %v253 = vld [vmem:[%s1 + $0x560] sm:$0xff]
  %v254 = vld [vmem:[%s1 + $0x568] sm:$0xff]
  %v255 = vld [vmem:[%s1 + $0x570] sm:$0xff]
  %v256 = vld [vmem:[%s1 + $0x578] sm:$0xff]
  %v257 = vld [vmem:[%s1 + $0x580] sm:$0xff]
  %v258 = vld [vmem:[%s1 + $0x588] sm:$0xff]
  %v259 = vld [vmem:[%s1 + $0x590] sm:$0xff]
  %v260 = vld [vmem:[%s1 + $0x598] sm:$0xff]
  %v261 = vld [vmem:[%s1 + $0x5a0] sm:$0xff]
  %v262 = vld [vmem:[%s1 + $0x5a8] sm:$0xff]
  %v263 = vld [vmem:[%s1 + $0x5b0] sm:$0xff]
  %v264 = vld [vmem:[%s1 + $0x5b8] sm:$0xff]
  %v265 = vld [vmem:[%s1 + $0x5c0] sm:$0xff]
  %v266 = vld [vmem:[%s1 + $0x5c8] sm:$0xff]
  %v267 = vld [vmem:[%s1 + $0x5d0] sm:$0xff]
  %v268 = vld [vmem:[%s1 + $0x5d8] sm:$0xff]
  %v269 = vld [vmem:[%s1 + $0x5e0] sm:$0xff]
  %v270 = vld [vmem:[%s1 + $0x5e8] sm:$0xff]
  %v271 = vld [vmem:[%s1 + $0x5f0] sm:$0xff]
  %v272 = vld [vmem:[%s1 + $0x5f8] sm:$0xff]
  %v273 = vld [vmem:[%s1 + $0x600] sm:$0xff]
  %v274 = vld [vmem:[%s1 + $0x608] sm:$0xff]
  %v275 = vld [vmem:[%s1 + $0x610] sm:$0xff]
  %v276 = vld [vmem:[%s1 + $0x618] sm:$0xff]
  %v277 = vld [vmem:[%s1 + $0x620] sm:$0xff]
  %v278 = vld [vmem:[%s1 + $0x628] sm:$0xff]
  %v279 = vld [vmem:[%s1 + $0x630] sm:$0xff]
  %v280 = vld [vmem:[%s1 + $0x638] sm:$0xff]
  %v281 = vld [vmem:[%s1 + $0x640] sm:$0xff]
  %v282 = vld [vmem:[%s1 + $0x648] sm:$0xff]
  %v283 = vld [vmem:[%s1 + $0x650] sm:$0xff]
  %v284 = vld [vmem:[%s1 + $0x658] sm:$0xff]
  %v285 = vld [vmem:[%s1 + $0x660] sm:$0xff]
  %v286 = vld [vmem:[%s1 + $0x668] sm:$0xff]
  %v287 = vld [vmem:[%s1 + $0x670] sm:$0xff]
  %v288 = vld [vmem:[%s1 + $0x678] sm:$0xff]
  %v289 = vld [vmem:[%s1 + $0x680] sm:$0xff]
  %v290 = vld [vmem:[%s1 + $0x688] sm:$0xff]
  %v291 = vld [vmem:[%s1 + $0x690] sm:$0xff]
  %v292 = vld [vmem:[%s1 + $0x698] sm:$0xff]
  %v293 = vld [vmem:[%s1 + $0x6a0] sm:$0xff]
  %v294 = vld [vmem:[%s1 + $0x6a8] sm:$0xff]
  %v295 = vld [vmem:[%s1 + $0x6b0] sm:$0xff]
  %v296 = vld [vmem:[%s1 + $0x6b8] sm:$0xff]
  %v297 = vld [vmem:[%s1 + $0x6c0] sm:$0xff]
  %v298 = vld [vmem:[%s1 + $0x6c8] sm:$0xff]
  %v299 = vld [vmem:[%s1 + $0x6d0] sm:$0xff]
  %v300 = vld [vmem:[%s1 + $0x6d8] sm:$0xff]
  %v301 = vld [vmem:[%s1 + $0x6e0] sm:$0xff]
  %v302 = vld [vmem:[%s1 + $0x6e8] sm:$0xff]
  %v303 = vld [vmem:[%s1 + $0x6f0] sm:$0xff]
  %v304 = vld [vmem:[%s1 + $0x6f8] sm:$0xff]
  %v305 = vld [vmem:[%s1 + $0x700] sm:$0xff]
  %v306 = vld [vmem:[%s1 + $0x708] sm:$0xff]
  %v307 = vld [vmem:[%s1 + $0x710] sm:$0xff]
  %v308 = vld [vmem:[%s1 + $0x718] sm:$0xff]
  %v309 = vld [vmem:[%s1 + $0x720] sm:$0xff]
  %v310 = vld [vmem:[%s1 + $0x728] sm:$0xff]
  %v311 = vld [vmem:[%s1 + $0x730] sm:$0xff]
  %v312 = vld [vmem:[%s1 + $0x738] sm:$0xff]
  %v313 = vld [vmem:[%s1 + $0x740] sm:$0xff]
  %v314 = vld [vmem:[%s1 + $0x748] sm:$0xff]
  %v315 = vld [vmem:[%s1 + $0x750] sm:$0xff]
  %v316 = vld [vmem:[%s1 + $0x758] sm:$0xff]
  %v317 = vld [vmem:[%s1 + $0x760] sm:$0xff]
  %v318 = vld [vmem:[%s1 + $0x768] sm:$0xff]
  %v319 = vld [vmem:[%s1 + $0x770] sm:$0xff]
  %v320 = vld [vmem:[%s1 + $0x778] sm:$0xff]
  %v321 = vld [vmem:[%s1 + $0x780] sm:$0xff]
  %v322 = vld [vmem:[%s1 + $0x788] sm:$0xff]
  %v323 = vld [vmem:[%s1 + $0x790] sm:$0xff]
  %v324 = vld [vmem:[%s1 + $0x798] sm:$0xff]
  %v325 = vld [vmem:[%s1 + $0x7a0] sm:$0xff]
  %v326 = vld [vmem:[%s1 + $0x7a8] sm:$0xff]
  %v327 = vld [vmem:[%s1 + $0x7b0] sm:$0xff]
  %v328 = vld [vmem:[%s1 + $0x7b8] sm:$0xff]
  %v329 = vld [vmem:[%s1 + $0x7c0] sm:$0xff]
  %v330 = vld [vmem:[%s1 + $0x7c8] sm:$0xff]
  %v331 = vld [vmem:[%s1 + $0x7d0] sm:$0xff]
  %v332 = vld [vmem:[%s1 + $0x7d8] sm:$0xff]
  %v333 = vld [vmem:[%s1 + $0x7e0] sm:$0xff]
  %v334 = vld [vmem:[%s1 + $0x7e8] sm:$0xff]
  %v335 = vld [vmem:[%s1 + $0x7f0] sm:$0xff]
  %v336 = vld [vmem:[%s1 + $0x7f8] sm:$0xff]
  %337 = vmatprep.subr.mxu0 0.0
  %338 = vmatpush1.msra.mxu0 %v81
  %339 = vmatprep.subr.mxu0 0.0
  %340 = vmatpush1.msra.mxu0 %v82
  %341 = vmatprep.subr.mxu0 0.0
  %342 = vmatpush1.msra.mxu0 %v83
  %343 = vmatprep.subr.mxu0 0.0
  %344 = vmatpush1.msra.mxu0 %v84
  %345 = vmatprep.subr.mxu0 0.0
  %346 = vmatpush1.msra.mxu0 %v85
  %347 = vmatprep.subr.mxu0 0.0
  %348 = vmatpush1.msra.mxu0 %v86
  %349 = vmatprep.subr.mxu0 0.0
  %350 = vmatpush1.msra.mxu0 %v87
  %351 = vmatprep.subr.mxu0 0.0
  %352 = vmatpush1.msra.mxu0 %v88
  %353 = vmatprep.subr.mxu0 0.0
  %354 = vmatpush1.msra.mxu0 %v89
  %355 = vmatprep.subr.mxu0 0.0
  %356 = vmatpush1.msra.mxu0 %v90
  %357 = vmatprep.subr.mxu0 0.0
  %358 = vmatpush1.msra.mxu0 %v91
  %359 = vmatprep.subr.mxu0 0.0
  %360 = vmatpush1.msra.mxu0 %v92
  %361 = vmatprep.subr.mxu0 0.0
  %362 = vmatpush1.msra.mxu0 %v93
  %363 = vmatprep.subr.mxu0 0.0
  %364 = vmatpush1.msra.mxu0 %v94
  %365 = vmatprep.subr.mxu0 0.0
  %366 = vmatpush1.msra.mxu0 %v95
  %367 = vmatprep.subr.mxu0 0.0
  %368 = vmatpush1.msra.mxu0 %v96
  %369 = vmatprep.subr.mxu0 0.0
  %370 = vmatpush1.msra.mxu0 %v97
  %371 = vmatprep.subr.mxu0 0.0
  %372 = vmatpush1.msra.mxu0 %v98
  %373 = vmatprep.subr.mxu0 0.0
  %374 = vmatpush1.msra.mxu0 %v99
  %375 = vmatprep.subr.mxu0 0.0
  %376 = vmatpush1.msra.mxu0 %v100
  %377 = vmatprep.subr.mxu0 0.0
  %378 = vmatpush1.msra.mxu0 %v101
  %379 = vmatprep.subr.mxu0 0.0
  %380 = vmatpush1.msra.mxu0 %v102
  %381 = vmatprep.subr.mxu0 0.0
  %382 = vmatpush1.msra.mxu0 %v103
  %383 = vmatprep.subr.mxu0 0.0
  %384 = vmatpush1.msra.mxu0 %v104
  %385 = vmatprep.subr.mxu0 0.0
  %386 = vmatpush1.msra.mxu0 %v105
  %387 = vmatprep.subr.mxu0 0.0
  %388 = vmatpush1.msra.mxu0 %v106
  %389 = vmatprep.subr.mxu0 0.0
  %390 = vmatpush1.msra.mxu0 %v107
  %391 = vmatprep.subr.mxu0 0.0
  %392 = vmatpush1.msra.mxu0 %v108
  %393 = vmatprep.subr.mxu0 0.0
  %394 = vmatpush1.msra.mxu0 %v109
  %395 = vmatprep.subr.mxu0 0.0
  %396 = vmatpush1.msra.mxu0 %v110
  %397 = vmatprep.subr.mxu0 0.0
  %398 = vmatpush1.msra.mxu0 %v111
  %399 = vmatprep.subr.mxu0 0.0
  %400 = vmatpush1.msra.mxu0 %v112
  %401 = vmatprep.mubr.f32.mxu0 %v18
  %402 = vmatmul.mubr.f32.gmra.mrb[0].mxu0 %v17
  %v403 = vpop.f32.mrb[0].mxu0
  %v404 = vadd.f32 0.0, %v403
  %v405 = vpop.f32.mrb[0].mxu0
  %406 = vmatprep.mubr.f32.mxu0 %v22
  %407 = vmatmul.mubr.f32.gmra.mrb[0].mxu0 %v21
  %v408 = vpop.f32.mrb[0].mxu0
  %v409 = vadd.f32 0.0, %v408
  %v410 = vpop.f32.mrb[0].mxu0
  %411 = vmatprep.mubr.f32.mxu0 %v26
  %412 = vmatmul.mubr.f32.gmra.mrb[0].mxu0 %v25
  %v413 = vpop.f32.mrb[0].mxu0
  %v414 = vadd.f32 0.0, %v413
  %v415 = vpop.f32.mrb[0].mxu0
  %416 = vmatprep.mubr.f32.mxu0 %v30
  %417 = vmatmul.mubr.f32.gmra.mrb[0].mxu0 %v29
  %v418 = vpop.f32.mrb[0].mxu0
  %v419 = vadd.f32 0.0, %v418
  %v420 = vpop.f32.mrb[0].mxu0
  %421 = vdwg.mxu0
  %422 = vmatprep.subr.mxu0 0.0
  %423 = vmatpush1.msra.mxu0 %v113
  %424 = vmatprep.subr.mxu0 0.0
  %425 = vmatpush1.msra.mxu0 %v114
  %426 = vmatprep.subr.mxu0 0.0
  %427 = vmatpush1.msra.mxu0 %v115
  %428 = vmatprep.subr.mxu0 0.0
  %429 = vmatpush1.msra.mxu0 %v116
  %430 = vmatprep.subr.mxu0 0.0
  %431 = vmatpush1.msra.mxu0 %v117
  %432 = vmatprep.subr.mxu0 0.0
  %433 = vmatpush1.msra.mxu0 %v118
  %434 = vmatprep.subr.mxu0 0.0
  %435 = vmatpush1.msra.mxu0 %v119
  %436 = vmatprep.subr.mxu0 0.0
  %437 = vmatpush1.msra.mxu0 %v120
  %438 = vmatprep.subr.mxu0 0.0
  %439 = vmatpush1.msra.mxu0 %v121
  %440 = vmatprep.subr.mxu0 0.0
  %441 = vmatpush1.msra.mxu0 %v122
  %442 = vmatprep.subr.mxu0 0.0
  %443 = vmatpush1.msra.mxu0 %v123
  %444 = vmatprep.subr.mxu0 0.0
  %445 = vmatpush1.msra.mxu0 %v124
  %446 = vmatprep.subr.mxu0 0.0
  %447 = vmatpush1.msra.mxu0 %v125
  %448 = vmatprep.subr.mxu0 0.0
  %449 = vmatpush1.msra.mxu0 %v126
  %450 = vmatprep.subr.mxu0 0.0
  %451 = vmatpush1.msra.mxu0 %v127
  %452 = vmatprep.subr.mxu0 0.0
  %453 = vmatpush1.msra.mxu0 %v128
  %454 = vmatprep.subr.mxu0 0.0
  %455 = vmatpush1.msra.mxu0 %v129
  %456 = vmatprep.subr.mxu0 0.0
  %457 = vmatpush1.msra.mxu0 %v130
  %458 = vmatprep.subr.mxu0 0.0
  %459 = vmatpush1.msra.mxu0 %v131
  %460 = vmatprep.subr.mxu0 0.0
  %461 = vmatpush1.msra.mxu0 %v132
  %462 = vmatprep.subr.mxu0 0.0
  %463 = vmatpush1.msra.mxu0 %v133
  %464 = vmatprep.subr.mxu0 0.0
  %465 = vmatpush1.msra.mxu0 %v134
  %466 = vmatprep.subr.mxu0 0.0
  %467 = vmatpush1.msra.mxu0 %v135
  %468 = vmatprep.subr.mxu0 0.0
  %469 = vmatpush1.msra.mxu0 %v136
  %470 = vmatprep.subr.mxu0 0.0
  %471 = vmatpush1.msra.mxu0 %v137
  %472 = vmatprep.subr.mxu0 0.0
  %473 = vmatpush1.msra.mxu0 %v138
  %474 = vmatprep.subr.mxu0 0.0
  %475 = vmatpush1.msra.mxu0 %v139
  %476 = vmatprep.subr.mxu0 0.0
  %477 = vmatpush1.msra.mxu0 %v140
  %478 = vmatprep.subr.mxu0 0.0
  %479 = vmatpush1.msra.mxu0 %v141
  %480 = vmatprep.subr.mxu0 0.0
  %481 = vmatpush1.msra.mxu0 %v142
  %482 = vmatprep.subr.mxu0 0.0
  %483 = vmatpush1.msra.mxu0 %v143
  %484 = vmatprep.subr.mxu0 0.0
  %485 = vmatpush1.msra.mxu0 %v144
  %486 = vmatprep.mubr.f32.mxu0 %v20
  %487 = vmatmul.mubr.f32.gmra.mrb[0].mxu0 %v19
  %v488 = vpop.f32.mrb[0].mxu0
  %v489 = vadd.f32 %v404, %v488
  %v490 = vpop.f32.mrb[0].mxu0
  %491 = vmatprep.mubr.f32.mxu0 %v24
  %492 = vmatmul.mubr.f32.gmra.mrb[0].mxu0 %v23
  %v493 = vpop.f32.mrb[0].mxu0
  %v494 = vadd.f32 %v409, %v493
  %v495 = vpop.f32.mrb[0].mxu0
  %496 = vmatprep.mubr.f32.mxu0 %v28
  %497 = vmatmul.mubr.f32.gmra.mrb[0].mxu0 %v27
  %v498 = vpop.f32.mrb[0].mxu0
  %v499 = vadd.f32 %v414, %v498
  %v500 = vpop.f32.mrb[0].mxu0
  %501 = vmatprep.mubr.f32.mxu0 %v32
  %502 = vmatmul.mubr.f32.gmra.mrb[0].mxu0 %v31
  %v503 = vpop.f32.mrb[0].mxu0
  %v504 = vadd.f32 %v419, %v503
  %v505 = vpop.f32.mrb[0].mxu0
  %506 = vdwg.mxu0
  %507 = vmatprep.subr.mxu0 0.0
  %508 = vmatpush1.msra.mxu0 %v145
  %509 = vmatprep.subr.mxu0 0.0
  %510 = vmatpush1.msra.mxu0 %v146
  %511 = vmatprep.subr.mxu0 0.0
  %512 = vmatpush1.msra.mxu0 %v147
  %513 = vmatprep.subr.mxu0 0.0
  %514 = vmatpush1.msra.mxu0 %v148
  %515 = vmatprep.subr.mxu0 0.0
  %516 = vmatpush1.msra.mxu0 %v149
  %517 = vmatprep.subr.mxu0 0.0
  %518 = vmatpush1.msra.mxu0 %v150
  %519 = vmatprep.subr.mxu0 0.0
  %520 = vmatpush1.msra.mxu0 %v151
  %521 = vmatprep.subr.mxu0 0.0
  %522 = vmatpush1.msra.mxu0 %v152
  %523 = vmatprep.subr.mxu0 0.0
  %524 = vmatpush1.msra.mxu0 %v153
  %525 = vmatprep.subr.mxu0 0.0
  %526 = vmatpush1.msra.mxu0 %v154
  %527 = vmatprep.subr.mxu0 0.0
  %528 = vmatpush1.msra.mxu0 %v155
  %529 = vmatprep.subr.mxu0 0.0
  %530 = vmatpush1.msra.mxu0 %v156
  %531 = vmatprep.subr.mxu0 0.0
  %532 = vmatpush1.msra.mxu0 %v157
  %533 = vmatprep.subr.mxu0 0.0
  %534 = vmatpush1.msra.mxu0 %v158
  %535 = vmatprep.subr.mxu0 0.0
  %536 = vmatpush1.msra.mxu0 %v159
  %537 = vmatprep.subr.mxu0 0.0
  %538 = vmatpush1.msra.mxu0 %v160
  %539 = vmatprep.subr.mxu0 0.0
  %540 = vmatpush1.msra.mxu0 %v161
  %541 = vmatprep.subr.mxu0 0.0
  %542 = vmatpush1.msra.mxu0 %v162
  %543 = vmatprep.subr.mxu0 0.0
  %544 = vmatpush1.msra.mxu0 %v163
  %545 = vmatprep.subr.mxu0 0.0
  %546 = vmatpush1.msra.mxu0 %v164
  %547 = vmatprep.subr.mxu0 0.0
  %548 = vmatpush1.msra.mxu0 %v165
  %549 = vmatprep.subr.mxu0 0.0
  %550 = vmatpush1.msra.mxu0 %v166
  %551 = vmatprep.subr.mxu0 0.0
  %552 = vmatpush1.msra.mxu0 %v167
  %553 = vmatprep.subr.mxu0 0.0
  %554 = vmatpush1.msra.mxu0 %v168
  %555 = vmatprep.subr.mxu0 0.0
  %556 = vmatpush1.msra.mxu0 %v169
  %557 = vmatprep.subr.mxu0 0.0
  %558 = vmatpush1.msra.mxu0 %v170
  %559 = vmatprep.subr.mxu0 0.0
  %560 = vmatpush1.msra.mxu0 %v171
  %561 = vmatprep.subr.mxu0 0.0
  %562 = vmatpush1.msra.mxu0 %v172
  %563 = vmatprep.subr.mxu0 0.0
  %564 = vmatpush1.msra.mxu0 %v173
  %565 = vmatprep.subr.mxu0 0.0
  %566 = vmatpush1.msra.mxu0 %v174
  %567 = vmatprep.subr.mxu0 0.0
  %568 = vmatpush1.msra.mxu0 %v175
  %569 = vmatprep.subr.mxu0 0.0
  %570 = vmatpush1.msra.mxu0 %v176
  %571 = vmatprep.mubr.f32.mxu0 %v34
  %572 = vmatmul.mubr.f32.gmra.mrb[0].mxu0 %v33
  %v573 = vpop.f32.mrb[0].mxu0
  %v574 = vadd.f32 0.0, %v573
  %v575 = vpop.f32.mrb[0].mxu0
  %576 = vmatprep.mubr.f32.mxu0 %v38
  %577 = vmatmul.mubr.f32.gmra.mrb[0].mxu0 %v37
  %v578 = vpop.f32.mrb[0].mxu0
  %v579 = vadd.f32 0.0, %v578
  %v580 = vpop.f32.mrb[0].mxu0
  %581 = vmatprep.mubr.f32.mxu0 %v42
  %582 = vmatmul.mubr.f32.gmra.mrb[0].mxu0 %v41
  %v583 = vpop.f32.mrb[0].mxu0
  %v584 = vadd.f32 0.0, %v583
  %v585 = vpop.f32.mrb[0].mxu0
  %586 = vmatprep.mubr.f32.mxu0 %v46
  %587 = vmatmul.mubr.f32.gmra.mrb[0].mxu0 %v45
  %v588 = vpop.f32.mrb[0].mxu0
  %v589 = vadd.f32 0.0, %v588
  %v590 = vpop.f32.mrb[0].mxu0
  %591 = vdwg.mxu0
  %592 = vmatprep.subr.mxu0 0.0
  %593 = vmatpush1.msra.mxu0 %v177
  %594 = vmatprep.subr.mxu0 0.0
  %595 = vmatpush1.msra.mxu0 %v178
  %596 = vmatprep.subr.mxu0 0.0
  %597 = vmatpush1.msra.mxu0 %v179
  %598 = vmatprep.subr.mxu0 0.0
  %599 = vmatpush1.msra.mxu0 %v180
  %600 = vmatprep.subr.mxu0 0.0
  %601 = vmatpush1.msra.mxu0 %v181
  %602 = vmatprep.subr.mxu0 0.0
  %603 = vmatpush1.msra.mxu0 %v182
  %604 = vmatprep.subr.mxu0 0.0
  %605 = vmatpush1.msra.mxu0 %v183
  %606 = vmatprep.subr.mxu0 0.0
  %607 = vmatpush1.msra.mxu0 %v184
  %608 = vmatprep.subr.mxu0 0.0
  %609 = vmatpush1.msra.mxu0 %v185
  %610 = vmatprep.subr.mxu0 0.0
  %611 = vmatpush1.msra.mxu0 %v186
  %612 = vmatprep.subr.mxu0 0.0
  %613 = vmatpush1.msra.mxu0 %v187
  %614 = vmatprep.subr.mxu0 0.0
  %615 = vmatpush1.msra.mxu0 %v188
  %616 = vmatprep.subr.mxu0 0.0
  %617 = vmatpush1.msra.mxu0 %v189
  %618 = vmatprep.subr.mxu0 0.0
  %619 = vmatpush1.msra.mxu0 %v190
  %620 = vmatprep.subr.mxu0 0.0
  %621 = vmatpush1.msra.mxu0 %v191
  %622 = vmatprep.subr.mxu0 0.0
  %623 = vmatpush1.msra.mxu0 %v192
  %624 = vmatprep.subr.mxu0 0.0
  %625 = vmatpush1.msra.mxu0 %v193
  %626 = vmatprep.subr.mxu0 0.0
  %627 = vmatpush1.msra.mxu0 %v194
  %628 = vmatprep.subr.mxu0 0.0
  %629 = vmatpush1.msra.mxu0 %v195
  %630 = vmatprep.subr.mxu0 0.0
  %631 = vmatpush1.msra.mxu0 %v196
  %632 = vmatprep.subr.mxu0 0.0
  %633 = vmatpush1.msra.mxu0 %v197
  %634 = vmatprep.subr.mxu0 0.0
  %635 = vmatpush1.msra.mxu0 %v198
  %636 = vmatprep.subr.mxu0 0.0
  %637 = vmatpush1.msra.mxu0 %v199
  %638 = vmatprep.subr.mxu0 0.0
  %639 = vmatpush1.msra.mxu0 %v200
  %640 = vmatprep.subr.mxu0 0.0
  %641 = vmatpush1.msra.mxu0 %v201
  %642 = vmatprep.subr.mxu0 0.0
  %643 = vmatpush1.msra.mxu0 %v202
  %644 = vmatprep.subr.mxu0 0.0
  %645 = vmatpush1.msra.mxu0 %v203
  %646 = vmatprep.subr.mxu0 0.0
  %647 = vmatpush1.msra.mxu0 %v204
  %648 = vmatprep.subr.mxu0 0.0
  %649 = vmatpush1.msra.mxu0 %v205
  %650 = vmatprep.subr.mxu0 0.0
  %651 = vmatpush1.msra.mxu0 %v206
  %652 = vmatprep.subr.mxu0 0.0
  %653 = vmatpush1.msra.mxu0 %v207
  %654 = vmatprep.subr.mxu0 0.0
  %655 = vmatpush1.msra.mxu0 %v208
  %656 = vmatprep.mubr.f32.mxu0 %v36
  %657 = vmatmul.mubr.f32.gmra.mrb[0].mxu0 %v35
  %v658 = vpop.f32.mrb[0].mxu0
  %v659 = vadd.f32 %v574, %v658
  %v660 = vpop.f32.mrb[0].mxu0
  %661 = vmatprep.mubr.f32.mxu0 %v40
  %662 = vmatmul.mubr.f32.gmra.mrb[0].mxu0 %v39
  %v663 = vpop.f32.mrb[0].mxu0
  %v664 = vadd.f32 %v579, %v663
  %v665 = vpop.f32.mrb[0].mxu0
  %666 = vmatprep.mubr.f32.mxu0 %v44
  %667 = vmatmul.mubr.f32.gmra.mrb[0].mxu0 %v43
  %v668 = vpop.f32.mrb[0].mxu0
  %v669 = vadd.f32 %v584, %v668
  %v670 = vpop.f32.mrb[0].mxu0
  %671 = vmatprep.mubr.f32.mxu0 %v48
  %672 = vmatmul.mubr.f32.gmra.mrb[0].mxu0 %v47
  %v673 = vpop.f32.mrb[0].mxu0
  %v674 = vadd.f32 %v589, %v673
  %v675 = vpop.f32.mrb[0].mxu0
  %676 = vdwg.mxu0
  %677 = vmatprep.subr.mxu0 0.0
  %678 = vmatpush1.msra.mxu0 %v209
  %679 = vmatprep.subr.mxu0 0.0
  %680 = vmatpush1.msra.mxu0 %v210
  %681 = vmatprep.subr.mxu0 0.0
  %682 = vmatpush1.msra.mxu0 %v211
  %683 = vmatprep.subr.mxu0 0.0
  %684 = vmatpush1.msra.mxu0 %v212
  %685 = vmatprep.subr.mxu0 0.0
  %686 = vmatpush1.msra.mxu0 %v213
  %687 = vmatprep.subr.mxu0 0.0
  %688 = vmatpush1.msra.mxu0 %v214
  %689 = vmatprep.subr.mxu0 0.0
  %690 = vmatpush1.msra.mxu0 %v215
  %691 = vmatprep.subr.mxu0 0.0
  %692 = vmatpush1.msra.mxu0 %v216
  %693 = vmatprep.subr.mxu0 0.0
  %694 = vmatpush1.msra.mxu0 %v217
  %695 = vmatprep.subr.mxu0 0.0
  %696 = vmatpush1.msra.mxu0 %v218
  %697 = vmatprep.subr.mxu0 0.0
  %698 = vmatpush1.msra.mxu0 %v219
  %699 = vmatprep.subr.mxu0 0.0
  %700 = vmatpush1.msra.mxu0 %v220
  %701 = vmatprep.subr.mxu0 0.0
  %702 = vmatpush1.msra.mxu0 %v221
  %703 = vmatprep.subr.mxu0 0.0
  %704 = vmatpush1.msra.mxu0 %v222
  %705 = vmatprep.subr.mxu0 0.0
  %706 = vmatpush1.msra.mxu0 %v223
  %707 = vmatprep.subr.mxu0 0.0
  %708 = vmatpush1.msra.mxu0 %v224
  %709 = vmatprep.subr.mxu0 0.0
  %710 = vmatpush1.msra.mxu0 %v225
  %711 = vmatprep.subr.mxu0 0.0
  %712 = vmatpush1.msra.mxu0 %v226
  %713 = vmatprep.subr.mxu0 0.0
  %714 = vmatpush1.msra.mxu0 %v227
  %715 = vmatprep.subr.mxu0 0.0
  %716 = vmatpush1.msra.mxu0 %v228
  %717 = vmatprep.subr.mxu0 0.0
  %718 = vmatpush1.msra.mxu0 %v229
  %719 = vmatprep.subr.mxu0 0.0
  %720 = vmatpush1.msra.mxu0 %v230
  %721 = vmatprep.subr.mxu0 0.0
  %722 = vmatpush1.msra.mxu0 %v231
  %723 = vmatprep.subr.mxu0 0.0
  %724 = vmatpush1.msra.mxu0 %v232
  %725 = vmatprep.subr.mxu0 0.0
  %726 = vmatpush1.msra.mxu0 %v233
  %727 = vmatprep.subr.mxu0 0.0
  %728 = vmatpush1.msra.mxu0 %v234
  %729 = vmatprep.subr.mxu0 0.0
  %730 = vmatpush1.msra.mxu0 %v235
  %731 = vmatprep.subr.mxu0 0.0
  %732 = vmatpush1.msra.mxu0 %v236
  %733 = vmatprep.subr.mxu0 0.0
  %734 = vmatpush1.msra.mxu0 %v237
  %735 = vmatprep.subr.mxu0 0.0
  %736 = vmatpush1.msra.mxu0 %v238
  %737 = vmatprep.subr.mxu0 0.0
  %738 = vmatpush1.msra.mxu0 %v239
  %739 = vmatprep.subr.mxu0 0.0
  %740 = vmatpush1.msra.mxu0 %v240
  %741 = vmatprep.mubr.f32.mxu0 %v50
  %742 = vmatmul.mubr.f32.gmra.mrb[0].mxu0 %v49
  %v743 = vpop.f32.mrb[0].mxu0
  %v744 = vadd.f32 0.0, %v743
  %v745 = vpop.f32.mrb[0].mxu0
  %746 = vmatprep.mubr.f32.mxu0 %v54
  %747 = vmatmul.mubr.f32.gmra.mrb[0].mxu0 %v53
  %v748 = vpop.f32.mrb[0].mxu0
  %v749 = vadd.f32 0.0, %v748
  %v750 = vpop.f32.mrb[0].mxu0
  %751 = vmatprep.mubr.f32.mxu0 %v58
  %752 = vmatmul.mubr.f32.gmra.mrb[0].mxu0 %v57
  %v753 = vpop.f32.mrb[0].mxu0
  %v754 = vadd.f32 0.0, %v753
  %v755 = vpop.f32.mrb[0].mxu0
  %756 = vmatprep.mubr.f32.mxu0 %v62
  %757 = vmatmul.mubr.f32.gmra.mrb[0].mxu0 %v61
  %v758 = vpop.f32.mrb[0].mxu0
  %v759 = vadd.f32 0.0, %v758
  %v760 = vpop.f32.mrb[0].mxu0
  %761 = vdwg.mxu0
  %762 = vmatprep.subr.mxu0 0.0
  %763 = vmatpush1.msra.mxu0 %v241
  %764 = vmatprep.subr.mxu0 0.0
  %765 = vmatpush1.msra.mxu0 %v242
  %766 = vmatprep.subr.mxu0 0.0
  %767 = vmatpush1.msra.mxu0 %v243
  %768 = vmatprep.subr.mxu0 0.0
  %769 = vmatpush1.msra.mxu0 %v244
  %770 = vmatprep.subr.mxu0 0.0
  %771 = vmatpush1.msra.mxu0 %v245
  %772 = vmatprep.subr.mxu0 0.0
  %773 = vmatpush1.msra.mxu0 %v246
  %774 = vmatprep.subr.mxu0 0.0
  %775 = vmatpush1.msra.mxu0 %v247
  %776 = vmatprep.subr.mxu0 0.0
  %777 = vmatpush1.msra.mxu0 %v248
  %778 = vmatprep.subr.mxu0 0.0
  %779 = vmatpush1.msra.mxu0 %v249
  %780 = vmatprep.subr.mxu0 0.0
  %781 = vmatpush1.msra.mxu0 %v250
  %782 = vmatprep.subr.mxu0 0.0
  %783 = vmatpush1.msra.mxu0 %v251
  %784 = vmatprep.subr.mxu0 0.0
  %785 = vmatpush1.msra.mxu0 %v252
  %786 = vmatprep.subr.mxu0 0.0
  %787 = vmatpush1.msra.mxu0 %v253
  %788 = vmatprep.subr.mxu0 0.0
  %789 = vmatpush1.msra.mxu0 %v254
  %790 = vmatprep.subr.mxu0 0.0
  %791 = vmatpush1.msra.mxu0 %v255
  %792 = vmatprep.subr.mxu0 0.0
  %793 = vmatpush1.msra.mxu0 %v256
  %794 = vmatprep.subr.mxu0 0.0
  %795 = vmatpush1.msra.mxu0 %v257
  %796 = vmatprep.subr.mxu0 0.0
  %797 = vmatpush1.msra.mxu0 %v258
  %798 = vmatprep.subr.mxu0 0.0
  %799 = vmatpush1.msra.mxu0 %v259
  %800 = vmatprep.subr.mxu0 0.0
  %801 = vmatpush1.msra.mxu0 %v260
  %802 = vmatprep.subr.mxu0 0.0
  %803 = vmatpush1.msra.mxu0 %v261
  %804 = vmatprep.subr.mxu0 0.0
  %805 = vmatpush1.msra.mxu0 %v262
  %806 = vmatprep.subr.mxu0 0.0
  %807 = vmatpush1.msra.mxu0 %v263
  %808 = vmatprep.subr.mxu0 0.0
  %809 = vmatpush1.msra.mxu0 %v264
  %810 = vmatprep.subr.mxu0 0.0
  %811 = vmatpush1.msra.mxu0 %v265
  %812 = vmatprep.subr.mxu0 0.0
  %813 = vmatpush1.msra.mxu0 %v266
  %814 = vmatprep.subr.mxu0 0.0
  %815 = vmatpush1.msra.mxu0 %v267
  %816 = vmatprep.subr.mxu0 0.0
  %817 = vmatpush1.msra.mxu0 %v268
  %818 = vmatprep.subr.mxu0 0.0
  %819 = vmatpush1.msra.mxu0 %v269
  %820 = vmatprep.subr.mxu0 0.0
  %821 = vmatpush1.msra.mxu0 %v270
  %822 = vmatprep.subr.mxu0 0.0
  %823 = vmatpush1.msra.mxu0 %v271
  %824 = vmatprep.subr.mxu0 0.0
  %825 = vmatpush1.msra.mxu0 %v272
  %826 = vmatprep.mubr.f32.mxu0 %v52
  %827 = vmatmul.mubr.f32.gmra.mrb[0].mxu0 %v51
  %v828 = vpop.f32.mrb[0].mxu0
  %v829 = vadd.f32 %v744, %v828
  %v830 = vpop.f32.mrb[0].mxu0
  %831 = vmatprep.mubr.f32.mxu0 %v56
  %832 = vmatmul.mubr.f32.gmra.mrb[0].mxu0 %v55
  %v833 = vpop.f32.mrb[0].mxu0
  %v834 = vadd.f32 %v749, %v833
  %v835 = vpop.f32.mrb[0].mxu0
  %836 = vmatprep.mubr.f32.mxu0 %v60
  %837 = vmatmul.mubr.f32.gmra.mrb[0].mxu0 %v59
  %v838 = vpop.f32.mrb[0].mxu0
  %v839 = vadd.f32 %v754, %v838
  %v840 = vpop.f32.mrb[0].mxu0
  %841 = vmatprep.mubr.f32.mxu0 %v64
  %842 = vmatmul.mubr.f32.gmra.mrb[0].mxu0 %v63
  %v843 = vpop.f32.mrb[0].mxu0
  %v844 = vadd.f32 %v759, %v843
  %v845 = vpop.f32.mrb[0].mxu0
  %846 = vdwg.mxu0
  %847 = vmatprep.subr.mxu0 0.0
  %848 = vmatpush1.msra.mxu0 %v273
  %849 = vmatprep.subr.mxu0 0.0
  %850 = vmatpush1.msra.mxu0 %v274
  %851 = vmatprep.subr.mxu0 0.0
  %852 = vmatpush1.msra.mxu0 %v275
  %853 = vmatprep.subr.mxu0 0.0
  %854 = vmatpush1.msra.mxu0 %v276
  %855 = vmatprep.subr.mxu0 0.0
  %856 = vmatpush1.msra.mxu0 %v277
  %857 = vmatprep.subr.mxu0 0.0
  %858 = vmatpush1.msra.mxu0 %v278
  %859 = vmatprep.subr.mxu0 0.0
  %860 = vmatpush1.msra.mxu0 %v279
  %861 = vmatprep.subr.mxu0 0.0
  %862 = vmatpush1.msra.mxu0 %v280
  %863 = vmatprep.subr.mxu0 0.0
  %864 = vmatpush1.msra.mxu0 %v281
  %865 = vmatprep.subr.mxu0 0.0
  %866 = vmatpush1.msra.mxu0 %v282
  %867 = vmatprep.subr.mxu0 0.0
  %868 = vmatpush1.msra.mxu0 %v283
  %869 = vmatprep.subr.mxu0 0.0
  %870 = vmatpush1.msra.mxu0 %v284
  %871 = vmatprep.subr.mxu0 0.0
  %872 = vmatpush1.msra.mxu0 %v285
  %873 = vmatprep.subr.mxu0 0.0
  %874 = vmatpush1.msra.mxu0 %v286
  %875 = vmatprep.subr.mxu0 0.0
  %876 = vmatpush1.msra.mxu0 %v287
  %877 = vmatprep.subr.mxu0 0.0
  %878 = vmatpush1.msra.mxu0 %v288
  %879 = vmatprep.subr.mxu0 0.0
  %880 = vmatpush1.msra.mxu0 %v289
  %881 = vmatprep.subr.mxu0 0.0
  %882 = vmatpush1.msra.mxu0 %v290
  %883 = vmatprep.subr.mxu0 0.0
  %884 = vmatpush1.msra.mxu0 %v291
  %885 = vmatprep.subr.mxu0 0.0
  %886 = vmatpush1.msra.mxu0 %v292
  %887 = vmatprep.subr.mxu0 0.0
  %888 = vmatpush1.msra.mxu0 %v293
  %889 = vmatprep.subr.mxu0 0.0
  %890 = vmatpush1.msra.mxu0 %v294
  %891 = vmatprep.subr.mxu0 0.0
  %892 = vmatpush1.msra.mxu0 %v295
  %893 = vmatprep.subr.mxu0 0.0
  %894 = vmatpush1.msra.mxu0 %v296
  %895 = vmatprep.subr.mxu0 0.0
  %896 = vmatpush1.msra.mxu0 %v297
  %897 = vmatprep.subr.mxu0 0.0
  %898 = vmatpush1.msra.mxu0 %v298
  %899 = vmatprep.subr.mxu0 0.0
  %900 = vmatpush1.msra.mxu0 %v299
  %901 = vmatprep.subr.mxu0 0.0
  %902 = vmatpush1.msra.mxu0 %v300
  %903 = vmatprep.subr.mxu0 0.0
  %904 = vmatpush1.msra.mxu0 %v301
  %905 = vmatprep.subr.mxu0 0.0
  %906 = vmatpush1.msra.mxu0 %v302
  %907 = vmatprep.subr.mxu0 0.0
  %908 = vmatpush1.msra.mxu0 %v303
  %909 = vmatprep.subr.mxu0 0.0
  %910 = vmatpush1.msra.mxu0 %v304
  %911 = vmatprep.mubr.f32.mxu0 %v66
  %912 = vmatmul.mubr.f32.gmra.mrb[0].mxu0 %v65
  %v913 = vpop.f32.mrb[0].mxu0
  %v914 = vadd.f32 0.0, %v913
  %v915 = vpop.f32.mrb[0].mxu0
  %916 = vmatprep.mubr.f32.mxu0 %v70
  %917 = vmatmul.mubr.f32.gmra.mrb[0].mxu0 %v69
  %v918 = vpop.f32.mrb[0].mxu0
  %v919 = vadd.f32 0.0, %v918
  %v920 = vpop.f32.mrb[0].mxu0
  %921 = vmatprep.mubr.f32.mxu0 %v74
  %922 = vmatmul.mubr.f32.gmra.mrb[0].mxu0 %v73
  %v923 = vpop.f32.mrb[0].mxu0
  %v924 = vadd.f32 0.0, %v923
  %v925 = vpop.f32.mrb[0].mxu0
  %926 = vmatprep.mubr.f32.mxu0 %v78
  %927 = vmatmul.mubr.f32.gmra.mrb[0].mxu0 %v77
  %v928 = vpop.f32.mrb[0].mxu0
  %v929 = vadd.f32 0.0, %v928
  %v930 = vpop.f32.mrb[0].mxu0
  %931 = vdwg.mxu0
  %932 = vmatprep.subr.mxu0 0.0
  %933 = vmatpush1.msra.mxu0 %v305
  %934 = vmatprep.subr.mxu0 0.0
  %935 = vmatpush1.msra.mxu0 %v306
  %936 = vmatprep.subr.mxu0 0.0
  %937 = vmatpush1.msra.mxu0 %v307
  %938 = vmatprep.subr.mxu0 0.0
  %939 = vmatpush1.msra.mxu0 %v308
  %940 = vmatprep.subr.mxu0 0.0
  %941 = vmatpush1.msra.mxu0 %v309
  %942 = vmatprep.subr.mxu0 0.0
  %943 = vmatpush1.msra.mxu0 %v310
  %944 = vmatprep.subr.mxu0 0.0
  %945 = vmatpush1.msra.mxu0 %v311
  %946 = vmatprep.subr.mxu0 0.0
  %947 = vmatpush1.msra.mxu0 %v312
  %948 = vmatprep.subr.mxu0 0.0
  %949 = vmatpush1.msra.mxu0 %v313
  %950 = vmatprep.subr.mxu0 0.0
  %951 = vmatpush1.msra.mxu0 %v314
  %952 = vmatprep.subr.mxu0 0.0
  %953 = vmatpush1.msra.mxu0 %v315
  %954 = vmatprep.subr.mxu0 0.0
  %955 = vmatpush1.msra.mxu0 %v316
  %956 = vmatprep.subr.mxu0 0.0
  %957 = vmatpush1.msra.mxu0 %v317
  %958 = vmatprep.subr.mxu0 0.0
  %959 = vmatpush1.msra.mxu0 %v318
  %960 = vmatprep.subr.mxu0 0.0
  %961 = vmatpush1.msra.mxu0 %v319
  %962 = vmatprep.subr.mxu0 0.0
  %963 = vmatpush1.msra.mxu0 %v320
  %964 = vmatprep.subr.mxu0 0.0
  %965 = vmatpush1.msra.mxu0 %v321
  %966 = vmatprep.subr.mxu0 0.0
  %967 = vmatpush1.msra.mxu0 %v322
  %968 = vmatprep.subr.mxu0 0.0
  %969 = vmatpush1.msra.mxu0 %v323
  %970 = vmatprep.subr.mxu0 0.0
  %971 = vmatpush1.msra.mxu0 %v324
  %972 = vmatprep.subr.mxu0 0.0
  %973 = vmatpush1.msra.mxu0 %v325
  %974 = vmatprep.subr.mxu0 0.0
  %975 = vmatpush1.msra.mxu0 %v326
  %976 = vmatprep.subr.mxu0 0.0
  %977 = vmatpush1.msra.mxu0 %v327
  %978 = vmatprep.subr.mxu0 0.0
  %979 = vmatpush1.msra.mxu0 %v328
  %980 = vmatprep.subr.mxu0 0.0
  %981 = vmatpush1.msra.mxu0 %v329
  %982 = vmatprep.subr.mxu0 0.0
  %983 = vmatpush1.msra.mxu0 %v330
  %984 = vmatprep.subr.mxu0 0.0
  %985 = vmatpush1.msra.mxu0 %v331
  %986 = vmatprep.subr.mxu0 0.0
  %987 = vmatpush1.msra.mxu0 %v332
  %988 = vmatprep.subr.mxu0 0.0
  %989 = vmatpush1.msra.mxu0 %v333
  %990 = vmatprep.subr.mxu0 0.0
  %991 = vmatpush1.msra.mxu0 %v334
  %992 = vmatprep.subr.mxu0 0.0
  %993 = vmatpush1.msra.mxu0 %v335
  %994 = vmatprep.subr.mxu0 0.0
  %995 = vmatpush1.msra.mxu0 %v336
  %996 = vmatprep.mubr.f32.mxu0 %v68
  %997 = vmatmul.mubr.f32.gmra.mrb[0].mxu0 %v67
  %v998 = vpop.f32.mrb[0].mxu0
  %v999 = vadd.f32 %v914, %v998
  %v1000 = vpop.f32.mrb[0].mxu0
  %1001 = vmatprep.mubr.f32.mxu0 %v72
  %1002 = vmatmul.mubr.f32.gmra.mrb[0].mxu0 %v71
  %v1003 = vpop.f32.mrb[0].mxu0
  %v1004 = vadd.f32 %v919, %v1003
  %v1005 = vpop.f32.mrb[0].mxu0
  %1006 = vmatprep.mubr.f32.mxu0 %v76
  %1007 = vmatmul.mubr.f32.gmra.mrb[0].mxu0 %v75
  %v1008 = vpop.f32.mrb[0].mxu0
  %v1009 = vadd.f32 %v924, %v1008
  %v1010 = vpop.f32.mrb[0].mxu0
  %1011 = vmatprep.mubr.f32.mxu0 %v80
  %1012 = vmatmul.mubr.f32.gmra.mrb[0].mxu0 %v79
  %v1013 = vpop.f32.mrb[0].mxu0
  %v1014 = vadd.f32 %v929, %v1013
  %v1015 = vpop.f32.mrb[0].mxu0
  %1016 = vdwg.mxu0
  %vm1017 = vcmask 523264
  %v1018 = vsel %vm1017, %v489, 0.0
  %v1019 = vsel %vm1017, %v659, 0.0
  %v1020 = vadd.f32 %v1018, %v1019
  %v1021 = vsel %vm1017, %v829, 0.0
  %v1022 = vadd.f32 %v1020, %v1021
  %v1023 = vsel %vm1017, %v999, 0.0
  %v1024 = vadd.f32 %v1022, %v1023
  %v1025 = vsel %vm1017, %v494, 0.0
  %v1026 = vsel %vm1017, %v664, 0.0
  %v1027 = vadd.f32 %v1025, %v1026
  %v1028 = vsel %vm1017, %v834, 0.0
  %v1029 = vadd.f32 %v1027, %v1028
  %v1030 = vsel %vm1017, %v1004, 0.0
  %v1031 = vadd.f32 %v1029, %v1030
  %v1032 = vsel %vm1017, %v499, 0.0
  %v1033 = vsel %vm1017, %v669, 0.0
  %v1034 = vadd.f32 %v1032, %v1033
  %v1035 = vsel %vm1017, %v839, 0.0
  %v1036 = vadd.f32 %v1034, %v1035
  %v1037 = vsel %vm1017, %v1009, 0.0
  %v1038 = vadd.f32 %v1036, %v1037
  %v1039 = vsel %vm1017, %v504, 0.0
  %v1040 = vsel %vm1017, %v674, 0.0
  %v1041 = vadd.f32 %v1039, %v1040
  %v1042 = vsel %vm1017, %v844, 0.0
  %v1043 = vadd.f32 %v1041, %v1042
  %v1044 = vsel %vm1017, %v1014, 0.0
  %v1045 = vadd.f32 %v1043, %v1044
  %v1046 = vsel %vm1017, %v1024, 0.0
  %v1047 = vsel %vm1017, %v1031, 0.0
  %v1048 = vadd.f32 %v1046, %v1047
  %v1049 = vsel %vm1017, %v1038, 0.0
  %v1050 = vadd.f32 %v1048, %v1049
  %v1051 = vsel %vm1017, %v1045, 0.0
  %v1052 = vadd.f32 %v1050, %v1051
  %v1053 = vrot.slane %v1052, 4
  %v1054 = vadd.f32 %v1052, %v1053
  %v1055 = vrot.slane %v1054, 2
  %v1056 = vadd.f32 %v1054, %v1055
  %v1057 = vrot.slane %v1056, 1
  %v1058 = vadd.f32 %v1056, %v1057
  %v1059 = vrcp.pop 128.0
  %v1060 = vmul.f32 %v1058, %v1059
  %v1061 = vsub.f32 %v489, %v1060
  %v1062 = vsub.f32 %v494, %v1060
  %v1063 = vsub.f32 %v499, %v1060
  %v1064 = vsub.f32 %v504, %v1060
  %v1065 = vsub.f32 %v659, %v1060
  %v1066 = vsub.f32 %v664, %v1060
  %v1067 = vsub.f32 %v669, %v1060
  %v1068 = vsub.f32 %v674, %v1060
  %v1069 = vsub.f32 %v829, %v1060
  %v1070 = vsub.f32 %v834, %v1060
  %v1071 = vsub.f32 %v839, %v1060
  %v1072 = vsub.f32 %v844, %v1060
  %v1073 = vsub.f32 %v999, %v1060
  %v1074 = vsub.f32 %v1004, %v1060
  %v1075 = vsub.f32 %v1009, %v1060
  %v1076 = vsub.f32 %v1014, %v1060
  %v1077 = vmul.f32 %v1061, %v1061
  %v1078 = vmul.f32 %v1062, %v1062
  %v1079 = vmul.f32 %v1063, %v1063
  %v1080 = vmul.f32 %v1064, %v1064
  %v1081 = vmul.f32 %v1065, %v1065
  %v1082 = vmul.f32 %v1066, %v1066
  %v1083 = vmul.f32 %v1067, %v1067
  %v1084 = vmul.f32 %v1068, %v1068
  %v1085 = vmul.f32 %v1069, %v1069
  %v1086 = vmul.f32 %v1070, %v1070
  %v1087 = vmul.f32 %v1071, %v1071
  %v1088 = vmul.f32 %v1072, %v1072
  %v1089 = vmul.f32 %v1073, %v1073
  %v1090 = vmul.f32 %v1074, %v1074
  %v1091 = vmul.f32 %v1075, %v1075
  %v1092 = vmul.f32 %v1076, %v1076
  %v1093 = vsel %vm1017, %v1077, 0.0
  %v1094 = vsel %vm1017, %v1081, 0.0
  %v1095 = vadd.f32 %v1093, %v1094
  %v1096 = vsel %vm1017, %v1085, 0.0
  %v1097 = vadd.f32 %v1095, %v1096
  %v1098 = vsel %vm1017, %v1089, 0.0
  %v1099 = vadd.f32 %v1097, %v1098
  %v1100 = vsel %vm1017, %v1078, 0.0
  %v1101 = vsel %vm1017, %v1082, 0.0
  %v1102 = vadd.f32 %v1100, %v1101
  %v1103 = vsel %vm1017, %v1086, 0.0
  %v1104 = vadd.f32 %v1102, %v1103
  %v1105 = vsel %vm1017, %v1090, 0.0
  %v1106 = vadd.f32 %v1104, %v1105
  %v1107 = vsel %vm1017, %v1079, 0.0
  %v1108 = vsel %vm1017, %v1083, 0.0
  %v1109 = vadd.f32 %v1107, %v1108
  %v1110 = vsel %vm1017, %v1087, 0.0
  %v1111 = vadd.f32 %v1109, %v1110
  %v1112 = vsel %vm1017, %v1091, 0.0
  %v1113 = vadd.f32 %v1111, %v1112
  %v1114 = vsel %vm1017, %v1080, 0.0
  %v1115 = vsel %vm1017, %v1084, 0.0
  %v1116 = vadd.f32 %v1114, %v1115
  %v1117 = vsel %vm1017, %v1088, 0.0
  %v1118 = vadd.f32 %v1116, %v1117
  %v1119 = vsel %vm1017, %v1092, 0.0
  %v1120 = vadd.f32 %v1118, %v1119
  %v1121 = vsel %vm1017, %v1099, 0.0
  %v1122 = vsel %vm1017, %v1106, 0.0
  %v1123 = vadd.f32 %v1121, %v1122
  %v1124 = vsel %vm1017, %v1113, 0.0
  %v1125 = vadd.f32 %v1123, %v1124
  %v1126 = vsel %vm1017, %v1120, 0.0
  %v1127 = vadd.f32 %v1125, %v1126
  %v1128 = vrot.slane %v1127, 4
  %v1129 = vadd.f32 %v1127, %v1128
  %v1130 = vrot.slane %v1129, 2
  %v1131 = vadd.f32 %v1129, %v1130
  %v1132 = vrot.slane %v1131, 1
  %v1133 = vadd.f32 %v1131, %v1132
  %v1134 = vmul.f32 %v1133, %v1059
  %v1135 = vld [vmem:[%s2] sm:$0x1]
  %v1136 = vadd.f32 %v1134, 1e-05
  %v1137 = vrsqrt.pop %v1136
  %v1138 = vmul.f32 %v1135, %v1137
  %v1139 = vld [vmem:[%s3] sm:$0x1]
  %v1140 = vmul.f32 %v1060, %v1138
  %v1141 = vsub.f32 %v1139, %v1140
  %v1143 = vlaneseq
  %v1144 = vshrl.u32 %v1143, 7
  %v1145 = vsub.s32 0, %v1144
  %v1146 = vrot.slane %v1138, %v1145
  %v1148 = vmul.f32 %v489, %v1146
  %v1149 = vmul.f32 %v494, %v1146
  %v1150 = vmul.f32 %v499, %v1146
  %v1151 = vmul.f32 %v504, %v1146
  %v1152 = vmul.f32 %v659, %v1146
  %v1153 = vmul.f32 %v664, %v1146
  %v1154 = vmul.f32 %v669, %v1146
  %v1155 = vmul.f32 %v674, %v1146
  %v1156 = vmul.f32 %v829, %v1146
  %v1157 = vmul.f32 %v834, %v1146
  %v1158 = vmul.f32 %v839, %v1146
  %v1159 = vmul.f32 %v844, %v1146
  %v1160 = vmul.f32 %v999, %v1146
  %v1161 = vmul.f32 %v1004, %v1146
  %v1162 = vmul.f32 %v1009, %v1146
  %v1163 = vmul.f32 %v1014, %v1146
  %v1165 = vlaneseq
  %v1166 = vshrl.u32 %v1165, 7
  %v1167 = vsub.s32 0, %v1166
  %v1168 = vrot.slane %v1141, %v1167
  %v1170 = vadd.f32 %v1148, %v1168
  %v1171 = vadd.f32 %v1149, %v1168
  %v1172 = vadd.f32 %v1150, %v1168
  %v1173 = vadd.f32 %v1151, %v1168
  %v1174 = vadd.f32 %v1152, %v1168
  %v1175 = vadd.f32 %v1153, %v1168
  %v1176 = vadd.f32 %v1154, %v1168
  %v1177 = vadd.f32 %v1155, %v1168
  %v1178 = vadd.f32 %v1156, %v1168
  %v1179 = vadd.f32 %v1157, %v1168
  %v1180 = vadd.f32 %v1158, %v1168
  %v1181 = vadd.f32 %v1159, %v1168
  %v1182 = vadd.f32 %v1160, %v1168
  %v1183 = vadd.f32 %v1161, %v1168
  %v1184 = vadd.f32 %v1162, %v1168
  %v1185 = vadd.f32 %v1163, %v1168
  %vm1186 = vcmp.gt.f32.partialorder %v1170, 0.0
  %vm1187 = vcmp.gt.f32.partialorder %v1171, 0.0
  %vm1188 = vcmp.gt.f32.partialorder %v1172, 0.0
  %vm1189 = vcmp.gt.f32.partialorder %v1173, 0.0
  %vm1190 = vcmp.gt.f32.partialorder %v1174, 0.0
  %vm1191 = vcmp.gt.f32.partialorder %v1175, 0.0
  %vm1192 = vcmp.gt.f32.partialorder %v1176, 0.0
  %vm1193 = vcmp.gt.f32.partialorder %v1177, 0.0
  %vm1194 = vcmp.gt.f32.partialorder %v1178, 0.0
  %vm1195 = vcmp.gt.f32.partialorder %v1179, 0.0
  %vm1196 = vcmp.gt.f32.partialorder %v1180, 0.0
  %vm1197 = vcmp.gt.f32.partialorder %v1181, 0.0
  %vm1198 = vcmp.gt.f32.partialorder %v1182, 0.0
  %vm1199 = vcmp.gt.f32.partialorder %v1183, 0.0
  %vm1200 = vcmp.gt.f32.partialorder %v1184, 0.0
  %vm1201 = vcmp.gt.f32.partialorder %v1185, 0.0
  %v1202 = vmul.f32 %v1170, 0.2
  %v1203 = vmul.f32 %v1171, 0.2
  %v1204 = vmul.f32 %v1172, 0.2
  %v1205 = vmul.f32 %v1173, 0.2
  %v1206 = vmul.f32 %v1174, 0.2
  %v1207 = vmul.f32 %v1175, 0.2
  %v1208 = vmul.f32 %v1176, 0.2
  %v1209 = vmul.f32 %v1177, 0.2
  %v1210 = vmul.f32 %v1178, 0.2
  %v1211 = vmul.f32 %v1179, 0.2
  %v1212 = vmul.f32 %v1180, 0.2
  %v1213 = vmul.f32 %v1181, 0.2
  %v1214 = vmul.f32 %v1182, 0.2
  %v1215 = vmul.f32 %v1183, 0.2
  %v1216 = vmul.f32 %v1184, 0.2
  %v1217 = vmul.f32 %v1185, 0.2
  %v1218 = vsel %vm1186, %v1170, %v1202
  %v1219 = vsel %vm1187, %v1171, %v1203
  %v1220 = vsel %vm1188, %v1172, %v1204
  %v1221 = vsel %vm1189, %v1173, %v1205
  %v1222 = vsel %vm1190, %v1174, %v1206
  %v1223 = vsel %vm1191, %v1175, %v1207
  %v1224 = vsel %vm1192, %v1176, %v1208
  %v1225 = vsel %vm1193, %v1177, %v1209
  %v1226 = vsel %vm1194, %v1178, %v1210
  %v1227 = vsel %vm1195, %v1179, %v1211
  %v1228 = vsel %vm1196, %v1180, %v1212
  %v1229 = vsel %vm1197, %v1181, %v1213
  %v1230 = vsel %vm1198, %v1182, %v1214
  %v1231 = vsel %vm1199, %v1183, %v1215
  %v1232 = vsel %vm1200, %v1184, %v1216
  %v1233 = vsel %vm1201, %v1185, %v1217
  %1234 = vst.msk [vmem:[%s4] sm:$0xff] %vm1017, %v1218
  %1235 = vst.msk [vmem:[%s4 + $0x8] sm:$0xff] %vm1017, %v1219
  %1236 = vst.msk [vmem:[%s4 + $0x10] sm:$0xff] %vm1017, %v1220
  %1237 = vst.msk [vmem:[%s4 + $0x18] sm:$0xff] %vm1017, %v1221
  %1238 = vst.msk [vmem:[%s4 + $0x20] sm:$0xff] %vm1017, %v1222
  %1239 = vst.msk [vmem:[%s4 + $0x28] sm:$0xff] %vm1017, %v1223
  %1240 = vst.msk [vmem:[%s4 + $0x30] sm:$0xff] %vm1017, %v1224
  %1241 = vst.msk [vmem:[%s4 + $0x38] sm:$0xff] %vm1017, %v1225
  %1242 = vst.msk [vmem:[%s4 + $0x40] sm:$0xff] %vm1017, %v1226
  %1243 = vst.msk [vmem:[%s4 + $0x48] sm:$0xff] %vm1017, %v1227
  %1244 = vst.msk [vmem:[%s4 + $0x50] sm:$0xff] %vm1017, %v1228
  %1245 = vst.msk [vmem:[%s4 + $0x58] sm:$0xff] %vm1017, %v1229
  %1246 = vst.msk [vmem:[%s4 + $0x60] sm:$0xff] %vm1017, %v1230
  %1247 = vst.msk [vmem:[%s4 + $0x68] sm:$0xff] %vm1017, %v1231
  %1248 = vst.msk [vmem:[%s4 + $0x70] sm:$0xff] %vm1017, %v1232
  %1249 = vst.msk [vmem:[%s4 + $0x78] sm:$0xff] %vm1017, %v1233
  // Predicated region
  $region18: #{generator_forward.6} parent=0 // pred_check
    _
  $region19: #{generator_forward.6} parent=0 // pred_check_branch
    %1251 = sbr.rel (0) target = $region21
  $region20: #{generator_forward.6} parent=0 // pred_region
    _
  $region21: #{generator_forward.6} parent=0 // pred_fallthru
    _
  // Predicated region
  $region22: #{generator_forward.6} parent=0 // pred_check
    _
  $region23: #{generator_forward.6} parent=0 // pred_check_branch
    %1253 = sbr.rel (0) target = $region25
  $region24: #{generator_forward.6} parent=0 // pred_region
    _
  $region25: #{generator_forward.6} parent=0 // pred_fallthru
    _

// kernel: generator_forward.7
$region0: #{generator_forward.7}
  #allocation0 [shape = 'u32[]', space=smem, size = 0x4, offset = 0x4, fixed_abs, tag = 'smem constant byte address 0x4 - core index']
  #allocation1 [shape = 'u32[144,128]{1,0:T(1,128)}', space=vmem, size = 0x12000, scoped, tag = 'internal scratch']
  %s0 = inlined_call_operand.vmem [shape: f32[4,256,128], index: 0, kind: input, shape index: {}]
  %s1 = inlined_call_operand.vmem [shape: f32[4,3,256], index: 1, kind: input, shape index: {}]
  %s2 = inlined_call_operand.vmem [shape: f32[4,3,128], index: 2, kind: output, shape index: {}]
  %s3 = sld [smem:[#allocation0]]
  $region18: #{generator_forward.7} parent=0
    _
  %s5 = ssub.s32 1, %s3
  %s6 = scalar_select 0, %s5, %s3
  // Predicated region
  $region2: #{generator_forward.7} parent=0 // pred_check
    _
  $region3: #{generator_forward.7} parent=0 // pred_check_branch
    %8 = sbr.rel (0) target = $region5
  $region4: #{generator_forward.7} parent=0 // pred_region
    _
  $region5: #{generator_forward.7} parent=0 // pred_fallthru
    _
  // Predicated region
  $region6: #{generator_forward.7} parent=0 // pred_check
    _
  $region7: #{generator_forward.7} parent=0 // pred_check_branch
    %10 = sbr.rel (0) target = $region9
  $region8: #{generator_forward.7} parent=0 // pred_region
    _
  $region9: #{generator_forward.7} parent=0 // pred_fallthru
    _
  %v11 = vld [vmem:[%s1] sm:$0x77]
  %v12 = vld [vmem:[%s1 + $0x8] sm:$0x77]
  %v13 = vld [vmem:[%s1 + $0x10] sm:$0x77]
  %v14 = vld [vmem:[%s1 + $0x18] sm:$0x77]
  %v15 = vld [vmem:[%s0] sm:$0xff]
  %v16 = vld [vmem:[%s0 + $0x8] sm:$0xff]
  %v17 = vld [vmem:[%s0 + $0x10] sm:$0xff]
  %v18 = vld [vmem:[%s0 + $0x18] sm:$0xff]
  %v19 = vld [vmem:[%s0 + $0x20] sm:$0xff]
  %v20 = vld [vmem:[%s0 + $0x28] sm:$0xff]
  %v21 = vld [vmem:[%s0 + $0x30] sm:$0xff]
  %v22 = vld [vmem:[%s0 + $0x38] sm:$0xff]
  %v23 = vld [vmem:[%s0 + $0x40] sm:$0xff]
  %v24 = vld [vmem:[%s0 + $0x48] sm:$0xff]
  %v25 = vld [vmem:[%s0 + $0x50] sm:$0xff]
  %v26 = vld [vmem:[%s0 + $0x58] sm:$0xff]
  %v27 = vld [vmem:[%s0 + $0x60] sm:$0xff]
  %v28 = vld [vmem:[%s0 + $0x68] sm:$0xff]
  %v29 = vld [vmem:[%s0 + $0x70] sm:$0xff]
  %v30 = vld [vmem:[%s0 + $0x78] sm:$0xff]
  %v31 = vld [vmem:[%s0 + $0x80] sm:$0xff]
  %v32 = vld [vmem:[%s0 + $0x88] sm:$0xff]
  %v33 = vld [vmem:[%s0 + $0x90] sm:$0xff]
  %v34 = vld [vmem:[%s0 + $0x98] sm:$0xff]
  %v35 = vld [vmem:[%s0 + $0xa0] sm:$0xff]
  %v36 = vld [vmem:[%s0 + $0xa8] sm:$0xff]
  %v37 = vld [vmem:[%s0 + $0xb0] sm:$0xff]
  %v38 = vld [vmem:[%s0 + $0xb8] sm:$0xff]
  %v39 = vld [vmem:[%s0 + $0xc0] sm:$0xff]
  %v40 = vld [vmem:[%s0 + $0xc8] sm:$0xff]
  %v41 = vld [vmem:[%s0 + $0xd0] sm:$0xff]
  %v42 = vld [vmem:[%s0 + $0xd8] sm:$0xff]
  %v43 = vld [vmem:[%s0 + $0xe0] sm:$0xff]
  %v44 = vld [vmem:[%s0 + $0xe8] sm:$0xff]
  %v45 = vld [vmem:[%s0 + $0xf0] sm:$0xff]
  %v46 = vld [vmem:[%s0 + $0xf8] sm:$0xff]
  %v47 = vld [vmem:[%s0 + $0x100] sm:$0xff]
  %v48 = vld [vmem:[%s0 + $0x108] sm:$0xff]
  %v49 = vld [vmem:[%s0 + $0x110] sm:$0xff]
  %v50 = vld [vmem:[%s0 + $0x118] sm:$0xff]
  %v51 = vld [vmem:[%s0 + $0x120] sm:$0xff]
  %v52 = vld [vmem:[%s0 + $0x128] sm:$0xff]
  %v53 = vld [vmem:[%s0 + $0x130] sm:$0xff]
  %v54 = vld [vmem:[%s0 + $0x138] sm:$0xff]
  %v55 = vld [vmem:[%s0 + $0x140] sm:$0xff]
  %v56 = vld [vmem:[%s0 + $0x148] sm:$0xff]
  %v57 = vld [vmem:[%s0 + $0x150] sm:$0xff]
  %v58 = vld [vmem:[%s0 + $0x158] sm:$0xff]
  %v59 = vld [vmem:[%s0 + $0x160] sm:$0xff]
  %v60 = vld [vmem:[%s0 + $0x168] sm:$0xff]
  %v61 = vld [vmem:[%s0 + $0x170] sm:$0xff]
  %v62 = vld [vmem:[%s0 + $0x178] sm:$0xff]
  %v63 = vld [vmem:[%s0 + $0x180] sm:$0xff]
  %v64 = vld [vmem:[%s0 + $0x188] sm:$0xff]
  %v65 = vld [vmem:[%s0 + $0x190] sm:$0xff]
  %v66 = vld [vmem:[%s0 + $0x198] sm:$0xff]
  %v67 = vld [vmem:[%s0 + $0x1a0] sm:$0xff]
  %v68 = vld [vmem:[%s0 + $0x1a8] sm:$0xff]
  %v69 = vld [vmem:[%s0 + $0x1b0] sm:$0xff]
  %v70 = vld [vmem:[%s0 + $0x1b8] sm:$0xff]
  %v71 = vld [vmem:[%s0 + $0x1c0] sm:$0xff]
  %v72 = vld [vmem:[%s0 + $0x1c8] sm:$0xff]
  %v73 = vld [vmem:[%s0 + $0x1d0] sm:$0xff]
  %v74 = vld [vmem:[%s0 + $0x1d8] sm:$0xff]
  %v75 = vld [vmem:[%s0 + $0x1e0] sm:$0xff]
  %v76 = vld [vmem:[%s0 + $0x1e8] sm:$0xff]
  %v77 = vld [vmem:[%s0 + $0x1f0] sm:$0xff]
  %v78 = vld [vmem:[%s0 + $0x1f8] sm:$0xff]
  %v79 = vld [vmem:[%s0 + $0x200] sm:$0xff]
  %v80 = vld [vmem:[%s0 + $0x208] sm:$0xff]
  %v81 = vld [vmem:[%s0 + $0x210] sm:$0xff]
  %v82 = vld [vmem:[%s0 + $0x218] sm:$0xff]
  %v83 = vld [vmem:[%s0 + $0x220] sm:$0xff]
  %v84 = vld [vmem:[%s0 + $0x228] sm:$0xff]
  %v85 = vld [vmem:[%s0 + $0x230] sm:$0xff]
  %v86 = vld [vmem:[%s0 + $0x238] sm:$0xff]
  %v87 = vld [vmem:[%s0 + $0x240] sm:$0xff]
  %v88 = vld [vmem:[%s0 + $0x248] sm:$0xff]
  %v89 = vld [vmem:[%s0 + $0x250] sm:$0xff]
  %v90 = vld [vmem:[%s0 + $0x258] sm:$0xff]
  %v91 = vld [vmem:[%s0 + $0x260] sm:$0xff]
  %v92 = vld [vmem:[%s0 + $0x268] sm:$0xff]
  %v93 = vld [vmem:[%s0 + $0x270] sm:$0xff]
  %v94 = vld [vmem:[%s0 + $0x278] sm:$0xff]
  %v95 = vld [vmem:[%s0 + $0x280] sm:$0xff]
  %v96 = vld [vmem:[%s0 + $0x288] sm:$0xff]
  %v97 = vld [vmem:[%s0 + $0x290] sm:$0xff]
  %v98 = vld [vmem:[%s0 + $0x298] sm:$0xff]
  %v99 = vld [vmem:[%s0 + $0x2a0] sm:$0xff]
  %v100 = vld [vmem:[%s0 + $0x2a8] sm:$0xff]
  %v101 = vld [vmem:[%s0 + $0x2b0] sm:$0xff]
  %v102 = vld [vmem:[%s0 + $0x2b8] sm:$0xff]
  %v103 = vld [vmem:[%s0 + $0x2c0] sm:$0xff]
  %v104 = vld [vmem:[%s0 + $0x2c8] sm:$0xff]
  %v105 = vld [vmem:[%s0 + $0x2d0] sm:$0xff]
  %v106 = vld [vmem:[%s0 + $0x2d8] sm:$0xff]
  %v107 = vld [vmem:[%s0 + $0x2e0] sm:$0xff]
  %v108 = vld [vmem:[%s0 + $0x2e8] sm:$0xff]
  %v109 = vld [vmem:[%s0 + $0x2f0] sm:$0xff]
  %v110 = vld [vmem:[%s0 + $0x2f8] sm:$0xff]
  %v111 = vld [vmem:[%s0 + $0x300] sm:$0xff]
  %v112 = vld [vmem:[%s0 + $0x308] sm:$0xff]
  %v113 = vld [vmem:[%s0 + $0x310] sm:$0xff]
  %v114 = vld [vmem:[%s0 + $0x318] sm:$0xff]
  %v115 = vld [vmem:[%s0 + $0x320] sm:$0xff]
  %v116 = vld [vmem:[%s0 + $0x328] sm:$0xff]
  %v117 = vld [vmem:[%s0 + $0x330] sm:$0xff]
  %v118 = vld [vmem:[%s0 + $0x338] sm:$0xff]
  %v119 = vld [vmem:[%s0 + $0x340] sm:$0xff]
  %v120 = vld [vmem:[%s0 + $0x348] sm:$0xff]
  %v121 = vld [vmem:[%s0 + $0x350] sm:$0xff]
  %v122 = vld [vmem:[%s0 + $0x358] sm:$0xff]
  %v123 = vld [vmem:[%s0 + $0x360] sm:$0xff]
  %v124 = vld [vmem:[%s0 + $0x368] sm:$0xff]
  %v125 = vld [vmem:[%s0 + $0x370] sm:$0xff]
  %v126 = vld [vmem:[%s0 + $0x378] sm:$0xff]
  %v127 = vld [vmem:[%s0 + $0x380] sm:$0xff]
  %v128 = vld [vmem:[%s0 + $0x388] sm:$0xff]
  %v129 = vld [vmem:[%s0 + $0x390] sm:$0xff]
  %v130 = vld [vmem:[%s0 + $0x398] sm:$0xff]
  %v131 = vld [vmem:[%s0 + $0x3a0] sm:$0xff]
  %v132 = vld [vmem:[%s0 + $0x3a8] sm:$0xff]
  %v133 = vld [vmem:[%s0 + $0x3b0] sm:$0xff]
  %v134 = vld [vmem:[%s0 + $0x3b8] sm:$0xff]
  %v135 = vld [vmem:[%s0 + $0x3c0] sm:$0xff]
  %v136 = vld [vmem:[%s0 + $0x3c8] sm:$0xff]
  %v137 = vld [vmem:[%s0 + $0x3d0] sm:$0xff]
  %v138 = vld [vmem:[%s0 + $0x3d8] sm:$0xff]
  %v139 = vld [vmem:[%s0 + $0x3e0] sm:$0xff]
  %v140 = vld [vmem:[%s0 + $0x3e8] sm:$0xff]
  %v141 = vld [vmem:[%s0 + $0x3f0] sm:$0xff]
  %v142 = vld [vmem:[%s0 + $0x3f8] sm:$0xff]
  %v144 = vcombine.high %v11, %v11
  %146 = vmatprep.subr.mxu0 0.0
  %147 = vmatpush1.msra.mxu0 %v15
  %148 = vmatprep.subr.mxu0 0.0
  %149 = vmatpush1.msra.mxu0 %v16
  %150 = vmatprep.subr.mxu0 0.0
  %151 = vmatpush1.msra.mxu0 %v17
  %152 = vmatprep.subr.mxu0 0.0
  %153 = vmatpush1.msra.mxu0 %v18
  %154 = vmatprep.subr.mxu0 0.0
  %155 = vmatpush1.msra.mxu0 %v19
  %156 = vmatprep.subr.mxu0 0.0
  %157 = vmatpush1.msra.mxu0 %v20
  %158 = vmatprep.subr.mxu0 0.0
  %159 = vmatpush1.msra.mxu0 %v21
  %160 = vmatprep.subr.mxu0 0.0
  %161 = vmatpush1.msra.mxu0 %v22
  %162 = vmatprep.subr.mxu0 0.0
  %163 = vmatpush1.msra.mxu0 %v23
  %164 = vmatprep.subr.mxu0 0.0
  %165 = vmatpush1.msra.mxu0 %v24
  %166 = vmatprep.subr.mxu0 0.0
  %167 = vmatpush1.msra.mxu0 %v25
  %168 = vmatprep.subr.mxu0 0.0
  %169 = vmatpush1.msra.mxu0 %v26
  %170 = vmatprep.subr.mxu0 0.0
  %171 = vmatpush1.msra.mxu0 %v27
  %172 = vmatprep.subr.mxu0 0.0
  %173 = vmatpush1.msra.mxu0 %v28
  %174 = vmatprep.subr.mxu0 0.0
  %175 = vmatpush1.msra.mxu0 %v29
  %176 = vmatprep.subr.mxu0 0.0
  %177 = vmatpush1.msra.mxu0 %v30
  %178 = vmatprep.subr.mxu0 0.0
  %179 = vmatpush1.msra.mxu0 %v31
  %180 = vmatprep.subr.mxu0 0.0
  %181 = vmatpush1.msra.mxu0 %v32
  %182 = vmatprep.subr.mxu0 0.0
  %183 = vmatpush1.msra.mxu0 %v33
  %184 = vmatprep.subr.mxu0 0.0
  %185 = vmatpush1.msra.mxu0 %v34
  %186 = vmatprep.subr.mxu0 0.0
  %187 = vmatpush1.msra.mxu0 %v35
  %188 = vmatprep.subr.mxu0 0.0
  %189 = vmatpush1.msra.mxu0 %v36
  %190 = vmatprep.subr.mxu0 0.0
  %191 = vmatpush1.msra.mxu0 %v37
  %192 = vmatprep.subr.mxu0 0.0
  %193 = vmatpush1.msra.mxu0 %v38
  %194 = vmatprep.subr.mxu0 0.0
  %195 = vmatpush1.msra.mxu0 %v39
  %196 = vmatprep.subr.mxu0 0.0
  %197 = vmatpush1.msra.mxu0 %v40
  %198 = vmatprep.subr.mxu0 0.0
  %199 = vmatpush1.msra.mxu0 %v41
  %200 = vmatprep.subr.mxu0 0.0
  %201 = vmatpush1.msra.mxu0 %v42
  %202 = vmatprep.subr.mxu0 0.0
  %203 = vmatpush1.msra.mxu0 %v43
  %204 = vmatprep.subr.mxu0 0.0
  %205 = vmatpush1.msra.mxu0 %v44
  %206 = vmatprep.subr.mxu0 0.0
  %207 = vmatpush1.msra.mxu0 %v45
  %208 = vmatprep.subr.mxu0 0.0
  %209 = vmatpush1.msra.mxu0 %v46
  %210 = vmatprep.mubr.f32.mxu0 %v144
  %211 = vmatmul.mubr.f32.gmra.mrb[0].mxu0 %v11
  %v212 = vpop.f32.mrb[0].mxu0
  %v213 = vadd.f32 0.0, %v212
  %v214 = vpop.f32.mrb[0].mxu0
  %215 = vdwg.mxu0
  %v217 = vcombine.high %v12, %v12
  %219 = vmatprep.subr.mxu0 0.0
  %220 = vmatpush1.msra.mxu0 %v47
  %221 = vmatprep.subr.mxu0 0.0
  %222 = vmatpush1.msra.mxu0 %v48
  %223 = vmatprep.subr.mxu0 0.0
  %224 = vmatpush1.msra.mxu0 %v49
  %225 = vmatprep.subr.mxu0 0.0
  %226 = vmatpush1.msra.mxu0 %v50
  %227 = vmatprep.subr.mxu0 0.0
  %228 = vmatpush1.msra.mxu0 %v51
  %229 = vmatprep.subr.mxu0 0.0
  %230 = vmatpush1.msra.mxu0 %v52
  %231 = vmatprep.subr.mxu0 0.0
  %232 = vmatpush1.msra.mxu0 %v53
  %233 = vmatprep.subr.mxu0 0.0
  %234 = vmatpush1.msra.mxu0 %v54
  %235 = vmatprep.subr.mxu0 0.0
  %236 = vmatpush1.msra.mxu0 %v55
  %237 = vmatprep.subr.mxu0 0.0
  %238 = vmatpush1.msra.mxu0 %v56
  %239 = vmatprep.subr.mxu0 0.0
  %240 = vmatpush1.msra.mxu0 %v57
  %241 = vmatprep.subr.mxu0 0.0
  %242 = vmatpush1.msra.mxu0 %v58
  %243 = vmatprep.subr.mxu0 0.0
  %244 = vmatpush1.msra.mxu0 %v59
  %245 = vmatprep.subr.mxu0 0.0
  %246 = vmatpush1.msra.mxu0 %v60
  %247 = vmatprep.subr.mxu0 0.0
  %248 = vmatpush1.msra.mxu0 %v61
  %249 = vmatprep.subr.mxu0 0.0
  %250 = vmatpush1.msra.mxu0 %v62
  %251 = vmatprep.subr.mxu0 0.0
  %252 = vmatpush1.msra.mxu0 %v63
  %253 = vmatprep.subr.mxu0 0.0
  %254 = vmatpush1.msra.mxu0 %v64
  %255 = vmatprep.subr.mxu0 0.0
  %256 = vmatpush1.msra.mxu0 %v65
  %257 = vmatprep.subr.mxu0 0.0
  %258 = vmatpush1.msra.mxu0 %v66
  %259 = vmatprep.subr.mxu0 0.0
  %260 = vmatpush1.msra.mxu0 %v67
  %261 = vmatprep.subr.mxu0 0.0
  %262 = vmatpush1.msra.mxu0 %v68
  %263 = vmatprep.subr.mxu0 0.0
  %264 = vmatpush1.msra.mxu0 %v69
  %265 = vmatprep.subr.mxu0 0.0
  %266 = vmatpush1.msra.mxu0 %v70
  %267 = vmatprep.subr.mxu0 0.0
  %268 = vmatpush1.msra.mxu0 %v71
  %269 = vmatprep.subr.mxu0 0.0
  %270 = vmatpush1.msra.mxu0 %v72
  %271 = vmatprep.subr.mxu0 0.0
  %272 = vmatpush1.msra.mxu0 %v73
  %273 = vmatprep.subr.mxu0 0.0
  %274 = vmatpush1.msra.mxu0 %v74
  %275 = vmatprep.subr.mxu0 0.0
  %276 = vmatpush1.msra.mxu0 %v75
  %277 = vmatprep.subr.mxu0 0.0
  %278 = vmatpush1.msra.mxu0 %v76
  %279 = vmatprep.subr.mxu0 0.0
  %280 = vmatpush1.msra.mxu0 %v77
  %281 = vmatprep.subr.mxu0 0.0
  %282 = vmatpush1.msra.mxu0 %v78
  %283 = vmatprep.mubr.f32.mxu0 %v217
  %284 = vmatmul.mubr.f32.gmra.mrb[0].mxu0 %v12
  %v285 = vpop.f32.mrb[0].mxu0
  %v286 = vadd.f32 0.0, %v285
  %v287 = vpop.f32.mrb[0].mxu0
  %288 = vdwg.mxu0
  %v290 = vcombine.high %v13, %v13
  %292 = vmatprep.subr.mxu0 0.0
  %293 = vmatpush1.msra.mxu0 %v79
  %294 = vmatprep.subr.mxu0 0.0
  %295 = vmatpush1.msra.mxu0 %v80
  %296 = vmatprep.subr.mxu0 0.0
  %297 = vmatpush1.msra.mxu0 %v81
  %298 = vmatprep.subr.mxu0 0.0
  %299 = vmatpush1.msra.mxu0 %v82
  %300 = vmatprep.subr.mxu0 0.0
  %301 = vmatpush1.msra.mxu0 %v83
  %302 = vmatprep.subr.mxu0 0.0
  %303 = vmatpush1.msra.mxu0 %v84
  %304 = vmatprep.subr.mxu0 0.0
  %305 = vmatpush1.msra.mxu0 %v85
  %306 = vmatprep.subr.mxu0 0.0
  %307 = vmatpush1.msra.mxu0 %v86
  %308 = vmatprep.subr.mxu0 0.0
  %309 = vmatpush1.msra.mxu0 %v87
  %310 = vmatprep.subr.mxu0 0.0
  %311 = vmatpush1.msra.mxu0 %v88
  %312 = vmatprep.subr.mxu0 0.0
  %313 = vmatpush1.msra.mxu0 %v89
  %314 = vmatprep.subr.mxu0 0.0
  %315 = vmatpush1.msra.mxu0 %v90
  %316 = vmatprep.subr.mxu0 0.0
  %317 = vmatpush1.msra.mxu0 %v91
  %318 = vmatprep.subr.mxu0 0.0
  %319 = vmatpush1.msra.mxu0 %v92
  %320 = vmatprep.subr.mxu0 0.0
  %321 = vmatpush1.msra.mxu0 %v93
  %322 = vmatprep.subr.mxu0 0.0
  %323 = vmatpush1.msra.mxu0 %v94
  %324 = vmatprep.subr.mxu0 0.0
  %325 = vmatpush1.msra.mxu0 %v95
  %326 = vmatprep.subr.mxu0 0.0
  %327 = vmatpush1.msra.mxu0 %v96
  %328 = vmatprep.subr.mxu0 0.0
  %329 = vmatpush1.msra.mxu0 %v97
  %330 = vmatprep.subr.mxu0 0.0
  %331 = vmatpush1.msra.mxu0 %v98
  %332 = vmatprep.subr.mxu0 0.0
  %333 = vmatpush1.msra.mxu0 %v99
  %334 = vmatprep.subr.mxu0 0.0
  %335 = vmatpush1.msra.mxu0 %v100
  %336 = vmatprep.subr.mxu0 0.0
  %337 = vmatpush1.msra.mxu0 %v101
  %338 = vmatprep.subr.mxu0 0.0
  %339 = vmatpush1.msra.mxu0 %v102
  %340 = vmatprep.subr.mxu0 0.0
  %341 = vmatpush1.msra.mxu0 %v103
  %342 = vmatprep.subr.mxu0 0.0
  %343 = vmatpush1.msra.mxu0 %v104
  %344 = vmatprep.subr.mxu0 0.0
  %345 = vmatpush1.msra.mxu0 %v105
  %346 = vmatprep.subr.mxu0 0.0
  %347 = vmatpush1.msra.mxu0 %v106
  %348 = vmatprep.subr.mxu0 0.0
  %349 = vmatpush1.msra.mxu0 %v107
  %350 = vmatprep.subr.mxu0 0.0
  %351 = vmatpush1.msra.mxu0 %v108
  %352 = vmatprep.subr.mxu0 0.0
  %353 = vmatpush1.msra.mxu0 %v109
  %354 = vmatprep.subr.mxu0 0.0
  %355 = vmatpush1.msra.mxu0 %v110
  %356 = vmatprep.mubr.f32.mxu0 %v290
  %357 = vmatmul.mubr.f32.gmra.mrb[0].mxu0 %v13
  %v358 = vpop.f32.mrb[0].mxu0
  %v359 = vadd.f32 0.0, %v358
  %v360 = vpop.f32.mrb[0].mxu0
  %361 = vdwg.mxu0
  %v363 = vcombine.high %v14, %v14
  %365 = vmatprep.subr.mxu0 0.0
  %366 = vmatpush1.msra.mxu0 %v111
  %367 = vmatprep.subr.mxu0 0.0
  %368 = vmatpush1.msra.mxu0 %v112
  %369 = vmatprep.subr.mxu0 0.0
  %370 = vmatpush1.msra.mxu0 %v113
  %371 = vmatprep.subr.mxu0 0.0
  %372 = vmatpush1.msra.mxu0 %v114
  %373 = vmatprep.subr.mxu0 0.0
  %374 = vmatpush1.msra.mxu0 %v115
  %375 = vmatprep.subr.mxu0 0.0
  %376 = vmatpush1.msra.mxu0 %v116
  %377 = vmatprep.subr.mxu0 0.0
  %378 = vmatpush1.msra.mxu0 %v117
  %379 = vmatprep.subr.mxu0 0.0
  %380 = vmatpush1.msra.mxu0 %v118
  %381 = vmatprep.subr.mxu0 0.0
  %382 = vmatpush1.msra.mxu0 %v119
  %383 = vmatprep.subr.mxu0 0.0
  %384 = vmatpush1.msra.mxu0 %v120
  %385 = vmatprep.subr.mxu0 0.0
  %386 = vmatpush1.msra.mxu0 %v121
  %387 = vmatprep.subr.mxu0 0.0
  %388 = vmatpush1.msra.mxu0 %v122
  %389 = vmatprep.subr.mxu0 0.0
  %390 = vmatpush1.msra.mxu0 %v123
  %391 = vmatprep.subr.mxu0 0.0
  %392 = vmatpush1.msra.mxu0 %v124
  %393 = vmatprep.subr.mxu0 0.0
  %394 = vmatpush1.msra.mxu0 %v125
  %395 = vmatprep.subr.mxu0 0.0
  %396 = vmatpush1.msra.mxu0 %v126
  %397 = vmatprep.subr.mxu0 0.0
  %398 = vmatpush1.msra.mxu0 %v127
  %399 = vmatprep.subr.mxu0 0.0
  %400 = vmatpush1.msra.mxu0 %v128
  %401 = vmatprep.subr.mxu0 0.0
  %402 = vmatpush1.msra.mxu0 %v129
  %403 = vmatprep.subr.mxu0 0.0
  %404 = vmatpush1.msra.mxu0 %v130
  %405 = vmatprep.subr.mxu0 0.0
  %406 = vmatpush1.msra.mxu0 %v131
  %407 = vmatprep.subr.mxu0 0.0
  %408 = vmatpush1.msra.mxu0 %v132
  %409 = vmatprep.subr.mxu0 0.0
  %410 = vmatpush1.msra.mxu0 %v133
  %411 = vmatprep.subr.mxu0 0.0
  %412 = vmatpush1.msra.mxu0 %v134
  %413 = vmatprep.subr.mxu0 0.0
  %414 = vmatpush1.msra.mxu0 %v135
  %415 = vmatprep.subr.mxu0 0.0
  %416 = vmatpush1.msra.mxu0 %v136
  %417 = vmatprep.subr.mxu0 0.0
  %418 = vmatpush1.msra.mxu0 %v137
  %419 = vmatprep.subr.mxu0 0.0
  %420 = vmatpush1.msra.mxu0 %v138
  %421 = vmatprep.subr.mxu0 0.0
  %422 = vmatpush1.msra.mxu0 %v139
  %423 = vmatprep.subr.mxu0 0.0
  %424 = vmatpush1.msra.mxu0 %v140
  %425 = vmatprep.subr.mxu0 0.0
  %426 = vmatpush1.msra.mxu0 %v141
  %427 = vmatprep.subr.mxu0 0.0
  %428 = vmatpush1.msra.mxu0 %v142
  %429 = vmatprep.mubr.f32.mxu0 %v363
  %430 = vmatmul.mubr.f32.gmra.mrb[0].mxu0 %v14
  %v431 = vpop.f32.mrb[0].mxu0
  %v432 = vadd.f32 0.0, %v431
  %v433 = vpop.f32.mrb[0].mxu0
  %434 = vdwg.mxu0
  %v435 = vtanh.pop %v213
  %v436 = vtanh.pop %v286
  %v437 = vtanh.pop %v359
  %v438 = vtanh.pop %v432
  %439 = vst [vmem:[%s2] sm:$0x7] %v435
  %440 = vst [vmem:[%s2 + $0x4] sm:$0x7] %v436
  %441 = vst [vmem:[%s2 + $0x8] sm:$0x7] %v437
  %442 = vst [vmem:[%s2 + $0xc] sm:$0x7] %v438
  // Predicated region
  $region10: #{generator_forward.7} parent=0 // pred_check
    _
  $region11: #{generator_forward.7} parent=0 // pred_check_branch
    %444 = sbr.rel (0) target = $region13
  $region12: #{generator_forward.7} parent=0 // pred_region
    _
  $region13: #{generator_forward.7} parent=0 // pred_fallthru
    _
  // Predicated region
  $region14: #{generator_forward.7} parent=0 // pred_check
    _
  $region15: #{generator_forward.7} parent=0 // pred_check_branch
    %446 = sbr.rel (0) target = $region17
  $region16: #{generator_forward.7} parent=0 // pred_region
    _
  $region17: #{generator_forward.7} parent=0 // pred_fallthru
    _

</llo_original>
